<compile_context>
chip_gen: v7x
topology: tpu7x:2x2x1
jax: 0.10.0
libtpu: 0.0.40
codegen_flags: <defaults>
</compile_context>

<pallas_src>
import functools

import numpy as np
import jax
import jax.numpy as jnp
from jax.experimental import pallas as pl
from jax.experimental.pallas import tpu as pltpu


def _mixconv_kernel(x_ref, w_ref, scale_ref, shift_ref, o_ref, xp_ref,
                    *, B, H, W, C, C2, use_im2col, channel_major):
    """One block of B images per grid step.

    x_ref     : (B, H, W, C)     bf16 NHWC input block (un-padded)
    w_ref     : (9*C, C2)        bf16 combined im2col weight (tap-major rows)
    scale_ref : (1, C2)          f32 fused inference-BN scale
    shift_ref : (1, C2)          f32 fused inference-BN shift
    o_ref     : (B, C2, H*W)     if channel_major (C2 < 128)
                (B, H*W, C2)     otherwise
    xp_ref    : (B, H+2, W+2, C) bf16 VMEM scratch (halo-padded copy)
    """
    M = B * H * W
    xi = x_ref[...]                                      # (B, H, W, C) bf16

    # Zero only the 1-pixel halo border (perimeter, not a full-tile fill); the
    # interior is fully overwritten below.  Re-done every grid step so it is
    # safe under megacore "parallel" sharding of the batch axis.
    zrow = jnp.zeros((B, 1, W + 2, C), xp_ref.dtype)
    xp_ref[:, 0:1, :, :] = zrow
    xp_ref[:, H + 1:H + 2, :, :] = zrow
    zcol = jnp.zeros((B, H, 1, C), xp_ref.dtype)
    xp_ref[:, 1:H + 1, 0:1, :] = zcol
    xp_ref[:, 1:H + 1, W + 1:W + 2, :] = zcol
    xp_ref[:, 1:H + 1, 1:W + 1, :] = xi

    if use_im2col:
        # C < 128: one im2col tile (M, 9C) and a single MXU matmul with K = 9C
        # (keeps the MXU fed when C alone is narrow).
        taps = [xp_ref[:, kh:kh + H, kw:kw + W, :]
                for kh in range(3) for kw in range(3)]
        patches = jnp.concatenate(taps, axis=-1).reshape(M, 9 * C)
        y = jnp.dot(patches, w_ref[...], preferred_element_type=jnp.float32)
    else:
        # C >= 128: the MXU is already fed at K = C; accumulate 9 per-tap
        # matmuls instead of materializing the 9x im2col slab + lane concat.
        y = jnp.zeros((M, C2), jnp.float32)
        for t in range(9):
            kh, kw = divmod(t, 3)
            tap = xp_ref[:, kh:kh + H, kw:kw + W, :].reshape(M, C)
            y += jnp.dot(tap, w_ref[t * C:(t + 1) * C, :],
                         preferred_element_type=jnp.float32)

    # Fused inference-BN affine + LeakyReLU(0.1) + residual, all in f32.
    y = y * scale_ref[...] + shift_ref[...]
    y = jnp.where(y >= 0, y, 0.1 * y)
    # Residual from the already-resident input block (aligned vld, layout-
    # preserving reshape) instead of a cross-lane slice of the im2col tile.
    out = xi.reshape(M, C).astype(jnp.float32) + y       # (M, C2) f32
    out = out.astype(o_ref.dtype)

    if channel_major:
        # C2 < 128: store channel-major so the lane dim is H*W (lane-dense,
        # unmasked vst) and the wrapper gets NCHW with a free reshape.
        HW = H * W
        for b in range(B):
            o_ref[b] = out[b * HW:(b + 1) * HW, :].T     # (C2, H*W)
    else:
        # C2 >= 128: channels are already lane-dense; no transpose needed.
        o_ref[...] = out.reshape(B, H * W, C2)


def _per_image_vmem_bytes(H, W, C, C2, use_im2col, out_bytes):
    b = 0
    b += 2 * H * W * C * 2                 # input block (bf16), double buffered
    b += 2 * H * W * C2 * out_bytes        # output block, double buffered
    b += (H + 2) * (W + 2) * C * 2         # halo-padded scratch (bf16)
    if use_im2col:
        b += H * W * 9 * C * 2             # im2col slab (bf16)
    b += 2 * H * W * C2 * 4                # f32 matmul result + epilogue temp
    return b


def mixconv2d_v2(x_nchw, w1, w3, gamma, beta, run_mean, run_var, eps=1e-5,
                 out_dtype=jnp.float32):
    """x_nchw: (N, C, H, W) f32.
       w1: (C, c2a)       1x1 conv weights (in_ch, out_ch).
       w3: (3, 3, C, c2b) 3x3 conv weights (HWIO)."""
    N, C, H, W = x_nchw.shape
    c2a = w1.shape[1]
    c2b = w3.shape[-1]
    C2 = c2a + c2b
    assert C2 == C, "residual x + f(x) requires c1 == c2"

    use_im2col = C < 128
    channel_major = C2 < 128
    out_bytes = np.dtype(out_dtype).itemsize

    # NCHW -> NHWC + bf16 downcast in one fused XLA pass (module boundary is
    # NCHW f32; see TODO above about accepting NHWC bf16 directly).
    x = jnp.transpose(x_nchw, (0, 2, 3, 1)).astype(jnp.bfloat16)

    # Combined im2col weight (9*C, C2).  Row block t = kh*3+kw holds the C
    # input channels of that tap.  3x3 weights fill columns [c2a:]; the 1x1
    # weights go into the centre-tap block (rows 4C:5C), columns [:c2a], so
    # the channel concatenation falls out of one matmul.
    w = jnp.zeros((9 * C, C2), jnp.float32)
    w = w.at[:, c2a:].set(w3.astype(jnp.float32).reshape(9 * C, c2b))
    w = w.at[4 * C:5 * C, :c2a].set(w1.astype(jnp.float32))
    w = w.astype(jnp.bfloat16)

    inv_std = 1.0 / jnp.sqrt(run_var.astype(jnp.float32) + eps)
    scale = (gamma * inv_std).reshape(1, C2).astype(jnp.float32)
    shift = (beta - run_mean * gamma * inv_std).reshape(1, C2).astype(jnp.float32)

    # Batch several images per grid step to amortize per-step overhead and the
    # MXU weight re-push: largest divisor of N whose working set fits budget.
    per_img = _per_image_vmem_bytes(H, W, C, C2, use_im2col, out_bytes)
    budget = 24 << 20
    B = 1
    for d in range(1, N + 1):
        if N % d == 0 and d * per_img <= budget:
            B = d
    vmem_limit = int(min(max(2 * B * per_img + (4 << 20), 32 << 20), 64 << 20))

    kernel = functools.partial(_mixconv_kernel, B=B, H=H, W=W, C=C, C2=C2,
                               use_im2col=use_im2col,
                               channel_major=channel_major)

    if channel_major:
        out_shape = jax.ShapeDtypeStruct((N, C2, H * W), out_dtype)
        out_spec = pl.BlockSpec((B, C2, H * W), lambda n: (n, 0, 0))
    else:
        out_shape = jax.ShapeDtypeStruct((N, H * W, C2), out_dtype)
        out_spec = pl.BlockSpec((B, H * W, C2), lambda n: (n, 0, 0))

    out = pl.pallas_call(
        kernel,
        out_shape=out_shape,
        grid_spec=pltpu.PrefetchScalarGridSpec(
            num_scalar_prefetch=0,
            grid=(N // B,),
            in_specs=[
                pl.BlockSpec((B, H, W, C), lambda n: (n, 0, 0, 0)),
                pl.BlockSpec((9 * C, C2), lambda n: (0, 0)),
                pl.BlockSpec((1, C2), lambda n: (0, 0)),
                pl.BlockSpec((1, C2), lambda n: (0, 0)),
            ],
            out_specs=out_spec,
            scratch_shapes=[pltpu.VMEM((B, H + 2, W + 2, C), jnp.bfloat16)],
        ),
        compiler_params=pltpu.CompilerParams(
            dimension_semantics=("parallel",),
            vmem_limit_bytes=vmem_limit),
    )(x, w, scale, shift)

    if channel_major:
        # Channel-major output is already NCHW; H*W -> (H, W) split is free.
        return out.reshape(N, C2, H, W)
    # Kept only to honor the module's NCHW contract (see TODO at top).
    return jnp.transpose(out.reshape(N, H, W, C2), (0, 3, 1, 2))


def _reference(x_nchw, w1, w3, gamma, beta, run_mean, run_var, eps=1e-5):
    """Pure-JAX f32 reference (lax conv) mirroring the PyTorch forward."""
    x = jnp.transpose(x_nchw, (0, 2, 3, 1)).astype(jnp.float32)
    dn = ('NHWC', 'HWIO', 'NHWC')
    y1 = jax.lax.conv_general_dilated(x, w1[None, None], (1, 1), 'SAME',
                                      dimension_numbers=dn)
    y3 = jax.lax.conv_general_dilated(x, w3, (1, 1), 'SAME',
                                      dimension_numbers=dn)
    y = jnp.concatenate([y1, y3], axis=-1)
    y = (y - run_mean) / jnp.sqrt(run_var + eps) * gamma + beta
    y = jnp.where(y >= 0, y, 0.1 * y)
    return jnp.transpose(x + y, (0, 3, 1, 2))


def _run_case(N, C, H, W, key):
    # Channel split across branches, exactly as the PyTorch __init__ (equal_ch).
    groups = 2
    idx = np.floor(np.linspace(0.0, groups - 1e-6, C))
    c2a = int((idx == 0).sum())
    c2b = int((idx == 1).sum())

    kx, k1, k2, kg, kb, km, kv = jax.random.split(key, 7)
    x = jax.random.normal(kx, (N, C, H, W), jnp.float32)
    w1 = 0.05 * jax.random.normal(k1, (C, c2a), jnp.float32)        # 1x1 (I,O)
    w3 = 0.05 * jax.random.normal(k2, (3, 3, C, c2b), jnp.float32)  # 3x3 HWIO

    # Inference-mode BatchNorm2d parameters (non-trivial, deterministic).
    gamma = 1.0 + 0.1 * jax.random.normal(kg, (C,), jnp.float32)
    beta = 0.05 * jax.random.normal(kb, (C,), jnp.float32)
    run_mean = 0.1 * jax.random.normal(km, (C,), jnp.float32)
    run_var = jax.random.uniform(kv, (C,), jnp.float32, 0.5, 1.5)

    out = mixconv2d_v2(x, w1, w3, gamma, beta, run_mean, run_var)
    out = jax.block_until_ready(out)

    ref = _reference(x, w1, w3, gamma, beta, run_mean, run_var)
    # Tolerance accounts for bf16 MXU operands (activations + weights) and the
    # bf16-rounded residual; accumulation and the epilogue are f32.
    np.testing.assert_allclose(np.asarray(out), np.asarray(ref),
                               rtol=5e-2, atol=5e-2)


if __name__ == "__main__":
    key = jax.random.PRNGKey(0)
    k_small, k_wide = jax.random.split(key)
    # Small-channel case (c1 == c2 == 16): im2col + channel-major output path.
    _run_case(2, 16, 16, 16, k_small)
    # Wide-channel case (c1 == c2 == 128): per-tap accumulated matmuls +
    # lane-dense NHWC store (no in-kernel transpose).
    _run_case(1, 128, 8, 8, k_wide)
    print("KERNEL_OK")
</pallas_src>

<mosaic_0001>
module attributes {stable_mosaic.version = 11 : i64} {
  func.func @_mixconv_kernel(%arg0: i32, %arg1: memref<2x16x16x16xbf16, #tpu.memory_space<vmem>>, %arg2: memref<144x16xbf16, #tpu.memory_space<vmem>>, %arg3: memref<1x16xf32, #tpu.memory_space<vmem>>, %arg4: memref<1x16xf32, #tpu.memory_space<vmem>>, %arg5: memref<2x16x256xf32, #tpu.memory_space<vmem>>, %arg6: memref<2x18x18x16xbf16, #tpu.memory_space<vmem>>) attributes {dimension_semantics = [#tpu.dimension_semantics<parallel>], iteration_bounds = array<i64: 1>, scalar_prefetch = 0 : i64, scratch_operands = 1 : i64, tpu.core_type = #tpu.core_type<tc>, window_params = [{transform_indices = @transform_0, window_bounds = array<i64: 2, 16, 16, 16>}, {pipeline_mode = #tpu.pipeline_mode<synchronous>, transform_indices = @transform_1, window_bounds = array<i64: 144, 16>}, {pipeline_mode = #tpu.pipeline_mode<synchronous>, transform_indices = @transform_2, window_bounds = array<i64: 1, 16>}, {pipeline_mode = #tpu.pipeline_mode<synchronous>, transform_indices = @transform_3, window_bounds = array<i64: 1, 16>}, {transform_indices = @transform_4, window_bounds = array<i64: 2, 16, 256>}]} {
    %c0 = arith.constant 0 : index
    %c0_0 = arith.constant 0 : index
    %c0_1 = arith.constant 0 : index
    %c0_2 = arith.constant 0 : index
    %0 = vector.load %arg1[%c0, %c0_0, %c0_1, %c0_2] : memref<2x16x16x16xbf16, #tpu.memory_space<vmem>>, vector<2x16x16x16xbf16>
    %cst = arith.constant 0.000000e+00 : bf16
    %1 = vector.broadcast %cst : bf16 to vector<2x1x18x16xbf16>
    %c0_3 = arith.constant 0 : index
    %c0_4 = arith.constant 0 : index
    %c0_5 = arith.constant 0 : index
    %c0_6 = arith.constant 0 : index
    %2 = vector.load %arg6[%c0_3, %c0_4, %c0_5, %c0_6] : memref<2x18x18x16xbf16, #tpu.memory_space<vmem>>, vector<2x1x18x16xbf16>
    tpu.vector_store %arg6[%c0_3, %c0_4, %c0_5, %c0_6], %1 {strides = array<i32>} : memref<2x18x18x16xbf16, #tpu.memory_space<vmem>>, vector<2x1x18x16xbf16>,
    %c0_7 = arith.constant 0 : index
    %c17 = arith.constant 17 : index
    %c0_8 = arith.constant 0 : index
    %c0_9 = arith.constant 0 : index
    %3 = vector.load %arg6[%c0_7, %c17, %c0_8, %c0_9] : memref<2x18x18x16xbf16, #tpu.memory_space<vmem>>, vector<2x1x18x16xbf16>
    tpu.vector_store %arg6[%c0_7, %c17, %c0_8, %c0_9], %1 {strides = array<i32>} : memref<2x18x18x16xbf16, #tpu.memory_space<vmem>>, vector<2x1x18x16xbf16>,
    %cst_10 = arith.constant 0.000000e+00 : bf16
    %4 = vector.broadcast %cst_10 : bf16 to vector<2x16x1x16xbf16>
    %c0_11 = arith.constant 0 : index
    %c1 = arith.constant 1 : index
    %c0_12 = arith.constant 0 : index
    %c0_13 = arith.constant 0 : index
    %5 = vector.load %arg6[%c0_11, %c1, %c0_12, %c0_13] : memref<2x18x18x16xbf16, #tpu.memory_space<vmem>>, vector<2x16x1x16xbf16>
    tpu.vector_store %arg6[%c0_11, %c1, %c0_12, %c0_13], %4 {strides = array<i32>} : memref<2x18x18x16xbf16, #tpu.memory_space<vmem>>, vector<2x16x1x16xbf16>,
    %c0_14 = arith.constant 0 : index
    %c1_15 = arith.constant 1 : index
    %c17_16 = arith.constant 17 : index
    %c0_17 = arith.constant 0 : index
    %6 = vector.load %arg6[%c0_14, %c1_15, %c17_16, %c0_17] : memref<2x18x18x16xbf16, #tpu.memory_space<vmem>>, vector<2x16x1x16xbf16>
    tpu.vector_store %arg6[%c0_14, %c1_15, %c17_16, %c0_17], %4 {strides = array<i32>} : memref<2x18x18x16xbf16, #tpu.memory_space<vmem>>, vector<2x16x1x16xbf16>,
    %c0_18 = arith.constant 0 : index
    %c1_19 = arith.constant 1 : index
    %c1_20 = arith.constant 1 : index
    %c0_21 = arith.constant 0 : index
    %7 = vector.load %arg6[%c0_18, %c1_19, %c1_20, %c0_21] : memref<2x18x18x16xbf16, #tpu.memory_space<vmem>>, vector<2x16x16x16xbf16>
    tpu.vector_store %arg6[%c0_18, %c1_19, %c1_20, %c0_21], %0 {strides = array<i32>} : memref<2x18x18x16xbf16, #tpu.memory_space<vmem>>, vector<2x16x16x16xbf16>,
    %c0_22 = arith.constant 0 : index
    %c0_23 = arith.constant 0 : index
    %c0_24 = arith.constant 0 : index
    %c0_25 = arith.constant 0 : index
    %8 = vector.load %arg6[%c0_22, %c0_23, %c0_24, %c0_25] : memref<2x18x18x16xbf16, #tpu.memory_space<vmem>>, vector<2x16x16x16xbf16>
    %c0_26 = arith.constant 0 : index
    %c0_27 = arith.constant 0 : index
    %c1_28 = arith.constant 1 : index
    %c0_29 = arith.constant 0 : index
    %9 = vector.load %arg6[%c0_26, %c0_27, %c1_28, %c0_29] : memref<2x18x18x16xbf16, #tpu.memory_space<vmem>>, vector<2x16x16x16xbf16>
    %c0_30 = arith.constant 0 : index
    %c0_31 = arith.constant 0 : index
    %c2 = arith.constant 2 : index
    %c0_32 = arith.constant 0 : index
    %10 = vector.load %arg6[%c0_30, %c0_31, %c2, %c0_32] : memref<2x18x18x16xbf16, #tpu.memory_space<vmem>>, vector<2x16x16x16xbf16>
    %c0_33 = arith.constant 0 : index
    %c1_34 = arith.constant 1 : index
    %c0_35 = arith.constant 0 : index
    %c0_36 = arith.constant 0 : index
    %11 = vector.load %arg6[%c0_33, %c1_34, %c0_35, %c0_36] : memref<2x18x18x16xbf16, #tpu.memory_space<vmem>>, vector<2x16x16x16xbf16>
    %c0_37 = arith.constant 0 : index
    %c1_38 = arith.constant 1 : index
    %c1_39 = arith.constant 1 : index
    %c0_40 = arith.constant 0 : index
    %12 = vector.load %arg6[%c0_37, %c1_38, %c1_39, %c0_40] : memref<2x18x18x16xbf16, #tpu.memory_space<vmem>>, vector<2x16x16x16xbf16>
    %c0_41 = arith.constant 0 : index
    %c1_42 = arith.constant 1 : index
    %c2_43 = arith.constant 2 : index
    %c0_44 = arith.constant 0 : index
    %13 = vector.load %arg6[%c0_41, %c1_42, %c2_43, %c0_44] : memref<2x18x18x16xbf16, #tpu.memory_space<vmem>>, vector<2x16x16x16xbf16>
    %c0_45 = arith.constant 0 : index
    %c2_46 = arith.constant 2 : index
    %c0_47 = arith.constant 0 : index
    %c0_48 = arith.constant 0 : index
    %14 = vector.load %arg6[%c0_45, %c2_46, %c0_47, %c0_48] : memref<2x18x18x16xbf16, #tpu.memory_space<vmem>>, vector<2x16x16x16xbf16>
    %c0_49 = arith.constant 0 : index
    %c2_50 = arith.constant 2 : index
    %c1_51 = arith.constant 1 : index
    %c0_52 = arith.constant 0 : index
    %15 = vector.load %arg6[%c0_49, %c2_50, %c1_51, %c0_52] : memref<2x18x18x16xbf16, #tpu.memory_space<vmem>>, vector<2x16x16x16xbf16>
    %c0_53 = arith.constant 0 : index
    %c2_54 = arith.constant 2 : index
    %c2_55 = arith.constant 2 : index
    %c0_56 = arith.constant 0 : index
    %16 = vector.load %arg6[%c0_53, %c2_54, %c2_55, %c0_56] : memref<2x18x18x16xbf16, #tpu.memory_space<vmem>>, vector<2x16x16x16xbf16>
    %17 = tpu.concatenate %8, %9, %10, %11, %12, %13, %14, %15, %16 in 3 : vector<2x16x16x16xbf16>, vector<2x16x16x16xbf16>, vector<2x16x16x16xbf16>, vector<2x16x16x16xbf16>, vector<2x16x16x16xbf16>, vector<2x16x16x16xbf16>, vector<2x16x16x16xbf16>, vector<2x16x16x16xbf16>, vector<2x16x16x16xbf16> -> vector<2x16x16x144xbf16>
    %18 = vector.shape_cast %17 : vector<2x16x16x144xbf16> to vector<512x144xbf16>
    %c0_57 = arith.constant 0 : index
    %c0_58 = arith.constant 0 : index
    %19 = vector.load %arg2[%c0_57, %c0_58] : memref<144x16xbf16, #tpu.memory_space<vmem>>, vector<144x16xbf16>
    %cst_59 = arith.constant dense<0.000000e+00> : vector<512x16xf32>
    %20 = tpu.matmul %18, %19, %cst_59 {dimension_numbers = #tpu.dot_dimension_numbers<[1], [0], [0], [1], [0, 0, 1, 1], [], []>} : vector<512x144xbf16>, vector<144x16xbf16>, vector<512x16xf32> -> vector<512x16xf32>
    %c0_60 = arith.constant 0 : index
    %c0_61 = arith.constant 0 : index
    %21 = vector.load %arg3[%c0_60, %c0_61] : memref<1x16xf32, #tpu.memory_space<vmem>>, vector<1x16xf32>
    %22 = vector.broadcast %21 : vector<1x16xf32> to vector<512x16xf32>
    %23 = arith.mulf %20, %22 : vector<512x16xf32>
    %c0_62 = arith.constant 0 : index
    %c0_63 = arith.constant 0 : index
    %24 = vector.load %arg4[%c0_62, %c0_63] : memref<1x16xf32, #tpu.memory_space<vmem>>, vector<1x16xf32>
    %25 = vector.broadcast %24 : vector<1x16xf32> to vector<512x16xf32>
    %26 = arith.addf %23, %25 : vector<512x16xf32>
    %cst_64 = arith.constant 0.000000e+00 : f32
    %27 = vector.broadcast %cst_64 : f32 to vector<512x16xf32>
    %28 = arith.cmpf oge, %26, %27 : vector<512x16xf32>
    %cst_65 = arith.constant 1.000000e-01 : f32
    %29 = vector.broadcast %cst_65 : f32 to vector<512x16xf32>
    %30 = arith.mulf %29, %26 : vector<512x16xf32>
    %31 = arith.select %28, %26, %30 : vector<512x16xi1>, vector<512x16xf32>
    %32 = vector.shape_cast %0 : vector<2x16x16x16xbf16> to vector<512x16xbf16>
    %33 = arith.extf %32 : vector<512x16xbf16> to vector<512x16xf32>
    %34 = arith.addf %33, %31 : vector<512x16xf32>
    %35 = vector.extract_strided_slice %34 {offsets = [0, 0], sizes = [256, 16], strides = [1, 1]} : vector<512x16xf32> to vector<256x16xf32>
    %36 = tpu.transpose %35, [1, 0] : vector<256x16xf32> -> vector<16x256xf32>
    %c0_66 = arith.constant 0 : index
    %c0_67 = arith.constant 0 : index
    %c0_68 = arith.constant 0 : index
    %37 = vector.load %arg5[%c0_66, %c0_67, %c0_68] : memref<2x16x256xf32, #tpu.memory_space<vmem>>, vector<1x16x256xf32>
    %38 = vector.shape_cast %37 : vector<1x16x256xf32> to vector<16x256xf32>
    %39 = vector.shape_cast %36 : vector<16x256xf32> to vector<1x16x256xf32>
    tpu.vector_store %arg5[%c0_66, %c0_67, %c0_68], %39 {strides = array<i32>} : memref<2x16x256xf32, #tpu.memory_space<vmem>>, vector<1x16x256xf32>,
    %40 = vector.extract_strided_slice %34 {offsets = [256, 0], sizes = [256, 16], strides = [1, 1]} : vector<512x16xf32> to vector<256x16xf32>
    %41 = tpu.transpose %40, [1, 0] : vector<256x16xf32> -> vector<16x256xf32>
    %c1_69 = arith.constant 1 : index
    %c0_70 = arith.constant 0 : index
    %c0_71 = arith.constant 0 : index
    %42 = vector.load %arg5[%c1_69, %c0_70, %c0_71] : memref<2x16x256xf32, #tpu.memory_space<vmem>>, vector<1x16x256xf32>
    %43 = vector.shape_cast %42 : vector<1x16x256xf32> to vector<16x256xf32>
    %44 = vector.shape_cast %41 : vector<16x256xf32> to vector<1x16x256xf32>
    tpu.vector_store %arg5[%c1_69, %c0_70, %c0_71], %44 {strides = array<i32>} : memref<2x16x256xf32, #tpu.memory_space<vmem>>, vector<1x16x256xf32>,
    return
  }
  func.func @transform_0(%arg0: i32) -> (i32, i32, i32, i32) {
    %c0_i32 = arith.constant 0 : i32
    %c0_i32_0 = arith.constant 0 : i32
    %c0_i32_1 = arith.constant 0 : i32
    %c0_i32_2 = arith.constant 0 : i32
    return %arg0, %c0_i32, %c0_i32_0, %c0_i32_1 : i32, i32, i32, i32
  }
  func.func @transform_1(%arg0: i32) -> (i32, i32) {
    %c0_i32 = arith.constant 0 : i32
    %c0_i32_0 = arith.constant 0 : i32
    %c0_i32_1 = arith.constant 0 : i32
    return %c0_i32, %c0_i32_0 : i32, i32
  }
  func.func @transform_2(%arg0: i32) -> (i32, i32) {
    %c0_i32 = arith.constant 0 : i32
    %c0_i32_0 = arith.constant 0 : i32
    %c0_i32_1 = arith.constant 0 : i32
    return %c0_i32, %c0_i32_0 : i32, i32
  }
  func.func @transform_3(%arg0: i32) -> (i32, i32) {
    %c0_i32 = arith.constant 0 : i32
    %c0_i32_0 = arith.constant 0 : i32
    %c0_i32_1 = arith.constant 0 : i32
    return %c0_i32, %c0_i32_0 : i32, i32
  }
  func.func @transform_4(%arg0: i32) -> (i32, i32, i32) {
    %c0_i32 = arith.constant 0 : i32
    %c0_i32_0 = arith.constant 0 : i32
    %c0_i32_1 = arith.constant 0 : i32
    return %arg0, %c0_i32, %c0_i32_0 : i32, i32, i32
  }
}

</mosaic_0001>

<llo_original>
// kernel: tpu_custom_call.1
$region0: #{tpu_custom_call.1}
  #allocation0 [shape = 'u32[]', space=smem, size = 0x4, offset = 0x4, fixed_abs, tag = 'smem constant byte address 0x4 - core index']
  #allocation1 [shape = 'u32[144,128]{1,0:T(1,128)}', space=vmem, size = 0x12000, scoped, tag = 'internal scratch']
  #allocation2 [shape = 'bf16[2,18,18,16]{3,2,1,0:T(8,128)(2,1)}', space=vmem, size = 0x36000, scoped, tag = 'scratch operand']
  %s0 = inlined_call_operand.hbm [shape: bf16[2,16,16,16], index: 0, kind: input, shape index: {}]
  %s1 = inlined_call_operand.vmem [shape: bf16[144,16], index: 1, kind: input, shape index: {}]
  %s2 = inlined_call_operand.vmem [shape: f32[1,16], index: 2, kind: input, shape index: {}]
  %s3 = inlined_call_operand.vmem [shape: f32[1,16], index: 3, kind: input, shape index: {}]
  %s4 = inlined_call_operand.hbm [shape: f32[2,16,256], index: 4, kind: output, shape index: {}]
  %s5 = sld [smem:[#allocation0]]
  $region30: #{tpu_custom_call.1} parent=0
    _
  %s7 = ssub.s32 1, %s5
  %s8 = scalar_select 0, %s7, %s5
  $region1: #{tpu_custom_call.1} parent=0
    #allocation3 [shape = 'u8[131072]{0}', space=vmem, size = 0x20000, scoped, tag = 'input window, operand 0, single buffered']
    #allocation4 [shape = 's32[1]{0}', space=sflag, size = 0x4, scoped, tag = 'scoped memory for tpu_custom_call.1']
    #allocation5 [shape = 's32[1]{0}', space=sflag, size = 0x4, scoped, tag = 'scoped memory for tpu_custom_call.1']
    #allocation6 [shape = 'u8[32768]{0}', space=vmem, size = 0x8000, scoped, tag = 'output window, operand 0, single buffered']
    %9 = vsyncpa [#allocation4], 0
    %10 = vsyncpa [#allocation5], 0
    // Predicated region
    $region2: #{tpu_custom_call.1} parent=1 // pred_check
      _
    $region3: #{tpu_custom_call.1} parent=1 // pred_check_branch
      %12 = sbr.rel (0) target = $region5
    $region4: #{tpu_custom_call.1} parent=1 // pred_region
      %s14 = ssub.s32 4096, 4096
      %15 = vsyncadd [#allocation4], %s14
      %s16 = sshll.u32 [#allocation3], 4
      %s17 = int_to_ptr.vmem [resolvable:$true] %s16
      %22 = dma.hbm_to_vmem [thread:$0]  %s0, 4096, %s17, [#allocation4], 64, 64, 4
    $region5: #{tpu_custom_call.1} parent=1 // pred_fallthru
      _
    // Predicated region
    $region6: #{tpu_custom_call.1} parent=1 // pred_check
      _
    $region7: #{tpu_custom_call.1} parent=1 // pred_check_branch
      %24 = sbr.rel (0) target = $region9
    $region8: #{tpu_custom_call.1} parent=1 // pred_region
      _
    $region9: #{tpu_custom_call.1} parent=1 // pred_fallthru
      _
    // Predicated region
    $region10: #{tpu_custom_call.1} parent=1 // pred_check
      _
    $region11: #{tpu_custom_call.1} parent=1 // pred_check_branch
      %26 = sbr.rel (0) target = $region13
    $region12: #{tpu_custom_call.1} parent=1 // pred_region
      _
    $region13: #{tpu_custom_call.1} parent=1 // pred_fallthru
      _
    // Predicated region
    $region14: #{tpu_custom_call.1} parent=1 // pred_check
      _
    $region15: #{tpu_custom_call.1} parent=1 // pred_check_branch
      %28 = sbr.rel (0) target = $region17
    $region16: #{tpu_custom_call.1} parent=1 // pred_region
      _
    $region17: #{tpu_custom_call.1} parent=1 // pred_fallthru
      _
    // Predicated region
    $region18: #{tpu_custom_call.1} parent=1 // pred_check
      _
    $region19: #{tpu_custom_call.1} parent=1 // pred_check_branch
      %30 = sbr.rel (0) target = $region21
    $region20: #{tpu_custom_call.1} parent=1 // pred_region
      %31 = dma.done [#allocation4], 4096
    $region21: #{tpu_custom_call.1} parent=1 // pred_fallthru
      _
    %v33 = vld [vmem:[#allocation3] sm:$0xf]
    %v34 = vld [vmem:[#allocation3 + $0x4] sm:$0xf]
    %v35 = vld [vmem:[#allocation3 + $0x8] sm:$0xf]
    %v36 = vld [vmem:[#allocation3 + $0xc] sm:$0xf]
    %v37 = vld [vmem:[#allocation3 + $0x10] sm:$0xf]
    %v38 = vld [vmem:[#allocation3 + $0x14] sm:$0xf]
    %v39 = vld [vmem:[#allocation3 + $0x18] sm:$0xf]
    %v40 = vld [vmem:[#allocation3 + $0x1c] sm:$0xf]
    %v41 = vld [vmem:[#allocation3 + $0x20] sm:$0xf]
    %v42 = vld [vmem:[#allocation3 + $0x24] sm:$0xf]
    %v43 = vld [vmem:[#allocation3 + $0x28] sm:$0xf]
    %v44 = vld [vmem:[#allocation3 + $0x2c] sm:$0xf]
    %v45 = vld [vmem:[#allocation3 + $0x30] sm:$0xf]
    %v46 = vld [vmem:[#allocation3 + $0x34] sm:$0xf]
    %v47 = vld [vmem:[#allocation3 + $0x38] sm:$0xf]
    %v48 = vld [vmem:[#allocation3 + $0x3c] sm:$0xf]
    %v49 = vld [vmem:[#allocation3 + $0x40] sm:$0xf]
    %v50 = vld [vmem:[#allocation3 + $0x44] sm:$0xf]
    %v51 = vld [vmem:[#allocation3 + $0x48] sm:$0xf]
    %v52 = vld [vmem:[#allocation3 + $0x4c] sm:$0xf]
    %v53 = vld [vmem:[#allocation3 + $0x50] sm:$0xf]
    %v54 = vld [vmem:[#allocation3 + $0x54] sm:$0xf]
    %v55 = vld [vmem:[#allocation3 + $0x58] sm:$0xf]
    %v56 = vld [vmem:[#allocation3 + $0x5c] sm:$0xf]
    %v57 = vld [vmem:[#allocation3 + $0x60] sm:$0xf]
    %v58 = vld [vmem:[#allocation3 + $0x64] sm:$0xf]
    %v59 = vld [vmem:[#allocation3 + $0x68] sm:$0xf]
    %v60 = vld [vmem:[#allocation3 + $0x6c] sm:$0xf]
    %v61 = vld [vmem:[#allocation3 + $0x70] sm:$0xf]
    %v62 = vld [vmem:[#allocation3 + $0x74] sm:$0xf]
    %v63 = vld [vmem:[#allocation3 + $0x78] sm:$0xf]
    %v64 = vld [vmem:[#allocation3 + $0x7c] sm:$0xf]
    %v65 = vld [vmem:[#allocation3 + $0x80] sm:$0xf]
    %v66 = vld [vmem:[#allocation3 + $0x84] sm:$0xf]
    %v67 = vld [vmem:[#allocation3 + $0x88] sm:$0xf]
    %v68 = vld [vmem:[#allocation3 + $0x8c] sm:$0xf]
    %v69 = vld [vmem:[#allocation3 + $0x90] sm:$0xf]
    %v70 = vld [vmem:[#allocation3 + $0x94] sm:$0xf]
    %v71 = vld [vmem:[#allocation3 + $0x98] sm:$0xf]
    %v72 = vld [vmem:[#allocation3 + $0x9c] sm:$0xf]
    %v73 = vld [vmem:[#allocation3 + $0xa0] sm:$0xf]
    %v74 = vld [vmem:[#allocation3 + $0xa4] sm:$0xf]
    %v75 = vld [vmem:[#allocation3 + $0xa8] sm:$0xf]
    %v76 = vld [vmem:[#allocation3 + $0xac] sm:$0xf]
    %v77 = vld [vmem:[#allocation3 + $0xb0] sm:$0xf]
    %v78 = vld [vmem:[#allocation3 + $0xb4] sm:$0xf]
    %v79 = vld [vmem:[#allocation3 + $0xb8] sm:$0xf]
    %v80 = vld [vmem:[#allocation3 + $0xbc] sm:$0xf]
    %v81 = vld [vmem:[#allocation3 + $0xc0] sm:$0xf]
    %v82 = vld [vmem:[#allocation3 + $0xc4] sm:$0xf]
    %v83 = vld [vmem:[#allocation3 + $0xc8] sm:$0xf]
    %v84 = vld [vmem:[#allocation3 + $0xcc] sm:$0xf]
    %v85 = vld [vmem:[#allocation3 + $0xd0] sm:$0xf]
    %v86 = vld [vmem:[#allocation3 + $0xd4] sm:$0xf]
    %v87 = vld [vmem:[#allocation3 + $0xd8] sm:$0xf]
    %v88 = vld [vmem:[#allocation3 + $0xdc] sm:$0xf]
    %v89 = vld [vmem:[#allocation3 + $0xe0] sm:$0xf]
    %v90 = vld [vmem:[#allocation3 + $0xe4] sm:$0xf]
    %v91 = vld [vmem:[#allocation3 + $0xe8] sm:$0xf]
    %v92 = vld [vmem:[#allocation3 + $0xec] sm:$0xf]
    %v93 = vld [vmem:[#allocation3 + $0xf0] sm:$0xf]
    %v94 = vld [vmem:[#allocation3 + $0xf4] sm:$0xf]
    %v95 = vld [vmem:[#allocation3 + $0xf8] sm:$0xf]
    %v96 = vld [vmem:[#allocation3 + $0xfc] sm:$0xf]
    %vm97 = vcmask 125952
    %98 = vst.msk [vmem:[#allocation2] sm:$0xf] %vm97, 0
    %99 = vst.msk [vmem:[#allocation2 + $0x4] sm:$0xf] %vm97, 0
    %vm100 = vcmask 122880
    %101 = vst.msk [vmem:[#allocation2 + $0x8] sm:$0x1] %vm100, 0
    %102 = vst.msk [vmem:[#allocation2 + $0xd8] sm:$0xf] %vm97, 0
    %103 = vst.msk [vmem:[#allocation2 + $0xdc] sm:$0xf] %vm97, 0
    %104 = vst.msk [vmem:[#allocation2 + $0xe0] sm:$0x1] %vm100, 0
    %s105 = scalar_lea.vmem [#allocation2], 204
    %106 = vst.msk [vmem:[%s105] sm:$0xf] %vm97, 0
    %107 = vst.msk [vmem:[%s105 + $0x4] sm:$0xf] %vm97, 0
    %108 = vst.msk [vmem:[%s105 + $0x8] sm:$0x1] %vm100, 0
    %109 = vst.msk [vmem:[%s105 + $0xd8] sm:$0xf] %vm97, 0
    %110 = vst.msk [vmem:[%s105 + $0xdc] sm:$0xf] %vm97, 0
    %111 = vst.msk [vmem:[%s105 + $0xe0] sm:$0x1] %vm100, 0
    %s112 = scalar_lea.vmem [#allocation2], 12
    %vm113 = vcmask 122880
    %vm114 = vsmask.f32 256
    %vm115 = vmand %vm113, %vm114
    %v116 = vld [vmem:[%s112] sm:$0x1]
    %v117 = vsel %vm115, 0, %v116
    %118 = vst [vmem:[%s112] sm:$0x1] %v117
    %v119 = vld [vmem:[%s112 + $0xc] sm:$0x1]
    %v120 = vsel %vm115, 0, %v119
    %121 = vst [vmem:[%s112 + $0xc] sm:$0x1] %v120
    %v122 = vld [vmem:[%s112 + $0x18] sm:$0x1]
    %v123 = vsel %vm115, 0, %v122
    %124 = vst [vmem:[%s112 + $0x18] sm:$0x1] %v123
    %v125 = vld [vmem:[%s112 + $0x24] sm:$0x1]
    %v126 = vsel %vm115, 0, %v125
    %127 = vst [vmem:[%s112 + $0x24] sm:$0x1] %v126
    %v128 = vld [vmem:[%s112 + $0x30] sm:$0x1]
    %v129 = vsel %vm115, 0, %v128
    %130 = vst [vmem:[%s112 + $0x30] sm:$0x1] %v129
    %v131 = vld [vmem:[%s112 + $0x3c] sm:$0x1]
    %v132 = vsel %vm115, 0, %v131
    %133 = vst [vmem:[%s112 + $0x3c] sm:$0x1] %v132
    %v134 = vld [vmem:[%s112 + $0x48] sm:$0x1]
    %v135 = vsel %vm115, 0, %v134
    %136 = vst [vmem:[%s112 + $0x48] sm:$0x1] %v135
    %v137 = vld [vmem:[%s112 + $0x54] sm:$0x1]
    %v138 = vsel %vm115, 0, %v137
    %139 = vst [vmem:[%s112 + $0x54] sm:$0x1] %v138
    %v140 = vld [vmem:[%s112 + $0x60] sm:$0x1]
    %v141 = vsel %vm115, 0, %v140
    %142 = vst [vmem:[%s112 + $0x60] sm:$0x1] %v141
    %v143 = vld [vmem:[%s112 + $0x6c] sm:$0x1]
    %v144 = vsel %vm115, 0, %v143
    %145 = vst [vmem:[%s112 + $0x6c] sm:$0x1] %v144
    %v146 = vld [vmem:[%s112 + $0x78] sm:$0x1]
    %v147 = vsel %vm115, 0, %v146
    %148 = vst [vmem:[%s112 + $0x78] sm:$0x1] %v147
    %v149 = vld [vmem:[%s112 + $0x84] sm:$0x1]
    %v150 = vsel %vm115, 0, %v149
    %151 = vst [vmem:[%s112 + $0x84] sm:$0x1] %v150
    %v152 = vld [vmem:[%s112 + $0x90] sm:$0x1]
    %v153 = vsel %vm115, 0, %v152
    %154 = vst [vmem:[%s112 + $0x90] sm:$0x1] %v153
    %v155 = vld [vmem:[%s112 + $0x9c] sm:$0x1]
    %v156 = vsel %vm115, 0, %v155
    %157 = vst [vmem:[%s112 + $0x9c] sm:$0x1] %v156
    %v158 = vld [vmem:[%s112 + $0xa8] sm:$0x1]
    %v159 = vsel %vm115, 0, %v158
    %160 = vst [vmem:[%s112 + $0xa8] sm:$0x1] %v159
    %v161 = vld [vmem:[%s112 + $0xb4] sm:$0x1]
    %v162 = vsel %vm115, 0, %v161
    %163 = vst [vmem:[%s112 + $0xb4] sm:$0x1] %v162
    %v164 = vld [vmem:[%s112 + $0xd8] sm:$0x1]
    %v165 = vsel %vm115, 0, %v164
    %166 = vst [vmem:[%s112 + $0xd8] sm:$0x1] %v165
    %v167 = vld [vmem:[%s112 + $0xe4] sm:$0x1]
    %v168 = vsel %vm115, 0, %v167
    %169 = vst [vmem:[%s112 + $0xe4] sm:$0x1] %v168
    %v170 = vld [vmem:[%s112 + $0xf0] sm:$0x1]
    %v171 = vsel %vm115, 0, %v170
    %172 = vst [vmem:[%s112 + $0xf0] sm:$0x1] %v171
    %v173 = vld [vmem:[%s112 + $0xfc] sm:$0x1]
    %v174 = vsel %vm115, 0, %v173
    %175 = vst [vmem:[%s112 + $0xfc] sm:$0x1] %v174
    %v176 = vld [vmem:[%s112 + $0x108] sm:$0x1]
    %v177 = vsel %vm115, 0, %v176
    %178 = vst [vmem:[%s112 + $0x108] sm:$0x1] %v177
    %v179 = vld [vmem:[%s112 + $0x114] sm:$0x1]
    %v180 = vsel %vm115, 0, %v179
    %181 = vst [vmem:[%s112 + $0x114] sm:$0x1] %v180
    %v182 = vld [vmem:[%s112 + $0x120] sm:$0x1]
    %v183 = vsel %vm115, 0, %v182
    %184 = vst [vmem:[%s112 + $0x120] sm:$0x1] %v183
    %v185 = vld [vmem:[%s112 + $0x12c] sm:$0x1]
    %v186 = vsel %vm115, 0, %v185
    %187 = vst [vmem:[%s112 + $0x12c] sm:$0x1] %v186
    %v188 = vld [vmem:[%s112 + $0x138] sm:$0x1]
    %v189 = vsel %vm115, 0, %v188
    %190 = vst [vmem:[%s112 + $0x138] sm:$0x1] %v189
    %v191 = vld [vmem:[%s112 + $0x144] sm:$0x1]
    %v192 = vsel %vm115, 0, %v191
    %193 = vst [vmem:[%s112 + $0x144] sm:$0x1] %v192
    %v194 = vld [vmem:[%s112 + $0x150] sm:$0x1]
    %v195 = vsel %vm115, 0, %v194
    %196 = vst [vmem:[%s112 + $0x150] sm:$0x1] %v195
    %v197 = vld [vmem:[%s112 + $0x15c] sm:$0x1]
    %v198 = vsel %vm115, 0, %v197
    %199 = vst [vmem:[%s112 + $0x15c] sm:$0x1] %v198
    %v200 = vld [vmem:[%s112 + $0x168] sm:$0x1]
    %v201 = vsel %vm115, 0, %v200
    %202 = vst [vmem:[%s112 + $0x168] sm:$0x1] %v201
    %v203 = vld [vmem:[%s112 + $0x174] sm:$0x1]
    %v204 = vsel %vm115, 0, %v203
    %205 = vst [vmem:[%s112 + $0x174] sm:$0x1] %v204
    %v206 = vld [vmem:[%s112 + $0x180] sm:$0x1]
    %v207 = vsel %vm115, 0, %v206
    %208 = vst [vmem:[%s112 + $0x180] sm:$0x1] %v207
    %v209 = vld [vmem:[%s112 + $0x18c] sm:$0x1]
    %v210 = vsel %vm115, 0, %v209
    %211 = vst [vmem:[%s112 + $0x18c] sm:$0x1] %v210
    %vm212 = vsmask.f32 7938
    %vm213 = vmand %vm113, %vm212
    %v214 = vld [vmem:[%s112 + $0x8] sm:$0x1]
    %v215 = vsel %vm213, 0, %v214
    %216 = vst [vmem:[%s112 + $0x8] sm:$0x1] %v215
    %v217 = vld [vmem:[%s112 + $0x14] sm:$0x1]
    %v218 = vsel %vm213, 0, %v217
    %219 = vst [vmem:[%s112 + $0x14] sm:$0x1] %v218
    %v220 = vld [vmem:[%s112 + $0x20] sm:$0x1]
    %v221 = vsel %vm213, 0, %v220
    %222 = vst [vmem:[%s112 + $0x20] sm:$0x1] %v221
    %v223 = vld [vmem:[%s112 + $0x2c] sm:$0x1]
    %v224 = vsel %vm213, 0, %v223
    %225 = vst [vmem:[%s112 + $0x2c] sm:$0x1] %v224
    %v226 = vld [vmem:[%s112 + $0x38] sm:$0x1]
    %v227 = vsel %vm213, 0, %v226
    %228 = vst [vmem:[%s112 + $0x38] sm:$0x1] %v227
    %v229 = vld [vmem:[%s112 + $0x44] sm:$0x1]
    %v230 = vsel %vm213, 0, %v229
    %231 = vst [vmem:[%s112 + $0x44] sm:$0x1] %v230
    %v232 = vld [vmem:[%s112 + $0x50] sm:$0x1]
    %v233 = vsel %vm213, 0, %v232
    %234 = vst [vmem:[%s112 + $0x50] sm:$0x1] %v233
    %v235 = vld [vmem:[%s112 + $0x5c] sm:$0x1]
    %v236 = vsel %vm213, 0, %v235
    %237 = vst [vmem:[%s112 + $0x5c] sm:$0x1] %v236
    %v238 = vld [vmem:[%s112 + $0x68] sm:$0x1]
    %v239 = vsel %vm213, 0, %v238
    %240 = vst [vmem:[%s112 + $0x68] sm:$0x1] %v239
    %v241 = vld [vmem:[%s112 + $0x74] sm:$0x1]
    %v242 = vsel %vm213, 0, %v241
    %243 = vst [vmem:[%s112 + $0x74] sm:$0x1] %v242
    %v244 = vld [vmem:[%s112 + $0x80] sm:$0x1]
    %v245 = vsel %vm213, 0, %v244
    %246 = vst [vmem:[%s112 + $0x80] sm:$0x1] %v245
    %v247 = vld [vmem:[%s112 + $0x8c] sm:$0x1]
    %v248 = vsel %vm213, 0, %v247
    %249 = vst [vmem:[%s112 + $0x8c] sm:$0x1] %v248
    %v250 = vld [vmem:[%s112 + $0x98] sm:$0x1]
    %v251 = vsel %vm213, 0, %v250
    %252 = vst [vmem:[%s112 + $0x98] sm:$0x1] %v251
    %v253 = vld [vmem:[%s112 + $0xa4] sm:$0x1]
    %v254 = vsel %vm213, 0, %v253
    %255 = vst [vmem:[%s112 + $0xa4] sm:$0x1] %v254
    %v256 = vld [vmem:[%s112 + $0xb0] sm:$0x1]
    %v257 = vsel %vm213, 0, %v256
    %258 = vst [vmem:[%s112 + $0xb0] sm:$0x1] %v257
    %v259 = vld [vmem:[%s112 + $0xbc] sm:$0x1]
    %v260 = vsel %vm213, 0, %v259
    %261 = vst [vmem:[%s112 + $0xbc] sm:$0x1] %v260
    %v262 = vld [vmem:[%s112 + $0xe0] sm:$0x1]
    %v263 = vsel %vm213, 0, %v262
    %264 = vst [vmem:[%s112 + $0xe0] sm:$0x1] %v263
    %v265 = vld [vmem:[%s112 + $0xec] sm:$0x1]
    %v266 = vsel %vm213, 0, %v265
    %267 = vst [vmem:[%s112 + $0xec] sm:$0x1] %v266
    %v268 = vld [vmem:[%s112 + $0xf8] sm:$0x1]
    %v269 = vsel %vm213, 0, %v268
    %270 = vst [vmem:[%s112 + $0xf8] sm:$0x1] %v269
    %v271 = vld [vmem:[%s112 + $0x104] sm:$0x1]
    %v272 = vsel %vm213, 0, %v271
    %273 = vst [vmem:[%s112 + $0x104] sm:$0x1] %v272
    %v274 = vld [vmem:[%s112 + $0x110] sm:$0x1]
    %v275 = vsel %vm213, 0, %v274
    %276 = vst [vmem:[%s112 + $0x110] sm:$0x1] %v275
    %v277 = vld [vmem:[%s112 + $0x11c] sm:$0x1]
    %v278 = vsel %vm213, 0, %v277
    %279 = vst [vmem:[%s112 + $0x11c] sm:$0x1] %v278
    %v280 = vld [vmem:[%s112 + $0x128] sm:$0x1]
    %v281 = vsel %vm213, 0, %v280
    %282 = vst [vmem:[%s112 + $0x128] sm:$0x1] %v281
    %v283 = vld [vmem:[%s112 + $0x134] sm:$0x1]
    %v284 = vsel %vm213, 0, %v283
    %285 = vst [vmem:[%s112 + $0x134] sm:$0x1] %v284
    %v286 = vld [vmem:[%s112 + $0x140] sm:$0x1]
    %v287 = vsel %vm213, 0, %v286
    %288 = vst [vmem:[%s112 + $0x140] sm:$0x1] %v287
    %v289 = vld [vmem:[%s112 + $0x14c] sm:$0x1]
    %v290 = vsel %vm213, 0, %v289
    %291 = vst [vmem:[%s112 + $0x14c] sm:$0x1] %v290
    %v292 = vld [vmem:[%s112 + $0x158] sm:$0x1]
    %v293 = vsel %vm213, 0, %v292
    %294 = vst [vmem:[%s112 + $0x158] sm:$0x1] %v293
    %v295 = vld [vmem:[%s112 + $0x164] sm:$0x1]
    %v296 = vsel %vm213, 0, %v295
    %297 = vst [vmem:[%s112 + $0x164] sm:$0x1] %v296
    %v298 = vld [vmem:[%s112 + $0x170] sm:$0x1]
    %v299 = vsel %vm213, 0, %v298
    %300 = vst [vmem:[%s112 + $0x170] sm:$0x1] %v299
    %v301 = vld [vmem:[%s112 + $0x17c] sm:$0x1]
    %v302 = vsel %vm213, 0, %v301
    %303 = vst [vmem:[%s112 + $0x17c] sm:$0x1] %v302
    %v304 = vld [vmem:[%s112 + $0x188] sm:$0x1]
    %v305 = vsel %vm213, 0, %v304
    %306 = vst [vmem:[%s112 + $0x188] sm:$0x1] %v305
    %v307 = vld [vmem:[%s112 + $0x194] sm:$0x1]
    %v308 = vsel %vm213, 0, %v307
    %309 = vst [vmem:[%s112 + $0x194] sm:$0x1] %v308
    %vm310 = vsmask.f32 4368
    %vm311 = vmor %vm114, %vm310
    %v313 = vshrl.u32 %v33, 16
    %v315 = vrot.slane %v313, 7
    %v316 = vshll.u32 %v33, 16
    %v318 = vor.u32 %v315, %v316
    %v319 = vrot.slane %v315, 4
    %v321 = vshrl.u32 %v34, 16
    %v323 = vrot.slane %v321, 7
    %v324 = vshll.u32 %v34, 16
    %v326 = vor.u32 %v323, %v324
    %v327 = vsel %vm311, %v319, %v326
    %v328 = vrot.slane %v323, 4
    %v330 = vshrl.u32 %v35, 16
    %v332 = vrot.slane %v330, 7
    %v333 = vshll.u32 %v35, 16
    %v335 = vor.u32 %v332, %v333
    %v336 = vrot.slane %v332, 4
    %v338 = vshrl.u32 %v36, 16
    %v340 = vrot.slane %v338, 7
    %v341 = vshll.u32 %v36, 16
    %v343 = vor.u32 %v340, %v341
    %v344 = vsel %vm311, %v336, %v343
    %v345 = vrot.slane %v340, 4
    %v347 = vshrl.u32 %v37, 16
    %v349 = vrot.slane %v347, 7
    %v350 = vshll.u32 %v37, 16
    %v352 = vor.u32 %v349, %v350
    %v353 = vrot.slane %v349, 4
    %v355 = vshrl.u32 %v38, 16
    %v357 = vrot.slane %v355, 7
    %v358 = vshll.u32 %v38, 16
    %v360 = vor.u32 %v357, %v358
    %v361 = vsel %vm311, %v353, %v360
    %v362 = vrot.slane %v357, 4
    %v364 = vshrl.u32 %v39, 16
    %v366 = vrot.slane %v364, 7
    %v367 = vshll.u32 %v39, 16
    %v369 = vor.u32 %v366, %v367
    %v370 = vrot.slane %v366, 4
    %v372 = vshrl.u32 %v40, 16
    %v374 = vrot.slane %v372, 7
    %v375 = vshll.u32 %v40, 16
    %v377 = vor.u32 %v374, %v375
    %v378 = vsel %vm311, %v370, %v377
    %v379 = vrot.slane %v374, 4
    %v381 = vshrl.u32 %v41, 16
    %v383 = vrot.slane %v381, 7
    %v384 = vshll.u32 %v41, 16
    %v386 = vor.u32 %v383, %v384
    %v387 = vrot.slane %v383, 4
    %v389 = vshrl.u32 %v42, 16
    %v391 = vrot.slane %v389, 7
    %v392 = vshll.u32 %v42, 16
    %v394 = vor.u32 %v391, %v392
    %v395 = vsel %vm311, %v387, %v394
    %v396 = vrot.slane %v391, 4
    %v398 = vshrl.u32 %v43, 16
    %v400 = vrot.slane %v398, 7
    %v401 = vshll.u32 %v43, 16
    %v403 = vor.u32 %v400, %v401
    %v404 = vrot.slane %v400, 4
    %v406 = vshrl.u32 %v44, 16
    %v408 = vrot.slane %v406, 7
    %v409 = vshll.u32 %v44, 16
    %v411 = vor.u32 %v408, %v409
    %v412 = vsel %vm311, %v404, %v411
    %v413 = vrot.slane %v408, 4
    %v415 = vshrl.u32 %v45, 16
    %v417 = vrot.slane %v415, 7
    %v418 = vshll.u32 %v45, 16
    %v420 = vor.u32 %v417, %v418
    %v421 = vrot.slane %v417, 4
    %v423 = vshrl.u32 %v46, 16
    %v425 = vrot.slane %v423, 7
    %v426 = vshll.u32 %v46, 16
    %v428 = vor.u32 %v425, %v426
    %v429 = vsel %vm311, %v421, %v428
    %v430 = vrot.slane %v425, 4
    %v432 = vshrl.u32 %v47, 16
    %v434 = vrot.slane %v432, 7
    %v435 = vshll.u32 %v47, 16
    %v437 = vor.u32 %v434, %v435
    %v438 = vrot.slane %v434, 4
    %v440 = vshrl.u32 %v48, 16
    %v442 = vrot.slane %v440, 7
    %v443 = vshll.u32 %v48, 16
    %v445 = vor.u32 %v442, %v443
    %v446 = vsel %vm311, %v438, %v445
    %v447 = vrot.slane %v442, 4
    %v449 = vshrl.u32 %v49, 16
    %v451 = vrot.slane %v449, 7
    %v452 = vshll.u32 %v49, 16
    %v454 = vor.u32 %v451, %v452
    %v455 = vrot.slane %v451, 4
    %v457 = vshrl.u32 %v50, 16
    %v459 = vrot.slane %v457, 7
    %v460 = vshll.u32 %v50, 16
    %v462 = vor.u32 %v459, %v460
    %v463 = vsel %vm311, %v455, %v462
    %v464 = vrot.slane %v459, 4
    %v466 = vshrl.u32 %v51, 16
    %v468 = vrot.slane %v466, 7
    %v469 = vshll.u32 %v51, 16
    %v471 = vor.u32 %v468, %v469
    %v472 = vrot.slane %v468, 4
    %v474 = vshrl.u32 %v52, 16
    %v476 = vrot.slane %v474, 7
    %v477 = vshll.u32 %v52, 16
    %v479 = vor.u32 %v476, %v477
    %v480 = vsel %vm311, %v472, %v479
    %v481 = vrot.slane %v476, 4
    %v483 = vshrl.u32 %v53, 16
    %v485 = vrot.slane %v483, 7
    %v486 = vshll.u32 %v53, 16
    %v488 = vor.u32 %v485, %v486
    %v489 = vrot.slane %v485, 4
    %v491 = vshrl.u32 %v54, 16
    %v493 = vrot.slane %v491, 7
    %v494 = vshll.u32 %v54, 16
    %v496 = vor.u32 %v493, %v494
    %v497 = vsel %vm311, %v489, %v496
    %v498 = vrot.slane %v493, 4
    %v500 = vshrl.u32 %v55, 16
    %v502 = vrot.slane %v500, 7
    %v503 = vshll.u32 %v55, 16
    %v505 = vor.u32 %v502, %v503
    %v506 = vrot.slane %v502, 4
    %v508 = vshrl.u32 %v56, 16
    %v510 = vrot.slane %v508, 7
    %v511 = vshll.u32 %v56, 16
    %v513 = vor.u32 %v510, %v511
    %v514 = vsel %vm311, %v506, %v513
    %v515 = vrot.slane %v510, 4
    %v517 = vshrl.u32 %v57, 16
    %v519 = vrot.slane %v517, 7
    %v520 = vshll.u32 %v57, 16
    %v522 = vor.u32 %v519, %v520
    %v523 = vrot.slane %v519, 4
    %v525 = vshrl.u32 %v58, 16
    %v527 = vrot.slane %v525, 7
    %v528 = vshll.u32 %v58, 16
    %v530 = vor.u32 %v527, %v528
    %v531 = vsel %vm311, %v523, %v530
    %v532 = vrot.slane %v527, 4
    %v534 = vshrl.u32 %v59, 16
    %v536 = vrot.slane %v534, 7
    %v537 = vshll.u32 %v59, 16
    %v539 = vor.u32 %v536, %v537
    %v540 = vrot.slane %v536, 4
    %v542 = vshrl.u32 %v60, 16
    %v544 = vrot.slane %v542, 7
    %v545 = vshll.u32 %v60, 16
    %v547 = vor.u32 %v544, %v545
    %v548 = vsel %vm311, %v540, %v547
    %v549 = vrot.slane %v544, 4
    %v551 = vshrl.u32 %v61, 16
    %v553 = vrot.slane %v551, 7
    %v554 = vshll.u32 %v61, 16
    %v556 = vor.u32 %v553, %v554
    %v557 = vrot.slane %v553, 4
    %v559 = vshrl.u32 %v62, 16
    %v561 = vrot.slane %v559, 7
    %v562 = vshll.u32 %v62, 16
    %v564 = vor.u32 %v561, %v562
    %v565 = vsel %vm311, %v557, %v564
    %v566 = vrot.slane %v561, 4
    %v568 = vshrl.u32 %v63, 16
    %v570 = vrot.slane %v568, 7
    %v571 = vshll.u32 %v63, 16
    %v573 = vor.u32 %v570, %v571
    %v574 = vrot.slane %v570, 4
    %v576 = vshrl.u32 %v64, 16
    %v578 = vrot.slane %v576, 7
    %v579 = vshll.u32 %v64, 16
    %v581 = vor.u32 %v578, %v579
    %v582 = vsel %vm311, %v574, %v581
    %v583 = vrot.slane %v578, 4
    %v585 = vshrl.u32 %v65, 16
    %v587 = vrot.slane %v585, 7
    %v588 = vshll.u32 %v65, 16
    %v590 = vor.u32 %v587, %v588
    %v591 = vrot.slane %v587, 4
    %v593 = vshrl.u32 %v66, 16
    %v595 = vrot.slane %v593, 7
    %v596 = vshll.u32 %v66, 16
    %v598 = vor.u32 %v595, %v596
    %v599 = vsel %vm311, %v591, %v598
    %v600 = vrot.slane %v595, 4
    %v602 = vshrl.u32 %v67, 16
    %v604 = vrot.slane %v602, 7
    %v605 = vshll.u32 %v67, 16
    %v607 = vor.u32 %v604, %v605
    %v608 = vrot.slane %v604, 4
    %v610 = vshrl.u32 %v68, 16
    %v612 = vrot.slane %v610, 7
    %v613 = vshll.u32 %v68, 16
    %v615 = vor.u32 %v612, %v613
    %v616 = vsel %vm311, %v608, %v615
    %v617 = vrot.slane %v612, 4
    %v619 = vshrl.u32 %v69, 16
    %v621 = vrot.slane %v619, 7
    %v622 = vshll.u32 %v69, 16
    %v624 = vor.u32 %v621, %v622
    %v625 = vrot.slane %v621, 4
    %v627 = vshrl.u32 %v70, 16
    %v629 = vrot.slane %v627, 7
    %v630 = vshll.u32 %v70, 16
    %v632 = vor.u32 %v629, %v630
    %v633 = vsel %vm311, %v625, %v632
    %v634 = vrot.slane %v629, 4
    %v636 = vshrl.u32 %v71, 16
    %v638 = vrot.slane %v636, 7
    %v639 = vshll.u32 %v71, 16
    %v641 = vor.u32 %v638, %v639
    %v642 = vrot.slane %v638, 4
    %v644 = vshrl.u32 %v72, 16
    %v646 = vrot.slane %v644, 7
    %v647 = vshll.u32 %v72, 16
    %v649 = vor.u32 %v646, %v647
    %v650 = vsel %vm311, %v642, %v649
    %v651 = vrot.slane %v646, 4
    %v653 = vshrl.u32 %v73, 16
    %v655 = vrot.slane %v653, 7
    %v656 = vshll.u32 %v73, 16
    %v658 = vor.u32 %v655, %v656
    %v659 = vrot.slane %v655, 4
    %v661 = vshrl.u32 %v74, 16
    %v663 = vrot.slane %v661, 7
    %v664 = vshll.u32 %v74, 16
    %v666 = vor.u32 %v663, %v664
    %v667 = vsel %vm311, %v659, %v666
    %v668 = vrot.slane %v663, 4
    %v670 = vshrl.u32 %v75, 16
    %v672 = vrot.slane %v670, 7
    %v673 = vshll.u32 %v75, 16
    %v675 = vor.u32 %v672, %v673
    %v676 = vrot.slane %v672, 4
    %v678 = vshrl.u32 %v76, 16
    %v680 = vrot.slane %v678, 7
    %v681 = vshll.u32 %v76, 16
    %v683 = vor.u32 %v680, %v681
    %v684 = vsel %vm311, %v676, %v683
    %v685 = vrot.slane %v680, 4
    %v687 = vshrl.u32 %v77, 16
    %v689 = vrot.slane %v687, 7
    %v690 = vshll.u32 %v77, 16
    %v692 = vor.u32 %v689, %v690
    %v693 = vrot.slane %v689, 4
    %v695 = vshrl.u32 %v78, 16
    %v697 = vrot.slane %v695, 7
    %v698 = vshll.u32 %v78, 16
    %v700 = vor.u32 %v697, %v698
    %v701 = vsel %vm311, %v693, %v700
    %v702 = vrot.slane %v697, 4
    %v704 = vshrl.u32 %v79, 16
    %v706 = vrot.slane %v704, 7
    %v707 = vshll.u32 %v79, 16
    %v709 = vor.u32 %v706, %v707
    %v710 = vrot.slane %v706, 4
    %v712 = vshrl.u32 %v80, 16
    %v714 = vrot.slane %v712, 7
    %v715 = vshll.u32 %v80, 16
    %v717 = vor.u32 %v714, %v715
    %v718 = vsel %vm311, %v710, %v717
    %v719 = vrot.slane %v714, 4
    %v721 = vshrl.u32 %v81, 16
    %v723 = vrot.slane %v721, 7
    %v724 = vshll.u32 %v81, 16
    %v726 = vor.u32 %v723, %v724
    %v727 = vrot.slane %v723, 4
    %v729 = vshrl.u32 %v82, 16
    %v731 = vrot.slane %v729, 7
    %v732 = vshll.u32 %v82, 16
    %v734 = vor.u32 %v731, %v732
    %v735 = vsel %vm311, %v727, %v734
    %v736 = vrot.slane %v731, 4
    %v738 = vshrl.u32 %v83, 16
    %v740 = vrot.slane %v738, 7
    %v741 = vshll.u32 %v83, 16
    %v743 = vor.u32 %v740, %v741
    %v744 = vrot.slane %v740, 4
    %v746 = vshrl.u32 %v84, 16
    %v748 = vrot.slane %v746, 7
    %v749 = vshll.u32 %v84, 16
    %v751 = vor.u32 %v748, %v749
    %v752 = vsel %vm311, %v744, %v751
    %v753 = vrot.slane %v748, 4
    %v755 = vshrl.u32 %v85, 16
    %v757 = vrot.slane %v755, 7
    %v758 = vshll.u32 %v85, 16
    %v760 = vor.u32 %v757, %v758
    %v761 = vrot.slane %v757, 4
    %v763 = vshrl.u32 %v86, 16
    %v765 = vrot.slane %v763, 7
    %v766 = vshll.u32 %v86, 16
    %v768 = vor.u32 %v765, %v766
    %v769 = vsel %vm311, %v761, %v768
    %v770 = vrot.slane %v765, 4
    %v772 = vshrl.u32 %v87, 16
    %v774 = vrot.slane %v772, 7
    %v775 = vshll.u32 %v87, 16
    %v777 = vor.u32 %v774, %v775
    %v778 = vrot.slane %v774, 4
    %v780 = vshrl.u32 %v88, 16
    %v782 = vrot.slane %v780, 7
    %v783 = vshll.u32 %v88, 16
    %v785 = vor.u32 %v782, %v783
    %v786 = vsel %vm311, %v778, %v785
    %v787 = vrot.slane %v782, 4
    %v789 = vshrl.u32 %v89, 16
    %v791 = vrot.slane %v789, 7
    %v792 = vshll.u32 %v89, 16
    %v794 = vor.u32 %v791, %v792
    %v795 = vrot.slane %v791, 4
    %v797 = vshrl.u32 %v90, 16
    %v799 = vrot.slane %v797, 7
    %v800 = vshll.u32 %v90, 16
    %v802 = vor.u32 %v799, %v800
    %v803 = vsel %vm311, %v795, %v802
    %v804 = vrot.slane %v799, 4
    %v806 = vshrl.u32 %v91, 16
    %v808 = vrot.slane %v806, 7
    %v809 = vshll.u32 %v91, 16
    %v811 = vor.u32 %v808, %v809
    %v812 = vrot.slane %v808, 4
    %v814 = vshrl.u32 %v92, 16
    %v816 = vrot.slane %v814, 7
    %v817 = vshll.u32 %v92, 16
    %v819 = vor.u32 %v816, %v817
    %v820 = vsel %vm311, %v812, %v819
    %v821 = vrot.slane %v816, 4
    %v823 = vshrl.u32 %v93, 16
    %v825 = vrot.slane %v823, 7
    %v826 = vshll.u32 %v93, 16
    %v828 = vor.u32 %v825, %v826
    %v829 = vrot.slane %v825, 4
    %v831 = vshrl.u32 %v94, 16
    %v833 = vrot.slane %v831, 7
    %v834 = vshll.u32 %v94, 16
    %v836 = vor.u32 %v833, %v834
    %v837 = vsel %vm311, %v829, %v836
    %v838 = vrot.slane %v833, 4
    %v840 = vshrl.u32 %v95, 16
    %v842 = vrot.slane %v840, 7
    %v843 = vshll.u32 %v95, 16
    %v845 = vor.u32 %v842, %v843
    %v846 = vrot.slane %v842, 4
    %v848 = vshrl.u32 %v96, 16
    %v850 = vrot.slane %v848, 7
    %v851 = vshll.u32 %v96, 16
    %v853 = vor.u32 %v850, %v851
    %v854 = vsel %vm311, %v846, %v853
    %v855 = vrot.slane %v850, 4
    %vm952 = vcmask 125952
    %vm953 = vmand %vm952, %vm212
    %v954 = vld [vmem:[%s112] sm:$0xf]
    %v955 = vsel %vm953, %v318, %v954
    %956 = vst [vmem:[%s112] sm:$0xf] %v955
    %957 = vst.msk [vmem:[%s112 + $0x4] sm:$0xf] %vm97, %v327
    %v958 = vld [vmem:[%s112 + $0x8] sm:$0x1]
    %v959 = vsel %vm115, %v328, %v958
    %960 = vst [vmem:[%s112 + $0x8] sm:$0x1] %v959
    %v961 = vld [vmem:[%s112 + $0xc] sm:$0xf]
    %v962 = vsel %vm953, %v335, %v961
    %963 = vst [vmem:[%s112 + $0xc] sm:$0xf] %v962
    %964 = vst.msk [vmem:[%s112 + $0x10] sm:$0xf] %vm97, %v344
    %v965 = vld [vmem:[%s112 + $0x14] sm:$0x1]
    %v966 = vsel %vm115, %v345, %v965
    %967 = vst [vmem:[%s112 + $0x14] sm:$0x1] %v966
    %v968 = vld [vmem:[%s112 + $0x18] sm:$0xf]
    %v969 = vsel %vm953, %v352, %v968
    %970 = vst [vmem:[%s112 + $0x18] sm:$0xf] %v969
    %971 = vst.msk [vmem:[%s112 + $0x1c] sm:$0xf] %vm97, %v361
    %v972 = vld [vmem:[%s112 + $0x20] sm:$0x1]
    %v973 = vsel %vm115, %v362, %v972
    %974 = vst [vmem:[%s112 + $0x20] sm:$0x1] %v973
    %v975 = vld [vmem:[%s112 + $0x24] sm:$0xf]
    %v976 = vsel %vm953, %v369, %v975
    %977 = vst [vmem:[%s112 + $0x24] sm:$0xf] %v976
    %978 = vst.msk [vmem:[%s112 + $0x28] sm:$0xf] %vm97, %v378
    %v979 = vld [vmem:[%s112 + $0x2c] sm:$0x1]
    %v980 = vsel %vm115, %v379, %v979
    %981 = vst [vmem:[%s112 + $0x2c] sm:$0x1] %v980
    %v982 = vld [vmem:[%s112 + $0x30] sm:$0xf]
    %v983 = vsel %vm953, %v386, %v982
    %984 = vst [vmem:[%s112 + $0x30] sm:$0xf] %v983
    %985 = vst.msk [vmem:[%s112 + $0x34] sm:$0xf] %vm97, %v395
    %v986 = vld [vmem:[%s112 + $0x38] sm:$0x1]
    %v987 = vsel %vm115, %v396, %v986
    %988 = vst [vmem:[%s112 + $0x38] sm:$0x1] %v987
    %v989 = vld [vmem:[%s112 + $0x3c] sm:$0xf]
    %v990 = vsel %vm953, %v403, %v989
    %991 = vst [vmem:[%s112 + $0x3c] sm:$0xf] %v990
    %992 = vst.msk [vmem:[%s112 + $0x40] sm:$0xf] %vm97, %v412
    %v993 = vld [vmem:[%s112 + $0x44] sm:$0x1]
    %v994 = vsel %vm115, %v413, %v993
    %995 = vst [vmem:[%s112 + $0x44] sm:$0x1] %v994
    %v996 = vld [vmem:[%s112 + $0x48] sm:$0xf]
    %v997 = vsel %vm953, %v420, %v996
    %998 = vst [vmem:[%s112 + $0x48] sm:$0xf] %v997
    %999 = vst.msk [vmem:[%s112 + $0x4c] sm:$0xf] %vm97, %v429
    %v1000 = vld [vmem:[%s112 + $0x50] sm:$0x1]
    %v1001 = vsel %vm115, %v430, %v1000
    %1002 = vst [vmem:[%s112 + $0x50] sm:$0x1] %v1001
    %v1003 = vld [vmem:[%s112 + $0x54] sm:$0xf]
    %v1004 = vsel %vm953, %v437, %v1003
    %1005 = vst [vmem:[%s112 + $0x54] sm:$0xf] %v1004
    %1006 = vst.msk [vmem:[%s112 + $0x58] sm:$0xf] %vm97, %v446
    %v1007 = vld [vmem:[%s112 + $0x5c] sm:$0x1]
    %v1008 = vsel %vm115, %v447, %v1007
    %1009 = vst [vmem:[%s112 + $0x5c] sm:$0x1] %v1008
    %v1010 = vld [vmem:[%s112 + $0x60] sm:$0xf]
    %v1011 = vsel %vm953, %v454, %v1010
    %1012 = vst [vmem:[%s112 + $0x60] sm:$0xf] %v1011
    %1013 = vst.msk [vmem:[%s112 + $0x64] sm:$0xf] %vm97, %v463
    %v1014 = vld [vmem:[%s112 + $0x68] sm:$0x1]
    %v1015 = vsel %vm115, %v464, %v1014
    %1016 = vst [vmem:[%s112 + $0x68] sm:$0x1] %v1015
    %v1017 = vld [vmem:[%s112 + $0x6c] sm:$0xf]
    %v1018 = vsel %vm953, %v471, %v1017
    %1019 = vst [vmem:[%s112 + $0x6c] sm:$0xf] %v1018
    %1020 = vst.msk [vmem:[%s112 + $0x70] sm:$0xf] %vm97, %v480
    %v1021 = vld [vmem:[%s112 + $0x74] sm:$0x1]
    %v1022 = vsel %vm115, %v481, %v1021
    %1023 = vst [vmem:[%s112 + $0x74] sm:$0x1] %v1022
    %v1024 = vld [vmem:[%s112 + $0x78] sm:$0xf]
    %v1025 = vsel %vm953, %v488, %v1024
    %1026 = vst [vmem:[%s112 + $0x78] sm:$0xf] %v1025
    %1027 = vst.msk [vmem:[%s112 + $0x7c] sm:$0xf] %vm97, %v497
    %v1028 = vld [vmem:[%s112 + $0x80] sm:$0x1]
    %v1029 = vsel %vm115, %v498, %v1028
    %1030 = vst [vmem:[%s112 + $0x80] sm:$0x1] %v1029
    %v1031 = vld [vmem:[%s112 + $0x84] sm:$0xf]
    %v1032 = vsel %vm953, %v505, %v1031
    %1033 = vst [vmem:[%s112 + $0x84] sm:$0xf] %v1032
    %1034 = vst.msk [vmem:[%s112 + $0x88] sm:$0xf] %vm97, %v514
    %v1035 = vld [vmem:[%s112 + $0x8c] sm:$0x1]
    %v1036 = vsel %vm115, %v515, %v1035
    %1037 = vst [vmem:[%s112 + $0x8c] sm:$0x1] %v1036
    %v1038 = vld [vmem:[%s112 + $0x90] sm:$0xf]
    %v1039 = vsel %vm953, %v522, %v1038
    %1040 = vst [vmem:[%s112 + $0x90] sm:$0xf] %v1039
    %1041 = vst.msk [vmem:[%s112 + $0x94] sm:$0xf] %vm97, %v531
    %v1042 = vld [vmem:[%s112 + $0x98] sm:$0x1]
    %v1043 = vsel %vm115, %v532, %v1042
    %1044 = vst [vmem:[%s112 + $0x98] sm:$0x1] %v1043
    %v1045 = vld [vmem:[%s112 + $0x9c] sm:$0xf]
    %v1046 = vsel %vm953, %v539, %v1045
    %1047 = vst [vmem:[%s112 + $0x9c] sm:$0xf] %v1046
    %1048 = vst.msk [vmem:[%s112 + $0xa0] sm:$0xf] %vm97, %v548
    %v1049 = vld [vmem:[%s112 + $0xa4] sm:$0x1]
    %v1050 = vsel %vm115, %v549, %v1049
    %1051 = vst [vmem:[%s112 + $0xa4] sm:$0x1] %v1050
    %v1052 = vld [vmem:[%s112 + $0xa8] sm:$0xf]
    %v1053 = vsel %vm953, %v556, %v1052
    %1054 = vst [vmem:[%s112 + $0xa8] sm:$0xf] %v1053
    %1055 = vst.msk [vmem:[%s112 + $0xac] sm:$0xf] %vm97, %v565
    %v1056 = vld [vmem:[%s112 + $0xb0] sm:$0x1]
    %v1057 = vsel %vm115, %v566, %v1056
    %1058 = vst [vmem:[%s112 + $0xb0] sm:$0x1] %v1057
    %v1059 = vld [vmem:[%s112 + $0xb4] sm:$0xf]
    %v1060 = vsel %vm953, %v573, %v1059
    %1061 = vst [vmem:[%s112 + $0xb4] sm:$0xf] %v1060
    %1062 = vst.msk [vmem:[%s112 + $0xb8] sm:$0xf] %vm97, %v582
    %v1063 = vld [vmem:[%s112 + $0xbc] sm:$0x1]
    %v1064 = vsel %vm115, %v583, %v1063
    %1065 = vst [vmem:[%s112 + $0xbc] sm:$0x1] %v1064
    %v1066 = vld [vmem:[%s112 + $0xd8] sm:$0xf]
    %v1067 = vsel %vm953, %v590, %v1066
    %1068 = vst [vmem:[%s112 + $0xd8] sm:$0xf] %v1067
    %1069 = vst.msk [vmem:[%s112 + $0xdc] sm:$0xf] %vm97, %v599
    %v1070 = vld [vmem:[%s112 + $0xe0] sm:$0x1]
    %v1071 = vsel %vm115, %v600, %v1070
    %1072 = vst [vmem:[%s112 + $0xe0] sm:$0x1] %v1071
    %v1073 = vld [vmem:[%s112 + $0xe4] sm:$0xf]
    %v1074 = vsel %vm953, %v607, %v1073
    %1075 = vst [vmem:[%s112 + $0xe4] sm:$0xf] %v1074
    %1076 = vst.msk [vmem:[%s112 + $0xe8] sm:$0xf] %vm97, %v616
    %v1077 = vld [vmem:[%s112 + $0xec] sm:$0x1]
    %v1078 = vsel %vm115, %v617, %v1077
    %1079 = vst [vmem:[%s112 + $0xec] sm:$0x1] %v1078
    %v1080 = vld [vmem:[%s112 + $0xf0] sm:$0xf]
    %v1081 = vsel %vm953, %v624, %v1080
    %1082 = vst [vmem:[%s112 + $0xf0] sm:$0xf] %v1081
    %1083 = vst.msk [vmem:[%s112 + $0xf4] sm:$0xf] %vm97, %v633
    %v1084 = vld [vmem:[%s112 + $0xf8] sm:$0x1]
    %v1085 = vsel %vm115, %v634, %v1084
    %1086 = vst [vmem:[%s112 + $0xf8] sm:$0x1] %v1085
    %v1087 = vld [vmem:[%s112 + $0xfc] sm:$0xf]
    %v1088 = vsel %vm953, %v641, %v1087
    %1089 = vst [vmem:[%s112 + $0xfc] sm:$0xf] %v1088
    %1090 = vst.msk [vmem:[%s112 + $0x100] sm:$0xf] %vm97, %v650
    %v1091 = vld [vmem:[%s112 + $0x104] sm:$0x1]
    %v1092 = vsel %vm115, %v651, %v1091
    %1093 = vst [vmem:[%s112 + $0x104] sm:$0x1] %v1092
    %v1094 = vld [vmem:[%s112 + $0x108] sm:$0xf]
    %v1095 = vsel %vm953, %v658, %v1094
    %1096 = vst [vmem:[%s112 + $0x108] sm:$0xf] %v1095
    %1097 = vst.msk [vmem:[%s112 + $0x10c] sm:$0xf] %vm97, %v667
    %v1098 = vld [vmem:[%s112 + $0x110] sm:$0x1]
    %v1099 = vsel %vm115, %v668, %v1098
    %1100 = vst [vmem:[%s112 + $0x110] sm:$0x1] %v1099
    %v1101 = vld [vmem:[%s112 + $0x114] sm:$0xf]
    %v1102 = vsel %vm953, %v675, %v1101
    %1103 = vst [vmem:[%s112 + $0x114] sm:$0xf] %v1102
    %1104 = vst.msk [vmem:[%s112 + $0x118] sm:$0xf] %vm97, %v684
    %v1105 = vld [vmem:[%s112 + $0x11c] sm:$0x1]
    %v1106 = vsel %vm115, %v685, %v1105
    %1107 = vst [vmem:[%s112 + $0x11c] sm:$0x1] %v1106
    %v1108 = vld [vmem:[%s112 + $0x120] sm:$0xf]
    %v1109 = vsel %vm953, %v692, %v1108
    %1110 = vst [vmem:[%s112 + $0x120] sm:$0xf] %v1109
    %1111 = vst.msk [vmem:[%s112 + $0x124] sm:$0xf] %vm97, %v701
    %v1112 = vld [vmem:[%s112 + $0x128] sm:$0x1]
    %v1113 = vsel %vm115, %v702, %v1112
    %1114 = vst [vmem:[%s112 + $0x128] sm:$0x1] %v1113
    %v1115 = vld [vmem:[%s112 + $0x12c] sm:$0xf]
    %v1116 = vsel %vm953, %v709, %v1115
    %1117 = vst [vmem:[%s112 + $0x12c] sm:$0xf] %v1116
    %1118 = vst.msk [vmem:[%s112 + $0x130] sm:$0xf] %vm97, %v718
    %v1119 = vld [vmem:[%s112 + $0x134] sm:$0x1]
    %v1120 = vsel %vm115, %v719, %v1119
    %1121 = vst [vmem:[%s112 + $0x134] sm:$0x1] %v1120
    %v1122 = vld [vmem:[%s112 + $0x138] sm:$0xf]
    %v1123 = vsel %vm953, %v726, %v1122
    %1124 = vst [vmem:[%s112 + $0x138] sm:$0xf] %v1123
    %1125 = vst.msk [vmem:[%s112 + $0x13c] sm:$0xf] %vm97, %v735
    %v1126 = vld [vmem:[%s112 + $0x140] sm:$0x1]
    %v1127 = vsel %vm115, %v736, %v1126
    %1128 = vst [vmem:[%s112 + $0x140] sm:$0x1] %v1127
    %v1129 = vld [vmem:[%s112 + $0x144] sm:$0xf]
    %v1130 = vsel %vm953, %v743, %v1129
    %1131 = vst [vmem:[%s112 + $0x144] sm:$0xf] %v1130
    %1132 = vst.msk [vmem:[%s112 + $0x148] sm:$0xf] %vm97, %v752
    %v1133 = vld [vmem:[%s112 + $0x14c] sm:$0x1]
    %v1134 = vsel %vm115, %v753, %v1133
    %1135 = vst [vmem:[%s112 + $0x14c] sm:$0x1] %v1134
    %v1136 = vld [vmem:[%s112 + $0x150] sm:$0xf]
    %v1137 = vsel %vm953, %v760, %v1136
    %1138 = vst [vmem:[%s112 + $0x150] sm:$0xf] %v1137
    %1139 = vst.msk [vmem:[%s112 + $0x154] sm:$0xf] %vm97, %v769
    %v1140 = vld [vmem:[%s112 + $0x158] sm:$0x1]
    %v1141 = vsel %vm115, %v770, %v1140
    %1142 = vst [vmem:[%s112 + $0x158] sm:$0x1] %v1141
    %v1143 = vld [vmem:[%s112 + $0x15c] sm:$0xf]
    %v1144 = vsel %vm953, %v777, %v1143
    %1145 = vst [vmem:[%s112 + $0x15c] sm:$0xf] %v1144
    %1146 = vst.msk [vmem:[%s112 + $0x160] sm:$0xf] %vm97, %v786
    %v1147 = vld [vmem:[%s112 + $0x164] sm:$0x1]
    %v1148 = vsel %vm115, %v787, %v1147
    %1149 = vst [vmem:[%s112 + $0x164] sm:$0x1] %v1148
    %v1150 = vld [vmem:[%s112 + $0x168] sm:$0xf]
    %v1151 = vsel %vm953, %v794, %v1150
    %1152 = vst [vmem:[%s112 + $0x168] sm:$0xf] %v1151
    %1153 = vst.msk [vmem:[%s112 + $0x16c] sm:$0xf] %vm97, %v803
    %v1154 = vld [vmem:[%s112 + $0x170] sm:$0x1]
    %v1155 = vsel %vm115, %v804, %v1154
    %1156 = vst [vmem:[%s112 + $0x170] sm:$0x1] %v1155
    %v1157 = vld [vmem:[%s112 + $0x174] sm:$0xf]
    %v1158 = vsel %vm953, %v811, %v1157
    %1159 = vst [vmem:[%s112 + $0x174] sm:$0xf] %v1158
    %1160 = vst.msk [vmem:[%s112 + $0x178] sm:$0xf] %vm97, %v820
    %v1161 = vld [vmem:[%s112 + $0x17c] sm:$0x1]
    %v1162 = vsel %vm115, %v821, %v1161
    %1163 = vst [vmem:[%s112 + $0x17c] sm:$0x1] %v1162
    %v1164 = vld [vmem:[%s112 + $0x180] sm:$0xf]
    %v1165 = vsel %vm953, %v828, %v1164
    %1166 = vst [vmem:[%s112 + $0x180] sm:$0xf] %v1165
    %1167 = vst.msk [vmem:[%s112 + $0x184] sm:$0xf] %vm97, %v837
    %v1168 = vld [vmem:[%s112 + $0x188] sm:$0x1]
    %v1169 = vsel %vm115, %v838, %v1168
    %1170 = vst [vmem:[%s112 + $0x188] sm:$0x1] %v1169
    %v1171 = vld [vmem:[%s112 + $0x18c] sm:$0xf]
    %v1172 = vsel %vm953, %v845, %v1171
    %1173 = vst [vmem:[%s112 + $0x18c] sm:$0xf] %v1172
    %1174 = vst.msk [vmem:[%s112 + $0x190] sm:$0xf] %vm97, %v854
    %v1175 = vld [vmem:[%s112 + $0x194] sm:$0x1]
    %v1176 = vsel %vm115, %v855, %v1175
    %1177 = vst [vmem:[%s112 + $0x194] sm:$0x1] %v1176
    %v1178 = vld [vmem:[#allocation2] sm:$0xf]
    %v1179 = vld [vmem:[#allocation2 + $0x4] sm:$0xf]
    %v1180 = vld [vmem:[#allocation2 + $0xc] sm:$0xf]
    %v1181 = vld [vmem:[#allocation2 + $0x10] sm:$0xf]
    %v1182 = vld [vmem:[#allocation2 + $0x18] sm:$0xf]
    %v1183 = vld [vmem:[#allocation2 + $0x1c] sm:$0xf]
    %v1184 = vld [vmem:[#allocation2 + $0x24] sm:$0xf]
    %v1185 = vld [vmem:[#allocation2 + $0x28] sm:$0xf]
    %v1186 = vld [vmem:[#allocation2 + $0x30] sm:$0xf]
    %v1187 = vld [vmem:[#allocation2 + $0x34] sm:$0xf]
    %v1188 = vld [vmem:[#allocation2 + $0x3c] sm:$0xf]
    %v1189 = vld [vmem:[#allocation2 + $0x40] sm:$0xf]
    %v1190 = vld [vmem:[#allocation2 + $0x48] sm:$0xf]
    %v1191 = vld [vmem:[#allocation2 + $0x4c] sm:$0xf]
    %v1192 = vld [vmem:[#allocation2 + $0x54] sm:$0xf]
    %v1193 = vld [vmem:[#allocation2 + $0x58] sm:$0xf]
    %v1194 = vld [vmem:[#allocation2 + $0x60] sm:$0xf]
    %v1195 = vld [vmem:[#allocation2 + $0x64] sm:$0xf]
    %v1196 = vld [vmem:[#allocation2 + $0x6c] sm:$0xf]
    %v1197 = vld [vmem:[#allocation2 + $0x70] sm:$0xf]
    %v1198 = vld [vmem:[#allocation2 + $0x78] sm:$0xf]
    %v1199 = vld [vmem:[#allocation2 + $0x7c] sm:$0xf]
    %v1200 = vld [vmem:[#allocation2 + $0x84] sm:$0xf]
    %v1201 = vld [vmem:[#allocation2 + $0x88] sm:$0xf]
    %v1202 = vld [vmem:[#allocation2 + $0x90] sm:$0xf]
    %v1203 = vld [vmem:[#allocation2 + $0x94] sm:$0xf]
    %v1204 = vld [vmem:[#allocation2 + $0x9c] sm:$0xf]
    %v1205 = vld [vmem:[#allocation2 + $0xa0] sm:$0xf]
    %v1206 = vld [vmem:[#allocation2 + $0xa8] sm:$0xf]
    %v1207 = vld [vmem:[#allocation2 + $0xac] sm:$0xf]
    %v1208 = vld [vmem:[#allocation2 + $0xb4] sm:$0xf]
    %v1209 = vld [vmem:[#allocation2 + $0xb8] sm:$0xf]
    %v1210 = vld [vmem:[#allocation2 + $0xd8] sm:$0xf]
    %v1211 = vld [vmem:[#allocation2 + $0xdc] sm:$0xf]
    %v1212 = vld [vmem:[#allocation2 + $0xe4] sm:$0xf]
    %v1213 = vld [vmem:[#allocation2 + $0xe8] sm:$0xf]
    %v1214 = vld [vmem:[#allocation2 + $0xf0] sm:$0xf]
    %v1215 = vld [vmem:[#allocation2 + $0xf4] sm:$0xf]
    %v1216 = vld [vmem:[#allocation2 + $0xfc] sm:$0xf]
    %v1217 = vld [vmem:[#allocation2 + $0x100] sm:$0xf]
    %v1218 = vld [vmem:[#allocation2 + $0x108] sm:$0xf]
    %v1219 = vld [vmem:[#allocation2 + $0x10c] sm:$0xf]
    %v1220 = vld [vmem:[#allocation2 + $0x114] sm:$0xf]
    %v1221 = vld [vmem:[#allocation2 + $0x118] sm:$0xf]
    %v1222 = vld [vmem:[#allocation2 + $0x120] sm:$0xf]
    %v1223 = vld [vmem:[#allocation2 + $0x124] sm:$0xf]
    %v1224 = vld [vmem:[#allocation2 + $0x12c] sm:$0xf]
    %v1225 = vld [vmem:[#allocation2 + $0x130] sm:$0xf]
    %v1226 = vld [vmem:[#allocation2 + $0x138] sm:$0xf]
    %v1227 = vld [vmem:[#allocation2 + $0x13c] sm:$0xf]
    %v1228 = vld [vmem:[#allocation2 + $0x144] sm:$0xf]
    %v1229 = vld [vmem:[#allocation2 + $0x148] sm:$0xf]
    %v1230 = vld [vmem:[#allocation2 + $0x150] sm:$0xf]
    %v1231 = vld [vmem:[#allocation2 + $0x154] sm:$0xf]
    %v1232 = vld [vmem:[#allocation2 + $0x15c] sm:$0xf]
    %v1233 = vld [vmem:[#allocation2 + $0x160] sm:$0xf]
    %v1234 = vld [vmem:[#allocation2 + $0x168] sm:$0xf]
    %v1235 = vld [vmem:[#allocation2 + $0x16c] sm:$0xf]
    %v1236 = vld [vmem:[#allocation2 + $0x174] sm:$0xf]
    %v1237 = vld [vmem:[#allocation2 + $0x178] sm:$0xf]
    %v1238 = vld [vmem:[#allocation2 + $0x180] sm:$0xf]
    %v1239 = vld [vmem:[#allocation2 + $0x184] sm:$0xf]
    %v1240 = vld [vmem:[#allocation2 + $0x18c] sm:$0xf]
    %v1241 = vld [vmem:[#allocation2 + $0x190] sm:$0xf]
    %v1242 = vld [vmem:[#allocation2 + $0x8] sm:$0x1]
    %v1243 = vld [vmem:[#allocation2 + $0x14] sm:$0x1]
    %v1244 = vld [vmem:[#allocation2 + $0x20] sm:$0x1]
    %v1245 = vld [vmem:[#allocation2 + $0x2c] sm:$0x1]
    %v1246 = vld [vmem:[#allocation2 + $0x38] sm:$0x1]
    %v1247 = vld [vmem:[#allocation2 + $0x44] sm:$0x1]
    %v1248 = vld [vmem:[#allocation2 + $0x50] sm:$0x1]
    %v1249 = vld [vmem:[#allocation2 + $0x5c] sm:$0x1]
    %v1250 = vld [vmem:[#allocation2 + $0x68] sm:$0x1]
    %v1251 = vld [vmem:[#allocation2 + $0x74] sm:$0x1]
    %v1252 = vld [vmem:[#allocation2 + $0x80] sm:$0x1]
    %v1253 = vld [vmem:[#allocation2 + $0x8c] sm:$0x1]
    %v1254 = vld [vmem:[#allocation2 + $0x98] sm:$0x1]
    %v1255 = vld [vmem:[#allocation2 + $0xa4] sm:$0x1]
    %v1256 = vld [vmem:[#allocation2 + $0xb0] sm:$0x1]
    %v1257 = vld [vmem:[#allocation2 + $0xbc] sm:$0x1]
    %v1258 = vld [vmem:[#allocation2 + $0xe0] sm:$0x1]
    %v1259 = vld [vmem:[#allocation2 + $0xec] sm:$0x1]
    %v1260 = vld [vmem:[#allocation2 + $0xf8] sm:$0x1]
    %v1261 = vld [vmem:[#allocation2 + $0x104] sm:$0x1]
    %v1262 = vld [vmem:[#allocation2 + $0x110] sm:$0x1]
    %v1263 = vld [vmem:[#allocation2 + $0x11c] sm:$0x1]
    %v1264 = vld [vmem:[#allocation2 + $0x128] sm:$0x1]
    %v1265 = vld [vmem:[#allocation2 + $0x134] sm:$0x1]
    %v1266 = vld [vmem:[#allocation2 + $0x140] sm:$0x1]
    %v1267 = vld [vmem:[#allocation2 + $0x14c] sm:$0x1]
    %v1268 = vld [vmem:[#allocation2 + $0x158] sm:$0x1]
    %v1269 = vld [vmem:[#allocation2 + $0x164] sm:$0x1]
    %v1270 = vld [vmem:[#allocation2 + $0x170] sm:$0x1]
    %v1271 = vld [vmem:[#allocation2 + $0x17c] sm:$0x1]
    %v1272 = vld [vmem:[#allocation2 + $0x188] sm:$0x1]
    %v1273 = vld [vmem:[#allocation2 + $0x194] sm:$0x1]
    %v1274 = vld [vmem:[#allocation2] sm:$0xe]
    %v1275 = vld [vmem:[#allocation2 + $0xc] sm:$0xe]
    %v1276 = vld [vmem:[#allocation2 + $0x18] sm:$0xe]
    %v1277 = vld [vmem:[#allocation2 + $0x24] sm:$0xe]
    %v1278 = vld [vmem:[#allocation2 + $0x30] sm:$0xe]
    %v1279 = vld [vmem:[#allocation2 + $0x3c] sm:$0xe]
    %v1280 = vld [vmem:[#allocation2 + $0x48] sm:$0xe]
    %v1281 = vld [vmem:[#allocation2 + $0x54] sm:$0xe]
    %v1282 = vld [vmem:[#allocation2 + $0x60] sm:$0xe]
    %v1283 = vld [vmem:[#allocation2 + $0x6c] sm:$0xe]
    %v1284 = vld [vmem:[#allocation2 + $0x78] sm:$0xe]
    %v1285 = vld [vmem:[#allocation2 + $0x84] sm:$0xe]
    %v1286 = vld [vmem:[#allocation2 + $0x90] sm:$0xe]
    %v1287 = vld [vmem:[#allocation2 + $0x9c] sm:$0xe]
    %v1288 = vld [vmem:[#allocation2 + $0xa8] sm:$0xe]
    %v1289 = vld [vmem:[#allocation2 + $0xb4] sm:$0xe]
    %v1290 = vld [vmem:[#allocation2 + $0xd8] sm:$0xe]
    %v1291 = vld [vmem:[#allocation2 + $0xe4] sm:$0xe]
    %v1292 = vld [vmem:[#allocation2 + $0xf0] sm:$0xe]
    %v1293 = vld [vmem:[#allocation2 + $0xfc] sm:$0xe]
    %v1294 = vld [vmem:[#allocation2 + $0x108] sm:$0xe]
    %v1295 = vld [vmem:[#allocation2 + $0x114] sm:$0xe]
    %v1296 = vld [vmem:[#allocation2 + $0x120] sm:$0xe]
    %v1297 = vld [vmem:[#allocation2 + $0x12c] sm:$0xe]
    %v1298 = vld [vmem:[#allocation2 + $0x138] sm:$0xe]
    %v1299 = vld [vmem:[#allocation2 + $0x144] sm:$0xe]
    %v1300 = vld [vmem:[#allocation2 + $0x150] sm:$0xe]
    %v1301 = vld [vmem:[#allocation2 + $0x15c] sm:$0xe]
    %v1302 = vld [vmem:[#allocation2 + $0x168] sm:$0xe]
    %v1303 = vld [vmem:[#allocation2 + $0x174] sm:$0xe]
    %v1304 = vld [vmem:[#allocation2 + $0x180] sm:$0xe]
    %v1305 = vld [vmem:[#allocation2 + $0x18c] sm:$0xe]
    %v1306 = vld [vmem:[%s112] sm:$0xf]
    %v1307 = vld [vmem:[%s112 + $0x4] sm:$0xf]
    %v1308 = vld [vmem:[%s112 + $0xc] sm:$0xf]
    %v1309 = vld [vmem:[%s112 + $0x10] sm:$0xf]
    %v1310 = vld [vmem:[%s112 + $0x18] sm:$0xf]
    %v1311 = vld [vmem:[%s112 + $0x1c] sm:$0xf]
    %v1312 = vld [vmem:[%s112 + $0x24] sm:$0xf]
    %v1313 = vld [vmem:[%s112 + $0x28] sm:$0xf]
    %v1314 = vld [vmem:[%s112 + $0x30] sm:$0xf]
    %v1315 = vld [vmem:[%s112 + $0x34] sm:$0xf]
    %v1316 = vld [vmem:[%s112 + $0x3c] sm:$0xf]
    %v1317 = vld [vmem:[%s112 + $0x40] sm:$0xf]
    %v1318 = vld [vmem:[%s112 + $0x48] sm:$0xf]
    %v1319 = vld [vmem:[%s112 + $0x4c] sm:$0xf]
    %v1320 = vld [vmem:[%s112 + $0x54] sm:$0xf]
    %v1321 = vld [vmem:[%s112 + $0x58] sm:$0xf]
    %v1322 = vld [vmem:[%s112 + $0x60] sm:$0xf]
    %v1323 = vld [vmem:[%s112 + $0x64] sm:$0xf]
    %v1324 = vld [vmem:[%s112 + $0x6c] sm:$0xf]
    %v1325 = vld [vmem:[%s112 + $0x70] sm:$0xf]
    %v1326 = vld [vmem:[%s112 + $0x78] sm:$0xf]
    %v1327 = vld [vmem:[%s112 + $0x7c] sm:$0xf]
    %v1328 = vld [vmem:[%s112 + $0x84] sm:$0xf]
    %v1329 = vld [vmem:[%s112 + $0x88] sm:$0xf]
    %v1330 = vld [vmem:[%s112 + $0x90] sm:$0xf]
    %v1331 = vld [vmem:[%s112 + $0x94] sm:$0xf]
    %v1332 = vld [vmem:[%s112 + $0x9c] sm:$0xf]
    %v1333 = vld [vmem:[%s112 + $0xa0] sm:$0xf]
    %v1334 = vld [vmem:[%s112 + $0xa8] sm:$0xf]
    %v1335 = vld [vmem:[%s112 + $0xac] sm:$0xf]
    %v1336 = vld [vmem:[%s112 + $0xb4] sm:$0xf]
    %v1337 = vld [vmem:[%s112 + $0xb8] sm:$0xf]
    %v1338 = vld [vmem:[%s112 + $0xd8] sm:$0xf]
    %v1339 = vld [vmem:[%s112 + $0xdc] sm:$0xf]
    %v1340 = vld [vmem:[%s112 + $0xe4] sm:$0xf]
    %v1341 = vld [vmem:[%s112 + $0xe8] sm:$0xf]
    %v1342 = vld [vmem:[%s112 + $0xf0] sm:$0xf]
    %v1343 = vld [vmem:[%s112 + $0xf4] sm:$0xf]
    %v1344 = vld [vmem:[%s112 + $0xfc] sm:$0xf]
    %v1345 = vld [vmem:[%s112 + $0x100] sm:$0xf]
    %v1346 = vld [vmem:[%s112 + $0x108] sm:$0xf]
    %v1347 = vld [vmem:[%s112 + $0x10c] sm:$0xf]
    %v1348 = vld [vmem:[%s112 + $0x114] sm:$0xf]
    %v1349 = vld [vmem:[%s112 + $0x118] sm:$0xf]
    %v1350 = vld [vmem:[%s112 + $0x120] sm:$0xf]
    %v1351 = vld [vmem:[%s112 + $0x124] sm:$0xf]
    %v1352 = vld [vmem:[%s112 + $0x12c] sm:$0xf]
    %v1353 = vld [vmem:[%s112 + $0x130] sm:$0xf]
    %v1354 = vld [vmem:[%s112 + $0x138] sm:$0xf]
    %v1355 = vld [vmem:[%s112 + $0x13c] sm:$0xf]
    %v1356 = vld [vmem:[%s112 + $0x144] sm:$0xf]
    %v1357 = vld [vmem:[%s112 + $0x148] sm:$0xf]
    %v1358 = vld [vmem:[%s112 + $0x150] sm:$0xf]
    %v1359 = vld [vmem:[%s112 + $0x154] sm:$0xf]
    %v1360 = vld [vmem:[%s112 + $0x15c] sm:$0xf]
    %v1361 = vld [vmem:[%s112 + $0x160] sm:$0xf]
    %v1362 = vld [vmem:[%s112 + $0x168] sm:$0xf]
    %v1363 = vld [vmem:[%s112 + $0x16c] sm:$0xf]
    %v1364 = vld [vmem:[%s112 + $0x174] sm:$0xf]
    %v1365 = vld [vmem:[%s112 + $0x178] sm:$0xf]
    %v1366 = vld [vmem:[%s112 + $0x180] sm:$0xf]
    %v1367 = vld [vmem:[%s112 + $0x184] sm:$0xf]
    %v1368 = vld [vmem:[%s112 + $0x18c] sm:$0xf]
    %v1369 = vld [vmem:[%s112 + $0x190] sm:$0xf]
    %v1370 = vld [vmem:[%s112 + $0x8] sm:$0x1]
    %v1371 = vld [vmem:[%s112 + $0x14] sm:$0x1]
    %v1372 = vld [vmem:[%s112 + $0x20] sm:$0x1]
    %v1373 = vld [vmem:[%s112 + $0x2c] sm:$0x1]
    %v1374 = vld [vmem:[%s112 + $0x38] sm:$0x1]
    %v1375 = vld [vmem:[%s112 + $0x44] sm:$0x1]
    %v1376 = vld [vmem:[%s112 + $0x50] sm:$0x1]
    %v1377 = vld [vmem:[%s112 + $0x5c] sm:$0x1]
    %v1378 = vld [vmem:[%s112 + $0x68] sm:$0x1]
    %v1379 = vld [vmem:[%s112 + $0x74] sm:$0x1]
    %v1380 = vld [vmem:[%s112 + $0x80] sm:$0x1]
    %v1381 = vld [vmem:[%s112 + $0x8c] sm:$0x1]
    %v1382 = vld [vmem:[%s112 + $0x98] sm:$0x1]
    %v1383 = vld [vmem:[%s112 + $0xa4] sm:$0x1]
    %v1384 = vld [vmem:[%s112 + $0xb0] sm:$0x1]
    %v1385 = vld [vmem:[%s112 + $0xbc] sm:$0x1]
    %v1386 = vld [vmem:[%s112 + $0xe0] sm:$0x1]
    %v1387 = vld [vmem:[%s112 + $0xec] sm:$0x1]
    %v1388 = vld [vmem:[%s112 + $0xf8] sm:$0x1]
    %v1389 = vld [vmem:[%s112 + $0x104] sm:$0x1]
    %v1390 = vld [vmem:[%s112 + $0x110] sm:$0x1]
    %v1391 = vld [vmem:[%s112 + $0x11c] sm:$0x1]
    %v1392 = vld [vmem:[%s112 + $0x128] sm:$0x1]
    %v1393 = vld [vmem:[%s112 + $0x134] sm:$0x1]
    %v1394 = vld [vmem:[%s112 + $0x140] sm:$0x1]
    %v1395 = vld [vmem:[%s112 + $0x14c] sm:$0x1]
    %v1396 = vld [vmem:[%s112 + $0x158] sm:$0x1]
    %v1397 = vld [vmem:[%s112 + $0x164] sm:$0x1]
    %v1398 = vld [vmem:[%s112 + $0x170] sm:$0x1]
    %v1399 = vld [vmem:[%s112 + $0x17c] sm:$0x1]
    %v1400 = vld [vmem:[%s112 + $0x188] sm:$0x1]
    %v1401 = vld [vmem:[%s112 + $0x194] sm:$0x1]
    %v1402 = vld [vmem:[%s112] sm:$0xe]
    %v1403 = vld [vmem:[%s112 + $0xc] sm:$0xe]
    %v1404 = vld [vmem:[%s112 + $0x18] sm:$0xe]
    %v1405 = vld [vmem:[%s112 + $0x24] sm:$0xe]
    %v1406 = vld [vmem:[%s112 + $0x30] sm:$0xe]
    %v1407 = vld [vmem:[%s112 + $0x3c] sm:$0xe]
    %v1408 = vld [vmem:[%s112 + $0x48] sm:$0xe]
    %v1409 = vld [vmem:[%s112 + $0x54] sm:$0xe]
    %v1410 = vld [vmem:[%s112 + $0x60] sm:$0xe]
    %v1411 = vld [vmem:[%s112 + $0x6c] sm:$0xe]
    %v1412 = vld [vmem:[%s112 + $0x78] sm:$0xe]
    %v1413 = vld [vmem:[%s112 + $0x84] sm:$0xe]
    %v1414 = vld [vmem:[%s112 + $0x90] sm:$0xe]
    %v1415 = vld [vmem:[%s112 + $0x9c] sm:$0xe]
    %v1416 = vld [vmem:[%s112 + $0xa8] sm:$0xe]
    %v1417 = vld [vmem:[%s112 + $0xb4] sm:$0xe]
    %v1418 = vld [vmem:[%s112 + $0xd8] sm:$0xe]
    %v1419 = vld [vmem:[%s112 + $0xe4] sm:$0xe]
    %v1420 = vld [vmem:[%s112 + $0xf0] sm:$0xe]
    %v1421 = vld [vmem:[%s112 + $0xfc] sm:$0xe]
    %v1422 = vld [vmem:[%s112 + $0x108] sm:$0xe]
    %v1423 = vld [vmem:[%s112 + $0x114] sm:$0xe]
    %v1424 = vld [vmem:[%s112 + $0x120] sm:$0xe]
    %v1425 = vld [vmem:[%s112 + $0x12c] sm:$0xe]
    %v1426 = vld [vmem:[%s112 + $0x138] sm:$0xe]
    %v1427 = vld [vmem:[%s112 + $0x144] sm:$0xe]
    %v1428 = vld [vmem:[%s112 + $0x150] sm:$0xe]
    %v1429 = vld [vmem:[%s112 + $0x15c] sm:$0xe]
    %v1430 = vld [vmem:[%s112 + $0x168] sm:$0xe]
    %v1431 = vld [vmem:[%s112 + $0x174] sm:$0xe]
    %v1432 = vld [vmem:[%s112 + $0x180] sm:$0xe]
    %v1433 = vld [vmem:[%s112 + $0x18c] sm:$0xe]
    %s1434 = scalar_lea.vmem [#allocation2], 24
    %v1435 = vld [vmem:[%s1434] sm:$0xf]
    %v1436 = vld [vmem:[%s1434 + $0x4] sm:$0xf]
    %v1437 = vld [vmem:[%s1434 + $0xc] sm:$0xf]
    %v1438 = vld [vmem:[%s1434 + $0x10] sm:$0xf]
    %v1439 = vld [vmem:[%s1434 + $0x18] sm:$0xf]
    %v1440 = vld [vmem:[%s1434 + $0x1c] sm:$0xf]
    %v1441 = vld [vmem:[%s1434 + $0x24] sm:$0xf]
    %v1442 = vld [vmem:[%s1434 + $0x28] sm:$0xf]
    %v1443 = vld [vmem:[%s1434 + $0x30] sm:$0xf]
    %v1444 = vld [vmem:[%s1434 + $0x34] sm:$0xf]
    %v1445 = vld [vmem:[%s1434 + $0x3c] sm:$0xf]
    %v1446 = vld [vmem:[%s1434 + $0x40] sm:$0xf]
    %v1447 = vld [vmem:[%s1434 + $0x48] sm:$0xf]
    %v1448 = vld [vmem:[%s1434 + $0x4c] sm:$0xf]
    %v1449 = vld [vmem:[%s1434 + $0x54] sm:$0xf]
    %v1450 = vld [vmem:[%s1434 + $0x58] sm:$0xf]
    %v1451 = vld [vmem:[%s1434 + $0x60] sm:$0xf]
    %v1452 = vld [vmem:[%s1434 + $0x64] sm:$0xf]
    %v1453 = vld [vmem:[%s1434 + $0x6c] sm:$0xf]
    %v1454 = vld [vmem:[%s1434 + $0x70] sm:$0xf]
    %v1455 = vld [vmem:[%s1434 + $0x78] sm:$0xf]
    %v1456 = vld [vmem:[%s1434 + $0x7c] sm:$0xf]
    %v1457 = vld [vmem:[%s1434 + $0x84] sm:$0xf]
    %v1458 = vld [vmem:[%s1434 + $0x88] sm:$0xf]
    %v1459 = vld [vmem:[%s1434 + $0x90] sm:$0xf]
    %v1460 = vld [vmem:[%s1434 + $0x94] sm:$0xf]
    %v1461 = vld [vmem:[%s1434 + $0x9c] sm:$0xf]
    %v1462 = vld [vmem:[%s1434 + $0xa0] sm:$0xf]
    %v1463 = vld [vmem:[%s1434 + $0xa8] sm:$0xf]
    %v1464 = vld [vmem:[%s1434 + $0xac] sm:$0xf]
    %v1465 = vld [vmem:[%s1434 + $0xb4] sm:$0xf]
    %v1466 = vld [vmem:[%s1434 + $0xb8] sm:$0xf]
    %v1467 = vld [vmem:[%s1434 + $0xd8] sm:$0xf]
    %v1468 = vld [vmem:[%s1434 + $0xdc] sm:$0xf]
    %v1469 = vld [vmem:[%s1434 + $0xe4] sm:$0xf]
    %v1470 = vld [vmem:[%s1434 + $0xe8] sm:$0xf]
    %v1471 = vld [vmem:[%s1434 + $0xf0] sm:$0xf]
    %v1472 = vld [vmem:[%s1434 + $0xf4] sm:$0xf]
    %v1473 = vld [vmem:[%s1434 + $0xfc] sm:$0xf]
    %v1474 = vld [vmem:[%s1434 + $0x100] sm:$0xf]
    %v1475 = vld [vmem:[%s1434 + $0x108] sm:$0xf]
    %v1476 = vld [vmem:[%s1434 + $0x10c] sm:$0xf]
    %v1477 = vld [vmem:[%s1434 + $0x114] sm:$0xf]
    %v1478 = vld [vmem:[%s1434 + $0x118] sm:$0xf]
    %v1479 = vld [vmem:[%s1434 + $0x120] sm:$0xf]
    %v1480 = vld [vmem:[%s1434 + $0x124] sm:$0xf]
    %v1481 = vld [vmem:[%s1434 + $0x12c] sm:$0xf]
    %v1482 = vld [vmem:[%s1434 + $0x130] sm:$0xf]
    %v1483 = vld [vmem:[%s1434 + $0x138] sm:$0xf]
    %v1484 = vld [vmem:[%s1434 + $0x13c] sm:$0xf]
    %v1485 = vld [vmem:[%s1434 + $0x144] sm:$0xf]
    %v1486 = vld [vmem:[%s1434 + $0x148] sm:$0xf]
    %v1487 = vld [vmem:[%s1434 + $0x150] sm:$0xf]
    %v1488 = vld [vmem:[%s1434 + $0x154] sm:$0xf]
    %v1489 = vld [vmem:[%s1434 + $0x15c] sm:$0xf]
    %v1490 = vld [vmem:[%s1434 + $0x160] sm:$0xf]
    %v1491 = vld [vmem:[%s1434 + $0x168] sm:$0xf]
    %v1492 = vld [vmem:[%s1434 + $0x16c] sm:$0xf]
    %v1493 = vld [vmem:[%s1434 + $0x174] sm:$0xf]
    %v1494 = vld [vmem:[%s1434 + $0x178] sm:$0xf]
    %v1495 = vld [vmem:[%s1434 + $0x180] sm:$0xf]
    %v1496 = vld [vmem:[%s1434 + $0x184] sm:$0xf]
    %v1497 = vld [vmem:[%s1434 + $0x18c] sm:$0xf]
    %v1498 = vld [vmem:[%s1434 + $0x190] sm:$0xf]
    %v1499 = vld [vmem:[%s1434 + $0x8] sm:$0x1]
    %v1500 = vld [vmem:[%s1434 + $0x14] sm:$0x1]
    %v1501 = vld [vmem:[%s1434 + $0x20] sm:$0x1]
    %v1502 = vld [vmem:[%s1434 + $0x2c] sm:$0x1]
    %v1503 = vld [vmem:[%s1434 + $0x38] sm:$0x1]
    %v1504 = vld [vmem:[%s1434 + $0x44] sm:$0x1]
    %v1505 = vld [vmem:[%s1434 + $0x50] sm:$0x1]
    %v1506 = vld [vmem:[%s1434 + $0x5c] sm:$0x1]
    %v1507 = vld [vmem:[%s1434 + $0x68] sm:$0x1]
    %v1508 = vld [vmem:[%s1434 + $0x74] sm:$0x1]
    %v1509 = vld [vmem:[%s1434 + $0x80] sm:$0x1]
    %v1510 = vld [vmem:[%s1434 + $0x8c] sm:$0x1]
    %v1511 = vld [vmem:[%s1434 + $0x98] sm:$0x1]
    %v1512 = vld [vmem:[%s1434 + $0xa4] sm:$0x1]
    %v1513 = vld [vmem:[%s1434 + $0xb0] sm:$0x1]
    %v1514 = vld [vmem:[%s1434 + $0xbc] sm:$0x1]
    %v1515 = vld [vmem:[%s1434 + $0xe0] sm:$0x1]
    %v1516 = vld [vmem:[%s1434 + $0xec] sm:$0x1]
    %v1517 = vld [vmem:[%s1434 + $0xf8] sm:$0x1]
    %v1518 = vld [vmem:[%s1434 + $0x104] sm:$0x1]
    %v1519 = vld [vmem:[%s1434 + $0x110] sm:$0x1]
    %v1520 = vld [vmem:[%s1434 + $0x11c] sm:$0x1]
    %v1521 = vld [vmem:[%s1434 + $0x128] sm:$0x1]
    %v1522 = vld [vmem:[%s1434 + $0x134] sm:$0x1]
    %v1523 = vld [vmem:[%s1434 + $0x140] sm:$0x1]
    %v1524 = vld [vmem:[%s1434 + $0x14c] sm:$0x1]
    %v1525 = vld [vmem:[%s1434 + $0x158] sm:$0x1]
    %v1526 = vld [vmem:[%s1434 + $0x164] sm:$0x1]
    %v1527 = vld [vmem:[%s1434 + $0x170] sm:$0x1]
    %v1528 = vld [vmem:[%s1434 + $0x17c] sm:$0x1]
    %v1529 = vld [vmem:[%s1434 + $0x188] sm:$0x1]
    %v1530 = vld [vmem:[%s1434 + $0x194] sm:$0x1]
    %v1531 = vld [vmem:[%s1434] sm:$0xe]
    %v1532 = vld [vmem:[%s1434 + $0xc] sm:$0xe]
    %v1533 = vld [vmem:[%s1434 + $0x18] sm:$0xe]
    %v1534 = vld [vmem:[%s1434 + $0x24] sm:$0xe]
    %v1535 = vld [vmem:[%s1434 + $0x30] sm:$0xe]
    %v1536 = vld [vmem:[%s1434 + $0x3c] sm:$0xe]
    %v1537 = vld [vmem:[%s1434 + $0x48] sm:$0xe]
    %v1538 = vld [vmem:[%s1434 + $0x54] sm:$0xe]
    %v1539 = vld [vmem:[%s1434 + $0x60] sm:$0xe]
    %v1540 = vld [vmem:[%s1434 + $0x6c] sm:$0xe]
    %v1541 = vld [vmem:[%s1434 + $0x78] sm:$0xe]
    %v1542 = vld [vmem:[%s1434 + $0x84] sm:$0xe]
    %v1543 = vld [vmem:[%s1434 + $0x90] sm:$0xe]
    %v1544 = vld [vmem:[%s1434 + $0x9c] sm:$0xe]
    %v1545 = vld [vmem:[%s1434 + $0xa8] sm:$0xe]
    %v1546 = vld [vmem:[%s1434 + $0xb4] sm:$0xe]
    %v1547 = vld [vmem:[%s1434 + $0xd8] sm:$0xe]
    %v1548 = vld [vmem:[%s1434 + $0xe4] sm:$0xe]
    %v1549 = vld [vmem:[%s1434 + $0xf0] sm:$0xe]
    %v1550 = vld [vmem:[%s1434 + $0xfc] sm:$0xe]
    %v1551 = vld [vmem:[%s1434 + $0x108] sm:$0xe]
    %v1552 = vld [vmem:[%s1434 + $0x114] sm:$0xe]
    %v1553 = vld [vmem:[%s1434 + $0x120] sm:$0xe]
    %v1554 = vld [vmem:[%s1434 + $0x12c] sm:$0xe]
    %v1555 = vld [vmem:[%s1434 + $0x138] sm:$0xe]
    %v1556 = vld [vmem:[%s1434 + $0x144] sm:$0xe]
    %v1557 = vld [vmem:[%s1434 + $0x150] sm:$0xe]
    %v1558 = vld [vmem:[%s1434 + $0x15c] sm:$0xe]
    %v1559 = vld [vmem:[%s1434 + $0x168] sm:$0xe]
    %v1560 = vld [vmem:[%s1434 + $0x174] sm:$0xe]
    %v1561 = vld [vmem:[%s1434 + $0x180] sm:$0xe]
    %v1562 = vld [vmem:[%s1434 + $0x18c] sm:$0xe]
    %v1627 = vunpack.c.l.b16 %v1178
    %v1628 = vunpack.c.l.b16 %v1179
    %v1629 = vunpack.c.l.b16 %v1180
    %v1630 = vunpack.c.l.b16 %v1181
    %v1631 = vunpack.c.l.b16 %v1182
    %v1632 = vunpack.c.l.b16 %v1183
    %v1633 = vunpack.c.l.b16 %v1184
    %v1634 = vunpack.c.l.b16 %v1185
    %v1635 = vunpack.c.l.b16 %v1186
    %v1636 = vunpack.c.l.b16 %v1187
    %v1637 = vunpack.c.l.b16 %v1188
    %v1638 = vunpack.c.l.b16 %v1189
    %v1639 = vunpack.c.l.b16 %v1190
    %v1640 = vunpack.c.l.b16 %v1191
    %v1641 = vunpack.c.l.b16 %v1192
    %v1642 = vunpack.c.l.b16 %v1193
    %v1643 = vunpack.c.l.b16 %v1194
    %v1644 = vunpack.c.l.b16 %v1195
    %v1645 = vunpack.c.l.b16 %v1196
    %v1646 = vunpack.c.l.b16 %v1197
    %v1647 = vunpack.c.l.b16 %v1198
    %v1648 = vunpack.c.l.b16 %v1199
    %v1649 = vunpack.c.l.b16 %v1200
    %v1650 = vunpack.c.l.b16 %v1201
    %v1651 = vunpack.c.l.b16 %v1202
    %v1652 = vunpack.c.l.b16 %v1203
    %v1653 = vunpack.c.l.b16 %v1204
    %v1654 = vunpack.c.l.b16 %v1205
    %v1655 = vunpack.c.l.b16 %v1206
    %v1656 = vunpack.c.l.b16 %v1207
    %v1657 = vunpack.c.l.b16 %v1208
    %v1658 = vunpack.c.l.b16 %v1209
    %v1659 = vunpack.c.l.b16 %v1210
    %v1660 = vunpack.c.l.b16 %v1211
    %v1661 = vunpack.c.l.b16 %v1212
    %v1662 = vunpack.c.l.b16 %v1213
    %v1663 = vunpack.c.l.b16 %v1214
    %v1664 = vunpack.c.l.b16 %v1215
    %v1665 = vunpack.c.l.b16 %v1216
    %v1666 = vunpack.c.l.b16 %v1217
    %v1667 = vunpack.c.l.b16 %v1218
    %v1668 = vunpack.c.l.b16 %v1219
    %v1669 = vunpack.c.l.b16 %v1220
    %v1670 = vunpack.c.l.b16 %v1221
    %v1671 = vunpack.c.l.b16 %v1222
    %v1672 = vunpack.c.l.b16 %v1223
    %v1673 = vunpack.c.l.b16 %v1224
    %v1674 = vunpack.c.l.b16 %v1225
    %v1675 = vunpack.c.l.b16 %v1226
    %v1676 = vunpack.c.l.b16 %v1227
    %v1677 = vunpack.c.l.b16 %v1228
    %v1678 = vunpack.c.l.b16 %v1229
    %v1679 = vunpack.c.l.b16 %v1230
    %v1680 = vunpack.c.l.b16 %v1231
    %v1681 = vunpack.c.l.b16 %v1232
    %v1682 = vunpack.c.l.b16 %v1233
    %v1683 = vunpack.c.l.b16 %v1234
    %v1684 = vunpack.c.l.b16 %v1235
    %v1685 = vunpack.c.l.b16 %v1236
    %v1686 = vunpack.c.l.b16 %v1237
    %v1687 = vunpack.c.l.b16 %v1238
    %v1688 = vunpack.c.l.b16 %v1239
    %v1689 = vunpack.c.l.b16 %v1240
    %v1690 = vunpack.c.l.b16 %v1241
    %v1691 = vpack.c.b16 %v1628, %v1627
    %v1692 = vpack.c.b16 %v1630, %v1629
    %v1693 = vpack.c.b16 %v1632, %v1631
    %v1694 = vpack.c.b16 %v1634, %v1633
    %v1695 = vpack.c.b16 %v1636, %v1635
    %v1696 = vpack.c.b16 %v1638, %v1637
    %v1697 = vpack.c.b16 %v1640, %v1639
    %v1698 = vpack.c.b16 %v1642, %v1641
    %v1699 = vpack.c.b16 %v1644, %v1643
    %v1700 = vpack.c.b16 %v1646, %v1645
    %v1701 = vpack.c.b16 %v1648, %v1647
    %v1702 = vpack.c.b16 %v1650, %v1649
    %v1703 = vpack.c.b16 %v1652, %v1651
    %v1704 = vpack.c.b16 %v1654, %v1653
    %v1705 = vpack.c.b16 %v1656, %v1655
    %v1706 = vpack.c.b16 %v1658, %v1657
    %v1707 = vpack.c.b16 %v1660, %v1659
    %v1708 = vpack.c.b16 %v1662, %v1661
    %v1709 = vpack.c.b16 %v1664, %v1663
    %v1710 = vpack.c.b16 %v1666, %v1665
    %v1711 = vpack.c.b16 %v1668, %v1667
    %v1712 = vpack.c.b16 %v1670, %v1669
    %v1713 = vpack.c.b16 %v1672, %v1671
    %v1714 = vpack.c.b16 %v1674, %v1673
    %v1715 = vpack.c.b16 %v1676, %v1675
    %v1716 = vpack.c.b16 %v1678, %v1677
    %v1717 = vpack.c.b16 %v1680, %v1679
    %v1718 = vpack.c.b16 %v1682, %v1681
    %v1719 = vpack.c.b16 %v1684, %v1683
    %v1720 = vpack.c.b16 %v1686, %v1685
    %v1721 = vpack.c.b16 %v1688, %v1687
    %v1722 = vpack.c.b16 %v1690, %v1689
    %v1755 = vunpack.c.l.b16 %v1242
    %v1756 = vunpack.c.l.b16 %v1243
    %v1757 = vunpack.c.l.b16 %v1244
    %v1758 = vunpack.c.l.b16 %v1245
    %v1759 = vunpack.c.l.b16 %v1246
    %v1760 = vunpack.c.l.b16 %v1247
    %v1761 = vunpack.c.l.b16 %v1248
    %v1762 = vunpack.c.l.b16 %v1249
    %v1763 = vunpack.c.l.b16 %v1250
    %v1764 = vunpack.c.l.b16 %v1251
    %v1765 = vunpack.c.l.b16 %v1252
    %v1766 = vunpack.c.l.b16 %v1253
    %v1767 = vunpack.c.l.b16 %v1254
    %v1768 = vunpack.c.l.b16 %v1255
    %v1769 = vunpack.c.l.b16 %v1256
    %v1770 = vunpack.c.l.b16 %v1257
    %v1771 = vunpack.c.l.b16 %v1258
    %v1772 = vunpack.c.l.b16 %v1259
    %v1773 = vunpack.c.l.b16 %v1260
    %v1774 = vunpack.c.l.b16 %v1261
    %v1775 = vunpack.c.l.b16 %v1262
    %v1776 = vunpack.c.l.b16 %v1263
    %v1777 = vunpack.c.l.b16 %v1264
    %v1778 = vunpack.c.l.b16 %v1265
    %v1779 = vunpack.c.l.b16 %v1266
    %v1780 = vunpack.c.l.b16 %v1267
    %v1781 = vunpack.c.l.b16 %v1268
    %v1782 = vunpack.c.l.b16 %v1269
    %v1783 = vunpack.c.l.b16 %v1270
    %v1784 = vunpack.c.l.b16 %v1271
    %v1785 = vunpack.c.l.b16 %v1272
    %v1786 = vunpack.c.l.b16 %v1273
    %v1787 = vpack.c.b16 %v1755, %v1755
    %v1788 = vpack.c.b16 %v1756, %v1756
    %v1789 = vpack.c.b16 %v1757, %v1757
    %v1790 = vpack.c.b16 %v1758, %v1758
    %v1791 = vpack.c.b16 %v1759, %v1759
    %v1792 = vpack.c.b16 %v1760, %v1760
    %v1793 = vpack.c.b16 %v1761, %v1761
    %v1794 = vpack.c.b16 %v1762, %v1762
    %v1795 = vpack.c.b16 %v1763, %v1763
    %v1796 = vpack.c.b16 %v1764, %v1764
    %v1797 = vpack.c.b16 %v1765, %v1765
    %v1798 = vpack.c.b16 %v1766, %v1766
    %v1799 = vpack.c.b16 %v1767, %v1767
    %v1800 = vpack.c.b16 %v1768, %v1768
    %v1801 = vpack.c.b16 %v1769, %v1769
    %v1802 = vpack.c.b16 %v1770, %v1770
    %v1803 = vpack.c.b16 %v1771, %v1771
    %v1804 = vpack.c.b16 %v1772, %v1772
    %v1805 = vpack.c.b16 %v1773, %v1773
    %v1806 = vpack.c.b16 %v1774, %v1774
    %v1807 = vpack.c.b16 %v1775, %v1775
    %v1808 = vpack.c.b16 %v1776, %v1776
    %v1809 = vpack.c.b16 %v1777, %v1777
    %v1810 = vpack.c.b16 %v1778, %v1778
    %v1811 = vpack.c.b16 %v1779, %v1779
    %v1812 = vpack.c.b16 %v1780, %v1780
    %v1813 = vpack.c.b16 %v1781, %v1781
    %v1814 = vpack.c.b16 %v1782, %v1782
    %v1815 = vpack.c.b16 %v1783, %v1783
    %v1816 = vpack.c.b16 %v1784, %v1784
    %v1817 = vpack.c.b16 %v1785, %v1785
    %v1818 = vpack.c.b16 %v1786, %v1786
    %vm1819 = vsmask.f32 7424
    %v1821 = vshrl.u32 %v1691, 16
    %v1823 = vshll.u32 %v1691, 16
    %v1825 = vrot.slane %v1823, 1
    %v1826 = vor.u32 %v1821, %v1825
    %v1828 = vshll.u32 %v1787, 16
    %v1830 = vrot.slane %v1828, 1
    %v1831 = vsel %vm1819, %v1826, %v1830
    %v1833 = vshrl.u32 %v1692, 16
    %v1835 = vshll.u32 %v1692, 16
    %v1837 = vrot.slane %v1835, 1
    %v1838 = vor.u32 %v1833, %v1837
    %v1840 = vshll.u32 %v1788, 16
    %v1842 = vrot.slane %v1840, 1
    %v1843 = vsel %vm1819, %v1838, %v1842
    %v1845 = vshrl.u32 %v1693, 16
    %v1847 = vshll.u32 %v1693, 16
    %v1849 = vrot.slane %v1847, 1
    %v1850 = vor.u32 %v1845, %v1849
    %v1852 = vshll.u32 %v1789, 16
    %v1854 = vrot.slane %v1852, 1
    %v1855 = vsel %vm1819, %v1850, %v1854
    %v1857 = vshrl.u32 %v1694, 16
    %v1859 = vshll.u32 %v1694, 16
    %v1861 = vrot.slane %v1859, 1
    %v1862 = vor.u32 %v1857, %v1861
    %v1864 = vshll.u32 %v1790, 16
    %v1866 = vrot.slane %v1864, 1
    %v1867 = vsel %vm1819, %v1862, %v1866
    %v1869 = vshrl.u32 %v1695, 16
    %v1871 = vshll.u32 %v1695, 16
    %v1873 = vrot.slane %v1871, 1
    %v1874 = vor.u32 %v1869, %v1873
    %v1876 = vshll.u32 %v1791, 16
    %v1878 = vrot.slane %v1876, 1
    %v1879 = vsel %vm1819, %v1874, %v1878
    %v1881 = vshrl.u32 %v1696, 16
    %v1883 = vshll.u32 %v1696, 16
    %v1885 = vrot.slane %v1883, 1
    %v1886 = vor.u32 %v1881, %v1885
    %v1888 = vshll.u32 %v1792, 16
    %v1890 = vrot.slane %v1888, 1
    %v1891 = vsel %vm1819, %v1886, %v1890
    %v1893 = vshrl.u32 %v1697, 16
    %v1895 = vshll.u32 %v1697, 16
    %v1897 = vrot.slane %v1895, 1
    %v1898 = vor.u32 %v1893, %v1897
    %v1900 = vshll.u32 %v1793, 16
    %v1902 = vrot.slane %v1900, 1
    %v1903 = vsel %vm1819, %v1898, %v1902
    %v1905 = vshrl.u32 %v1698, 16
    %v1907 = vshll.u32 %v1698, 16
    %v1909 = vrot.slane %v1907, 1
    %v1910 = vor.u32 %v1905, %v1909
    %v1912 = vshll.u32 %v1794, 16
    %v1914 = vrot.slane %v1912, 1
    %v1915 = vsel %vm1819, %v1910, %v1914
    %v1917 = vshrl.u32 %v1699, 16
    %v1919 = vshll.u32 %v1699, 16
    %v1921 = vrot.slane %v1919, 1
    %v1922 = vor.u32 %v1917, %v1921
    %v1924 = vshll.u32 %v1795, 16
    %v1926 = vrot.slane %v1924, 1
    %v1927 = vsel %vm1819, %v1922, %v1926
    %v1929 = vshrl.u32 %v1700, 16
    %v1931 = vshll.u32 %v1700, 16
    %v1933 = vrot.slane %v1931, 1
    %v1934 = vor.u32 %v1929, %v1933
    %v1936 = vshll.u32 %v1796, 16
    %v1938 = vrot.slane %v1936, 1
    %v1939 = vsel %vm1819, %v1934, %v1938
    %v1941 = vshrl.u32 %v1701, 16
    %v1943 = vshll.u32 %v1701, 16
    %v1945 = vrot.slane %v1943, 1
    %v1946 = vor.u32 %v1941, %v1945
    %v1948 = vshll.u32 %v1797, 16
    %v1950 = vrot.slane %v1948, 1
    %v1951 = vsel %vm1819, %v1946, %v1950
    %v1953 = vshrl.u32 %v1702, 16
    %v1955 = vshll.u32 %v1702, 16
    %v1957 = vrot.slane %v1955, 1
    %v1958 = vor.u32 %v1953, %v1957
    %v1960 = vshll.u32 %v1798, 16
    %v1962 = vrot.slane %v1960, 1
    %v1963 = vsel %vm1819, %v1958, %v1962
    %v1965 = vshrl.u32 %v1703, 16
    %v1967 = vshll.u32 %v1703, 16
    %v1969 = vrot.slane %v1967, 1
    %v1970 = vor.u32 %v1965, %v1969
    %v1972 = vshll.u32 %v1799, 16
    %v1974 = vrot.slane %v1972, 1
    %v1975 = vsel %vm1819, %v1970, %v1974
    %v1977 = vshrl.u32 %v1704, 16
    %v1979 = vshll.u32 %v1704, 16
    %v1981 = vrot.slane %v1979, 1
    %v1982 = vor.u32 %v1977, %v1981
    %v1984 = vshll.u32 %v1800, 16
    %v1986 = vrot.slane %v1984, 1
    %v1987 = vsel %vm1819, %v1982, %v1986
    %v1989 = vshrl.u32 %v1705, 16
    %v1991 = vshll.u32 %v1705, 16
    %v1993 = vrot.slane %v1991, 1
    %v1994 = vor.u32 %v1989, %v1993
    %v1996 = vshll.u32 %v1801, 16
    %v1998 = vrot.slane %v1996, 1
    %v1999 = vsel %vm1819, %v1994, %v1998
    %v2001 = vshrl.u32 %v1706, 16
    %v2003 = vshll.u32 %v1706, 16
    %v2005 = vrot.slane %v2003, 1
    %v2006 = vor.u32 %v2001, %v2005
    %v2008 = vshll.u32 %v1802, 16
    %v2010 = vrot.slane %v2008, 1
    %v2011 = vsel %vm1819, %v2006, %v2010
    %v2013 = vshrl.u32 %v1707, 16
    %v2015 = vshll.u32 %v1707, 16
    %v2017 = vrot.slane %v2015, 1
    %v2018 = vor.u32 %v2013, %v2017
    %v2020 = vshll.u32 %v1803, 16
    %v2022 = vrot.slane %v2020, 1
    %v2023 = vsel %vm1819, %v2018, %v2022
    %v2025 = vshrl.u32 %v1708, 16
    %v2027 = vshll.u32 %v1708, 16
    %v2029 = vrot.slane %v2027, 1
    %v2030 = vor.u32 %v2025, %v2029
    %v2032 = vshll.u32 %v1804, 16
    %v2034 = vrot.slane %v2032, 1
    %v2035 = vsel %vm1819, %v2030, %v2034
    %v2037 = vshrl.u32 %v1709, 16
    %v2039 = vshll.u32 %v1709, 16
    %v2041 = vrot.slane %v2039, 1
    %v2042 = vor.u32 %v2037, %v2041
    %v2044 = vshll.u32 %v1805, 16
    %v2046 = vrot.slane %v2044, 1
    %v2047 = vsel %vm1819, %v2042, %v2046
    %v2049 = vshrl.u32 %v1710, 16
    %v2051 = vshll.u32 %v1710, 16
    %v2053 = vrot.slane %v2051, 1
    %v2054 = vor.u32 %v2049, %v2053
    %v2056 = vshll.u32 %v1806, 16
    %v2058 = vrot.slane %v2056, 1
    %v2059 = vsel %vm1819, %v2054, %v2058
    %v2061 = vshrl.u32 %v1711, 16
    %v2063 = vshll.u32 %v1711, 16
    %v2065 = vrot.slane %v2063, 1
    %v2066 = vor.u32 %v2061, %v2065
    %v2068 = vshll.u32 %v1807, 16
    %v2070 = vrot.slane %v2068, 1
    %v2071 = vsel %vm1819, %v2066, %v2070
    %v2073 = vshrl.u32 %v1712, 16
    %v2075 = vshll.u32 %v1712, 16
    %v2077 = vrot.slane %v2075, 1
    %v2078 = vor.u32 %v2073, %v2077
    %v2080 = vshll.u32 %v1808, 16
    %v2082 = vrot.slane %v2080, 1
    %v2083 = vsel %vm1819, %v2078, %v2082
    %v2085 = vshrl.u32 %v1713, 16
    %v2087 = vshll.u32 %v1713, 16
    %v2089 = vrot.slane %v2087, 1
    %v2090 = vor.u32 %v2085, %v2089
    %v2092 = vshll.u32 %v1809, 16
    %v2094 = vrot.slane %v2092, 1
    %v2095 = vsel %vm1819, %v2090, %v2094
    %v2097 = vshrl.u32 %v1714, 16
    %v2099 = vshll.u32 %v1714, 16
    %v2101 = vrot.slane %v2099, 1
    %v2102 = vor.u32 %v2097, %v2101
    %v2104 = vshll.u32 %v1810, 16
    %v2106 = vrot.slane %v2104, 1
    %v2107 = vsel %vm1819, %v2102, %v2106
    %v2109 = vshrl.u32 %v1715, 16
    %v2111 = vshll.u32 %v1715, 16
    %v2113 = vrot.slane %v2111, 1
    %v2114 = vor.u32 %v2109, %v2113
    %v2116 = vshll.u32 %v1811, 16
    %v2118 = vrot.slane %v2116, 1
    %v2119 = vsel %vm1819, %v2114, %v2118
    %v2121 = vshrl.u32 %v1716, 16
    %v2123 = vshll.u32 %v1716, 16
    %v2125 = vrot.slane %v2123, 1
    %v2126 = vor.u32 %v2121, %v2125
    %v2128 = vshll.u32 %v1812, 16
    %v2130 = vrot.slane %v2128, 1
    %v2131 = vsel %vm1819, %v2126, %v2130
    %v2133 = vshrl.u32 %v1717, 16
    %v2135 = vshll.u32 %v1717, 16
    %v2137 = vrot.slane %v2135, 1
    %v2138 = vor.u32 %v2133, %v2137
    %v2140 = vshll.u32 %v1813, 16
    %v2142 = vrot.slane %v2140, 1
    %v2143 = vsel %vm1819, %v2138, %v2142
    %v2145 = vshrl.u32 %v1718, 16
    %v2147 = vshll.u32 %v1718, 16
    %v2149 = vrot.slane %v2147, 1
    %v2150 = vor.u32 %v2145, %v2149
    %v2152 = vshll.u32 %v1814, 16
    %v2154 = vrot.slane %v2152, 1
    %v2155 = vsel %vm1819, %v2150, %v2154
    %v2157 = vshrl.u32 %v1719, 16
    %v2159 = vshll.u32 %v1719, 16
    %v2161 = vrot.slane %v2159, 1
    %v2162 = vor.u32 %v2157, %v2161
    %v2164 = vshll.u32 %v1815, 16
    %v2166 = vrot.slane %v2164, 1
    %v2167 = vsel %vm1819, %v2162, %v2166
    %v2169 = vshrl.u32 %v1720, 16
    %v2171 = vshll.u32 %v1720, 16
    %v2173 = vrot.slane %v2171, 1
    %v2174 = vor.u32 %v2169, %v2173
    %v2176 = vshll.u32 %v1816, 16
    %v2178 = vrot.slane %v2176, 1
    %v2179 = vsel %vm1819, %v2174, %v2178
    %v2181 = vshrl.u32 %v1721, 16
    %v2183 = vshll.u32 %v1721, 16
    %v2185 = vrot.slane %v2183, 1
    %v2186 = vor.u32 %v2181, %v2185
    %v2188 = vshll.u32 %v1817, 16
    %v2190 = vrot.slane %v2188, 1
    %v2191 = vsel %vm1819, %v2186, %v2190
    %v2193 = vshrl.u32 %v1722, 16
    %v2195 = vshll.u32 %v1722, 16
    %v2197 = vrot.slane %v2195, 1
    %v2198 = vor.u32 %v2193, %v2197
    %v2200 = vshll.u32 %v1818, 16
    %v2202 = vrot.slane %v2200, 1
    %v2203 = vsel %vm1819, %v2198, %v2202
    %2204 = vrot.lane.b32.xlu0 %v1831, 16
    %v2205 = vpop.permute.xlu0 %2204
    %2206 = vrot.lane.b32.xlu0 %v1843, 16
    %v2207 = vpop.permute.xlu0 %2206
    %2208 = vrot.lane.b32.xlu0 %v1855, 16
    %v2209 = vpop.permute.xlu0 %2208
    %2210 = vrot.lane.b32.xlu0 %v1867, 16
    %v2211 = vpop.permute.xlu0 %2210
    %2212 = vrot.lane.b32.xlu0 %v1879, 16
    %v2213 = vpop.permute.xlu0 %2212
    %2214 = vrot.lane.b32.xlu0 %v1891, 16
    %v2215 = vpop.permute.xlu0 %2214
    %2216 = vrot.lane.b32.xlu0 %v1903, 16
    %v2217 = vpop.permute.xlu0 %2216
    %2218 = vrot.lane.b32.xlu0 %v1915, 16
    %v2219 = vpop.permute.xlu0 %2218
    %2220 = vrot.lane.b32.xlu0 %v1927, 16
    %v2221 = vpop.permute.xlu0 %2220
    %2222 = vrot.lane.b32.xlu0 %v1939, 16
    %v2223 = vpop.permute.xlu0 %2222
    %2224 = vrot.lane.b32.xlu0 %v1951, 16
    %v2225 = vpop.permute.xlu0 %2224
    %2226 = vrot.lane.b32.xlu0 %v1963, 16
    %v2227 = vpop.permute.xlu0 %2226
    %2228 = vrot.lane.b32.xlu0 %v1975, 16
    %v2229 = vpop.permute.xlu0 %2228
    %2230 = vrot.lane.b32.xlu0 %v1987, 16
    %v2231 = vpop.permute.xlu0 %2230
    %2232 = vrot.lane.b32.xlu0 %v1999, 16
    %v2233 = vpop.permute.xlu0 %2232
    %2234 = vrot.lane.b32.xlu0 %v2011, 16
    %v2235 = vpop.permute.xlu0 %2234
    %2236 = vrot.lane.b32.xlu0 %v2023, 16
    %v2237 = vpop.permute.xlu0 %2236
    %2238 = vrot.lane.b32.xlu0 %v2035, 16
    %v2239 = vpop.permute.xlu0 %2238
    %2240 = vrot.lane.b32.xlu0 %v2047, 16
    %v2241 = vpop.permute.xlu0 %2240
    %2242 = vrot.lane.b32.xlu0 %v2059, 16
    %v2243 = vpop.permute.xlu0 %2242
    %2244 = vrot.lane.b32.xlu0 %v2071, 16
    %v2245 = vpop.permute.xlu0 %2244
    %2246 = vrot.lane.b32.xlu0 %v2083, 16
    %v2247 = vpop.permute.xlu0 %2246
    %2248 = vrot.lane.b32.xlu0 %v2095, 16
    %v2249 = vpop.permute.xlu0 %2248
    %2250 = vrot.lane.b32.xlu0 %v2107, 16
    %v2251 = vpop.permute.xlu0 %2250
    %2252 = vrot.lane.b32.xlu0 %v2119, 16
    %v2253 = vpop.permute.xlu0 %2252
    %2254 = vrot.lane.b32.xlu0 %v2131, 16
    %v2255 = vpop.permute.xlu0 %2254
    %2256 = vrot.lane.b32.xlu0 %v2143, 16
    %v2257 = vpop.permute.xlu0 %2256
    %2258 = vrot.lane.b32.xlu0 %v2155, 16
    %v2259 = vpop.permute.xlu0 %2258
    %2260 = vrot.lane.b32.xlu0 %v2167, 16
    %v2261 = vpop.permute.xlu0 %2260
    %2262 = vrot.lane.b32.xlu0 %v2179, 16
    %v2263 = vpop.permute.xlu0 %2262
    %2264 = vrot.lane.b32.xlu0 %v2191, 16
    %v2265 = vpop.permute.xlu0 %2264
    %2266 = vrot.lane.b32.xlu0 %v2203, 16
    %v2267 = vpop.permute.xlu0 %2266
    %v2300 = vunpack.c.l.b16 %v1274
    %v2301 = vunpack.c.l.b16 %v1275
    %v2302 = vunpack.c.l.b16 %v1276
    %v2303 = vunpack.c.l.b16 %v1277
    %v2304 = vunpack.c.l.b16 %v1278
    %v2305 = vunpack.c.l.b16 %v1279
    %v2306 = vunpack.c.l.b16 %v1280
    %v2307 = vunpack.c.l.b16 %v1281
    %v2308 = vunpack.c.l.b16 %v1282
    %v2309 = vunpack.c.l.b16 %v1283
    %v2310 = vunpack.c.l.b16 %v1284
    %v2311 = vunpack.c.l.b16 %v1285
    %v2312 = vunpack.c.l.b16 %v1286
    %v2313 = vunpack.c.l.b16 %v1287
    %v2314 = vunpack.c.l.b16 %v1288
    %v2315 = vunpack.c.l.b16 %v1289
    %v2316 = vunpack.c.l.b16 %v1290
    %v2317 = vunpack.c.l.b16 %v1291
    %v2318 = vunpack.c.l.b16 %v1292
    %v2319 = vunpack.c.l.b16 %v1293
    %v2320 = vunpack.c.l.b16 %v1294
    %v2321 = vunpack.c.l.b16 %v1295
    %v2322 = vunpack.c.l.b16 %v1296
    %v2323 = vunpack.c.l.b16 %v1297
    %v2324 = vunpack.c.l.b16 %v1298
    %v2325 = vunpack.c.l.b16 %v1299
    %v2326 = vunpack.c.l.b16 %v1300
    %v2327 = vunpack.c.l.b16 %v1301
    %v2328 = vunpack.c.l.b16 %v1302
    %v2329 = vunpack.c.l.b16 %v1303
    %v2330 = vunpack.c.l.b16 %v1304
    %v2331 = vunpack.c.l.b16 %v1305
    %v2332 = vpack.c.b16 %v1628, %v2300
    %v2333 = vpack.c.b16 %v1630, %v2301
    %v2334 = vpack.c.b16 %v1632, %v2302
    %v2335 = vpack.c.b16 %v1634, %v2303
    %v2336 = vpack.c.b16 %v1636, %v2304
    %v2337 = vpack.c.b16 %v1638, %v2305
    %v2338 = vpack.c.b16 %v1640, %v2306
    %v2339 = vpack.c.b16 %v1642, %v2307
    %v2340 = vpack.c.b16 %v1644, %v2308
    %v2341 = vpack.c.b16 %v1646, %v2309
    %v2342 = vpack.c.b16 %v1648, %v2310
    %v2343 = vpack.c.b16 %v1650, %v2311
    %v2344 = vpack.c.b16 %v1652, %v2312
    %v2345 = vpack.c.b16 %v1654, %v2313
    %v2346 = vpack.c.b16 %v1656, %v2314
    %v2347 = vpack.c.b16 %v1658, %v2315
    %v2348 = vpack.c.b16 %v1660, %v2316
    %v2349 = vpack.c.b16 %v1662, %v2317
    %v2350 = vpack.c.b16 %v1664, %v2318
    %v2351 = vpack.c.b16 %v1666, %v2319
    %v2352 = vpack.c.b16 %v1668, %v2320
    %v2353 = vpack.c.b16 %v1670, %v2321
    %v2354 = vpack.c.b16 %v1672, %v2322
    %v2355 = vpack.c.b16 %v1674, %v2323
    %v2356 = vpack.c.b16 %v1676, %v2324
    %v2357 = vpack.c.b16 %v1678, %v2325
    %v2358 = vpack.c.b16 %v1680, %v2326
    %v2359 = vpack.c.b16 %v1682, %v2327
    %v2360 = vpack.c.b16 %v1684, %v2328
    %v2361 = vpack.c.b16 %v1686, %v2329
    %v2362 = vpack.c.b16 %v1688, %v2330
    %v2363 = vpack.c.b16 %v1690, %v2331
    %vm2364 = vcmask 1046528
    %v2365 = vrot.slane %v2332, 1
    %v2366 = vrot.slane %v1787, 1
    %v2367 = vsel %vm2364, %v2365, %v2366
    %v2368 = vrot.slane %v2333, 1
    %v2369 = vrot.slane %v1788, 1
    %v2370 = vsel %vm2364, %v2368, %v2369
    %v2371 = vrot.slane %v2334, 1
    %v2372 = vrot.slane %v1789, 1
    %v2373 = vsel %vm2364, %v2371, %v2372
    %v2374 = vrot.slane %v2335, 1
    %v2375 = vrot.slane %v1790, 1
    %v2376 = vsel %vm2364, %v2374, %v2375
    %v2377 = vrot.slane %v2336, 1
    %v2378 = vrot.slane %v1791, 1
    %v2379 = vsel %vm2364, %v2377, %v2378
    %v2380 = vrot.slane %v2337, 1
    %v2381 = vrot.slane %v1792, 1
    %v2382 = vsel %vm2364, %v2380, %v2381
    %v2383 = vrot.slane %v2338, 1
    %v2384 = vrot.slane %v1793, 1
    %v2385 = vsel %vm2364, %v2383, %v2384
    %v2386 = vrot.slane %v2339, 1
    %v2387 = vrot.slane %v1794, 1
    %v2388 = vsel %vm2364, %v2386, %v2387
    %v2389 = vrot.slane %v2340, 1
    %v2390 = vrot.slane %v1795, 1
    %v2391 = vsel %vm2364, %v2389, %v2390
    %v2392 = vrot.slane %v2341, 1
    %v2393 = vrot.slane %v1796, 1
    %v2394 = vsel %vm2364, %v2392, %v2393
    %v2395 = vrot.slane %v2342, 1
    %v2396 = vrot.slane %v1797, 1
    %v2397 = vsel %vm2364, %v2395, %v2396
    %v2398 = vrot.slane %v2343, 1
    %v2399 = vrot.slane %v1798, 1
    %v2400 = vsel %vm2364, %v2398, %v2399
    %v2401 = vrot.slane %v2344, 1
    %v2402 = vrot.slane %v1799, 1
    %v2403 = vsel %vm2364, %v2401, %v2402
    %v2404 = vrot.slane %v2345, 1
    %v2405 = vrot.slane %v1800, 1
    %v2406 = vsel %vm2364, %v2404, %v2405
    %v2407 = vrot.slane %v2346, 1
    %v2408 = vrot.slane %v1801, 1
    %v2409 = vsel %vm2364, %v2407, %v2408
    %v2410 = vrot.slane %v2347, 1
    %v2411 = vrot.slane %v1802, 1
    %v2412 = vsel %vm2364, %v2410, %v2411
    %v2413 = vrot.slane %v2348, 1
    %v2414 = vrot.slane %v1803, 1
    %v2415 = vsel %vm2364, %v2413, %v2414
    %v2416 = vrot.slane %v2349, 1
    %v2417 = vrot.slane %v1804, 1
    %v2418 = vsel %vm2364, %v2416, %v2417
    %v2419 = vrot.slane %v2350, 1
    %v2420 = vrot.slane %v1805, 1
    %v2421 = vsel %vm2364, %v2419, %v2420
    %v2422 = vrot.slane %v2351, 1
    %v2423 = vrot.slane %v1806, 1
    %v2424 = vsel %vm2364, %v2422, %v2423
    %v2425 = vrot.slane %v2352, 1
    %v2426 = vrot.slane %v1807, 1
    %v2427 = vsel %vm2364, %v2425, %v2426
    %v2428 = vrot.slane %v2353, 1
    %v2429 = vrot.slane %v1808, 1
    %v2430 = vsel %vm2364, %v2428, %v2429
    %v2431 = vrot.slane %v2354, 1
    %v2432 = vrot.slane %v1809, 1
    %v2433 = vsel %vm2364, %v2431, %v2432
    %v2434 = vrot.slane %v2355, 1
    %v2435 = vrot.slane %v1810, 1
    %v2436 = vsel %vm2364, %v2434, %v2435
    %v2437 = vrot.slane %v2356, 1
    %v2438 = vrot.slane %v1811, 1
    %v2439 = vsel %vm2364, %v2437, %v2438
    %v2440 = vrot.slane %v2357, 1
    %v2441 = vrot.slane %v1812, 1
    %v2442 = vsel %vm2364, %v2440, %v2441
    %v2443 = vrot.slane %v2358, 1
    %v2444 = vrot.slane %v1813, 1
    %v2445 = vsel %vm2364, %v2443, %v2444
    %v2446 = vrot.slane %v2359, 1
    %v2447 = vrot.slane %v1814, 1
    %v2448 = vsel %vm2364, %v2446, %v2447
    %v2449 = vrot.slane %v2360, 1
    %v2450 = vrot.slane %v1815, 1
    %v2451 = vsel %vm2364, %v2449, %v2450
    %v2452 = vrot.slane %v2361, 1
    %v2453 = vrot.slane %v1816, 1
    %v2454 = vsel %vm2364, %v2452, %v2453
    %v2455 = vrot.slane %v2362, 1
    %v2456 = vrot.slane %v1817, 1
    %v2457 = vsel %vm2364, %v2455, %v2456
    %v2458 = vrot.slane %v2363, 1
    %v2459 = vrot.slane %v1818, 1
    %v2460 = vsel %vm2364, %v2458, %v2459
    %2461 = vrot.lane.b32.xlu0 %v2367, 32
    %v2462 = vpop.permute.xlu0 %2461
    %2463 = vrot.lane.b32.xlu0 %v2370, 32
    %v2464 = vpop.permute.xlu0 %2463
    %2465 = vrot.lane.b32.xlu0 %v2373, 32
    %v2466 = vpop.permute.xlu0 %2465
    %2467 = vrot.lane.b32.xlu0 %v2376, 32
    %v2468 = vpop.permute.xlu0 %2467
    %2469 = vrot.lane.b32.xlu0 %v2379, 32
    %v2470 = vpop.permute.xlu0 %2469
    %2471 = vrot.lane.b32.xlu0 %v2382, 32
    %v2472 = vpop.permute.xlu0 %2471
    %2473 = vrot.lane.b32.xlu0 %v2385, 32
    %v2474 = vpop.permute.xlu0 %2473
    %2475 = vrot.lane.b32.xlu0 %v2388, 32
    %v2476 = vpop.permute.xlu0 %2475
    %2477 = vrot.lane.b32.xlu0 %v2391, 32
    %v2478 = vpop.permute.xlu0 %2477
    %2479 = vrot.lane.b32.xlu0 %v2394, 32
    %v2480 = vpop.permute.xlu0 %2479
    %2481 = vrot.lane.b32.xlu0 %v2397, 32
    %v2482 = vpop.permute.xlu0 %2481
    %2483 = vrot.lane.b32.xlu0 %v2400, 32
    %v2484 = vpop.permute.xlu0 %2483
    %2485 = vrot.lane.b32.xlu0 %v2403, 32
    %v2486 = vpop.permute.xlu0 %2485
    %2487 = vrot.lane.b32.xlu0 %v2406, 32
    %v2488 = vpop.permute.xlu0 %2487
    %2489 = vrot.lane.b32.xlu0 %v2409, 32
    %v2490 = vpop.permute.xlu0 %2489
    %2491 = vrot.lane.b32.xlu0 %v2412, 32
    %v2492 = vpop.permute.xlu0 %2491
    %2493 = vrot.lane.b32.xlu0 %v2415, 32
    %v2494 = vpop.permute.xlu0 %2493
    %2495 = vrot.lane.b32.xlu0 %v2418, 32
    %v2496 = vpop.permute.xlu0 %2495
    %2497 = vrot.lane.b32.xlu0 %v2421, 32
    %v2498 = vpop.permute.xlu0 %2497
    %2499 = vrot.lane.b32.xlu0 %v2424, 32
    %v2500 = vpop.permute.xlu0 %2499
    %2501 = vrot.lane.b32.xlu0 %v2427, 32
    %v2502 = vpop.permute.xlu0 %2501
    %2503 = vrot.lane.b32.xlu0 %v2430, 32
    %v2504 = vpop.permute.xlu0 %2503
    %2505 = vrot.lane.b32.xlu0 %v2433, 32
    %v2506 = vpop.permute.xlu0 %2505
    %2507 = vrot.lane.b32.xlu0 %v2436, 32
    %v2508 = vpop.permute.xlu0 %2507
    %2509 = vrot.lane.b32.xlu0 %v2439, 32
    %v2510 = vpop.permute.xlu0 %2509
    %2511 = vrot.lane.b32.xlu0 %v2442, 32
    %v2512 = vpop.permute.xlu0 %2511
    %2513 = vrot.lane.b32.xlu0 %v2445, 32
    %v2514 = vpop.permute.xlu0 %2513
    %2515 = vrot.lane.b32.xlu0 %v2448, 32
    %v2516 = vpop.permute.xlu0 %2515
    %2517 = vrot.lane.b32.xlu0 %v2451, 32
    %v2518 = vpop.permute.xlu0 %2517
    %2519 = vrot.lane.b32.xlu0 %v2454, 32
    %v2520 = vpop.permute.xlu0 %2519
    %2521 = vrot.lane.b32.xlu0 %v2457, 32
    %v2522 = vpop.permute.xlu0 %2521
    %2523 = vrot.lane.b32.xlu0 %v2460, 32
    %v2524 = vpop.permute.xlu0 %2523
    %v2589 = vunpack.c.l.b16 %v1306
    %v2590 = vunpack.c.l.b16 %v1307
    %v2591 = vunpack.c.l.b16 %v1308
    %v2592 = vunpack.c.l.b16 %v1309
    %v2593 = vunpack.c.l.b16 %v1310
    %v2594 = vunpack.c.l.b16 %v1311
    %v2595 = vunpack.c.l.b16 %v1312
    %v2596 = vunpack.c.l.b16 %v1313
    %v2597 = vunpack.c.l.b16 %v1314
    %v2598 = vunpack.c.l.b16 %v1315
    %v2599 = vunpack.c.l.b16 %v1316
    %v2600 = vunpack.c.l.b16 %v1317
    %v2601 = vunpack.c.l.b16 %v1318
    %v2602 = vunpack.c.l.b16 %v1319
    %v2603 = vunpack.c.l.b16 %v1320
    %v2604 = vunpack.c.l.b16 %v1321
    %v2605 = vunpack.c.l.b16 %v1322
    %v2606 = vunpack.c.l.b16 %v1323
    %v2607 = vunpack.c.l.b16 %v1324
    %v2608 = vunpack.c.l.b16 %v1325
    %v2609 = vunpack.c.l.b16 %v1326
    %v2610 = vunpack.c.l.b16 %v1327
    %v2611 = vunpack.c.l.b16 %v1328
    %v2612 = vunpack.c.l.b16 %v1329
    %v2613 = vunpack.c.l.b16 %v1330
    %v2614 = vunpack.c.l.b16 %v1331
    %v2615 = vunpack.c.l.b16 %v1332
    %v2616 = vunpack.c.l.b16 %v1333
    %v2617 = vunpack.c.l.b16 %v1334
    %v2618 = vunpack.c.l.b16 %v1335
    %v2619 = vunpack.c.l.b16 %v1336
    %v2620 = vunpack.c.l.b16 %v1337
    %v2621 = vunpack.c.l.b16 %v1338
    %v2622 = vunpack.c.l.b16 %v1339
    %v2623 = vunpack.c.l.b16 %v1340
    %v2624 = vunpack.c.l.b16 %v1341
    %v2625 = vunpack.c.l.b16 %v1342
    %v2626 = vunpack.c.l.b16 %v1343
    %v2627 = vunpack.c.l.b16 %v1344
    %v2628 = vunpack.c.l.b16 %v1345
    %v2629 = vunpack.c.l.b16 %v1346
    %v2630 = vunpack.c.l.b16 %v1347
    %v2631 = vunpack.c.l.b16 %v1348
    %v2632 = vunpack.c.l.b16 %v1349
    %v2633 = vunpack.c.l.b16 %v1350
    %v2634 = vunpack.c.l.b16 %v1351
    %v2635 = vunpack.c.l.b16 %v1352
    %v2636 = vunpack.c.l.b16 %v1353
    %v2637 = vunpack.c.l.b16 %v1354
    %v2638 = vunpack.c.l.b16 %v1355
    %v2639 = vunpack.c.l.b16 %v1356
    %v2640 = vunpack.c.l.b16 %v1357
    %v2641 = vunpack.c.l.b16 %v1358
    %v2642 = vunpack.c.l.b16 %v1359
    %v2643 = vunpack.c.l.b16 %v1360
    %v2644 = vunpack.c.l.b16 %v1361
    %v2645 = vunpack.c.l.b16 %v1362
    %v2646 = vunpack.c.l.b16 %v1363
    %v2647 = vunpack.c.l.b16 %v1364
    %v2648 = vunpack.c.l.b16 %v1365
    %v2649 = vunpack.c.l.b16 %v1366
    %v2650 = vunpack.c.l.b16 %v1367
    %v2651 = vunpack.c.l.b16 %v1368
    %v2652 = vunpack.c.l.b16 %v1369
    %v2653 = vpack.c.b16 %v2590, %v2589
    %v2654 = vpack.c.b16 %v2592, %v2591
    %v2655 = vpack.c.b16 %v2594, %v2593
    %v2656 = vpack.c.b16 %v2596, %v2595
    %v2657 = vpack.c.b16 %v2598, %v2597
    %v2658 = vpack.c.b16 %v2600, %v2599
    %v2659 = vpack.c.b16 %v2602, %v2601
    %v2660 = vpack.c.b16 %v2604, %v2603
    %v2661 = vpack.c.b16 %v2606, %v2605
    %v2662 = vpack.c.b16 %v2608, %v2607
    %v2663 = vpack.c.b16 %v2610, %v2609
    %v2664 = vpack.c.b16 %v2612, %v2611
    %v2665 = vpack.c.b16 %v2614, %v2613
    %v2666 = vpack.c.b16 %v2616, %v2615
    %v2667 = vpack.c.b16 %v2618, %v2617
    %v2668 = vpack.c.b16 %v2620, %v2619
    %v2669 = vpack.c.b16 %v2622, %v2621
    %v2670 = vpack.c.b16 %v2624, %v2623
    %v2671 = vpack.c.b16 %v2626, %v2625
    %v2672 = vpack.c.b16 %v2628, %v2627
    %v2673 = vpack.c.b16 %v2630, %v2629
    %v2674 = vpack.c.b16 %v2632, %v2631
    %v2675 = vpack.c.b16 %v2634, %v2633
    %v2676 = vpack.c.b16 %v2636, %v2635
    %v2677 = vpack.c.b16 %v2638, %v2637
    %v2678 = vpack.c.b16 %v2640, %v2639
    %v2679 = vpack.c.b16 %v2642, %v2641
    %v2680 = vpack.c.b16 %v2644, %v2643
    %v2681 = vpack.c.b16 %v2646, %v2645
    %v2682 = vpack.c.b16 %v2648, %v2647
    %v2683 = vpack.c.b16 %v2650, %v2649
    %v2684 = vpack.c.b16 %v2652, %v2651
    %2685 = vrot.lane.b32.xlu0 %v2653, 48
    %v2686 = vpop.permute.xlu0 %2685
    %2687 = vrot.lane.b32.xlu0 %v2654, 48
    %v2688 = vpop.permute.xlu0 %2687
    %2689 = vrot.lane.b32.xlu0 %v2655, 48
    %v2690 = vpop.permute.xlu0 %2689
    %2691 = vrot.lane.b32.xlu0 %v2656, 48
    %v2692 = vpop.permute.xlu0 %2691
    %2693 = vrot.lane.b32.xlu0 %v2657, 48
    %v2694 = vpop.permute.xlu0 %2693
    %2695 = vrot.lane.b32.xlu0 %v2658, 48
    %v2696 = vpop.permute.xlu0 %2695
    %2697 = vrot.lane.b32.xlu0 %v2659, 48
    %v2698 = vpop.permute.xlu0 %2697
    %2699 = vrot.lane.b32.xlu0 %v2660, 48
    %v2700 = vpop.permute.xlu0 %2699
    %2701 = vrot.lane.b32.xlu0 %v2661, 48
    %v2702 = vpop.permute.xlu0 %2701
    %2703 = vrot.lane.b32.xlu0 %v2662, 48
    %v2704 = vpop.permute.xlu0 %2703
    %2705 = vrot.lane.b32.xlu0 %v2663, 48
    %v2706 = vpop.permute.xlu0 %2705
    %2707 = vrot.lane.b32.xlu0 %v2664, 48
    %v2708 = vpop.permute.xlu0 %2707
    %2709 = vrot.lane.b32.xlu0 %v2665, 48
    %v2710 = vpop.permute.xlu0 %2709
    %2711 = vrot.lane.b32.xlu0 %v2666, 48
    %v2712 = vpop.permute.xlu0 %2711
    %2713 = vrot.lane.b32.xlu0 %v2667, 48
    %v2714 = vpop.permute.xlu0 %2713
    %2715 = vrot.lane.b32.xlu0 %v2668, 48
    %v2716 = vpop.permute.xlu0 %2715
    %2717 = vrot.lane.b32.xlu0 %v2669, 48
    %v2718 = vpop.permute.xlu0 %2717
    %2719 = vrot.lane.b32.xlu0 %v2670, 48
    %v2720 = vpop.permute.xlu0 %2719
    %2721 = vrot.lane.b32.xlu0 %v2671, 48
    %v2722 = vpop.permute.xlu0 %2721
    %2723 = vrot.lane.b32.xlu0 %v2672, 48
    %v2724 = vpop.permute.xlu0 %2723
    %2725 = vrot.lane.b32.xlu0 %v2673, 48
    %v2726 = vpop.permute.xlu0 %2725
    %2727 = vrot.lane.b32.xlu0 %v2674, 48
    %v2728 = vpop.permute.xlu0 %2727
    %2729 = vrot.lane.b32.xlu0 %v2675, 48
    %v2730 = vpop.permute.xlu0 %2729
    %2731 = vrot.lane.b32.xlu0 %v2676, 48
    %v2732 = vpop.permute.xlu0 %2731
    %2733 = vrot.lane.b32.xlu0 %v2677, 48
    %v2734 = vpop.permute.xlu0 %2733
    %2735 = vrot.lane.b32.xlu0 %v2678, 48
    %v2736 = vpop.permute.xlu0 %2735
    %2737 = vrot.lane.b32.xlu0 %v2679, 48
    %v2738 = vpop.permute.xlu0 %2737
    %2739 = vrot.lane.b32.xlu0 %v2680, 48
    %v2740 = vpop.permute.xlu0 %2739
    %2741 = vrot.lane.b32.xlu0 %v2681, 48
    %v2742 = vpop.permute.xlu0 %2741
    %2743 = vrot.lane.b32.xlu0 %v2682, 48
    %v2744 = vpop.permute.xlu0 %2743
    %2745 = vrot.lane.b32.xlu0 %v2683, 48
    %v2746 = vpop.permute.xlu0 %2745
    %2747 = vrot.lane.b32.xlu0 %v2684, 48
    %v2748 = vpop.permute.xlu0 %2747
    %v2781 = vunpack.c.l.b16 %v1370
    %v2782 = vunpack.c.l.b16 %v1371
    %v2783 = vunpack.c.l.b16 %v1372
    %v2784 = vunpack.c.l.b16 %v1373
    %v2785 = vunpack.c.l.b16 %v1374
    %v2786 = vunpack.c.l.b16 %v1375
    %v2787 = vunpack.c.l.b16 %v1376
    %v2788 = vunpack.c.l.b16 %v1377
    %v2789 = vunpack.c.l.b16 %v1378
    %v2790 = vunpack.c.l.b16 %v1379
    %v2791 = vunpack.c.l.b16 %v1380
    %v2792 = vunpack.c.l.b16 %v1381
    %v2793 = vunpack.c.l.b16 %v1382
    %v2794 = vunpack.c.l.b16 %v1383
    %v2795 = vunpack.c.l.b16 %v1384
    %v2796 = vunpack.c.l.b16 %v1385
    %v2797 = vunpack.c.l.b16 %v1386
    %v2798 = vunpack.c.l.b16 %v1387
    %v2799 = vunpack.c.l.b16 %v1388
    %v2800 = vunpack.c.l.b16 %v1389
    %v2801 = vunpack.c.l.b16 %v1390
    %v2802 = vunpack.c.l.b16 %v1391
    %v2803 = vunpack.c.l.b16 %v1392
    %v2804 = vunpack.c.l.b16 %v1393
    %v2805 = vunpack.c.l.b16 %v1394
    %v2806 = vunpack.c.l.b16 %v1395
    %v2807 = vunpack.c.l.b16 %v1396
    %v2808 = vunpack.c.l.b16 %v1397
    %v2809 = vunpack.c.l.b16 %v1398
    %v2810 = vunpack.c.l.b16 %v1399
    %v2811 = vunpack.c.l.b16 %v1400
    %v2812 = vunpack.c.l.b16 %v1401
    %v2813 = vpack.c.b16 %v2781, %v2781
    %v2814 = vpack.c.b16 %v2782, %v2782
    %v2815 = vpack.c.b16 %v2783, %v2783
    %v2816 = vpack.c.b16 %v2784, %v2784
    %v2817 = vpack.c.b16 %v2785, %v2785
    %v2818 = vpack.c.b16 %v2786, %v2786
    %v2819 = vpack.c.b16 %v2787, %v2787
    %v2820 = vpack.c.b16 %v2788, %v2788
    %v2821 = vpack.c.b16 %v2789, %v2789
    %v2822 = vpack.c.b16 %v2790, %v2790
    %v2823 = vpack.c.b16 %v2791, %v2791
    %v2824 = vpack.c.b16 %v2792, %v2792
    %v2825 = vpack.c.b16 %v2793, %v2793
    %v2826 = vpack.c.b16 %v2794, %v2794
    %v2827 = vpack.c.b16 %v2795, %v2795
    %v2828 = vpack.c.b16 %v2796, %v2796
    %v2829 = vpack.c.b16 %v2797, %v2797
    %v2830 = vpack.c.b16 %v2798, %v2798
    %v2831 = vpack.c.b16 %v2799, %v2799
    %v2832 = vpack.c.b16 %v2800, %v2800
    %v2833 = vpack.c.b16 %v2801, %v2801
    %v2834 = vpack.c.b16 %v2802, %v2802
    %v2835 = vpack.c.b16 %v2803, %v2803
    %v2836 = vpack.c.b16 %v2804, %v2804
    %v2837 = vpack.c.b16 %v2805, %v2805
    %v2838 = vpack.c.b16 %v2806, %v2806
    %v2839 = vpack.c.b16 %v2807, %v2807
    %v2840 = vpack.c.b16 %v2808, %v2808
    %v2841 = vpack.c.b16 %v2809, %v2809
    %v2842 = vpack.c.b16 %v2810, %v2810
    %v2843 = vpack.c.b16 %v2811, %v2811
    %v2844 = vpack.c.b16 %v2812, %v2812
    %v2846 = vshrl.u32 %v2653, 16
    %v2848 = vshll.u32 %v2653, 16
    %v2850 = vrot.slane %v2848, 1
    %v2851 = vor.u32 %v2846, %v2850
    %v2853 = vshll.u32 %v2813, 16
    %v2855 = vrot.slane %v2853, 1
    %v2856 = vsel %vm1819, %v2851, %v2855
    %v2858 = vshrl.u32 %v2654, 16
    %v2860 = vshll.u32 %v2654, 16
    %v2862 = vrot.slane %v2860, 1
    %v2863 = vor.u32 %v2858, %v2862
    %v2865 = vshll.u32 %v2814, 16
    %v2867 = vrot.slane %v2865, 1
    %v2868 = vsel %vm1819, %v2863, %v2867
    %v2870 = vshrl.u32 %v2655, 16
    %v2872 = vshll.u32 %v2655, 16
    %v2874 = vrot.slane %v2872, 1
    %v2875 = vor.u32 %v2870, %v2874
    %v2877 = vshll.u32 %v2815, 16
    %v2879 = vrot.slane %v2877, 1
    %v2880 = vsel %vm1819, %v2875, %v2879
    %v2882 = vshrl.u32 %v2656, 16
    %v2884 = vshll.u32 %v2656, 16
    %v2886 = vrot.slane %v2884, 1
    %v2887 = vor.u32 %v2882, %v2886
    %v2889 = vshll.u32 %v2816, 16
    %v2891 = vrot.slane %v2889, 1
    %v2892 = vsel %vm1819, %v2887, %v2891
    %v2894 = vshrl.u32 %v2657, 16
    %v2896 = vshll.u32 %v2657, 16
    %v2898 = vrot.slane %v2896, 1
    %v2899 = vor.u32 %v2894, %v2898
    %v2901 = vshll.u32 %v2817, 16
    %v2903 = vrot.slane %v2901, 1
    %v2904 = vsel %vm1819, %v2899, %v2903
    %v2906 = vshrl.u32 %v2658, 16
    %v2908 = vshll.u32 %v2658, 16
    %v2910 = vrot.slane %v2908, 1
    %v2911 = vor.u32 %v2906, %v2910
    %v2913 = vshll.u32 %v2818, 16
    %v2915 = vrot.slane %v2913, 1
    %v2916 = vsel %vm1819, %v2911, %v2915
    %v2918 = vshrl.u32 %v2659, 16
    %v2920 = vshll.u32 %v2659, 16
    %v2922 = vrot.slane %v2920, 1
    %v2923 = vor.u32 %v2918, %v2922
    %v2925 = vshll.u32 %v2819, 16
    %v2927 = vrot.slane %v2925, 1
    %v2928 = vsel %vm1819, %v2923, %v2927
    %v2930 = vshrl.u32 %v2660, 16
    %v2932 = vshll.u32 %v2660, 16
    %v2934 = vrot.slane %v2932, 1
    %v2935 = vor.u32 %v2930, %v2934
    %v2937 = vshll.u32 %v2820, 16
    %v2939 = vrot.slane %v2937, 1
    %v2940 = vsel %vm1819, %v2935, %v2939
    %v2942 = vshrl.u32 %v2661, 16
    %v2944 = vshll.u32 %v2661, 16
    %v2946 = vrot.slane %v2944, 1
    %v2947 = vor.u32 %v2942, %v2946
    %v2949 = vshll.u32 %v2821, 16
    %v2951 = vrot.slane %v2949, 1
    %v2952 = vsel %vm1819, %v2947, %v2951
    %v2954 = vshrl.u32 %v2662, 16
    %v2956 = vshll.u32 %v2662, 16
    %v2958 = vrot.slane %v2956, 1
    %v2959 = vor.u32 %v2954, %v2958
    %v2961 = vshll.u32 %v2822, 16
    %v2963 = vrot.slane %v2961, 1
    %v2964 = vsel %vm1819, %v2959, %v2963
    %v2966 = vshrl.u32 %v2663, 16
    %v2968 = vshll.u32 %v2663, 16
    %v2970 = vrot.slane %v2968, 1
    %v2971 = vor.u32 %v2966, %v2970
    %v2973 = vshll.u32 %v2823, 16
    %v2975 = vrot.slane %v2973, 1
    %v2976 = vsel %vm1819, %v2971, %v2975
    %v2978 = vshrl.u32 %v2664, 16
    %v2980 = vshll.u32 %v2664, 16
    %v2982 = vrot.slane %v2980, 1
    %v2983 = vor.u32 %v2978, %v2982
    %v2985 = vshll.u32 %v2824, 16
    %v2987 = vrot.slane %v2985, 1
    %v2988 = vsel %vm1819, %v2983, %v2987
    %v2990 = vshrl.u32 %v2665, 16
    %v2992 = vshll.u32 %v2665, 16
    %v2994 = vrot.slane %v2992, 1
    %v2995 = vor.u32 %v2990, %v2994
    %v2997 = vshll.u32 %v2825, 16
    %v2999 = vrot.slane %v2997, 1
    %v3000 = vsel %vm1819, %v2995, %v2999
    %v3002 = vshrl.u32 %v2666, 16
    %v3004 = vshll.u32 %v2666, 16
    %v3006 = vrot.slane %v3004, 1
    %v3007 = vor.u32 %v3002, %v3006
    %v3009 = vshll.u32 %v2826, 16
    %v3011 = vrot.slane %v3009, 1
    %v3012 = vsel %vm1819, %v3007, %v3011
    %v3014 = vshrl.u32 %v2667, 16
    %v3016 = vshll.u32 %v2667, 16
    %v3018 = vrot.slane %v3016, 1
    %v3019 = vor.u32 %v3014, %v3018
    %v3021 = vshll.u32 %v2827, 16
    %v3023 = vrot.slane %v3021, 1
    %v3024 = vsel %vm1819, %v3019, %v3023
    %v3026 = vshrl.u32 %v2668, 16
    %v3028 = vshll.u32 %v2668, 16
    %v3030 = vrot.slane %v3028, 1
    %v3031 = vor.u32 %v3026, %v3030
    %v3033 = vshll.u32 %v2828, 16
    %v3035 = vrot.slane %v3033, 1
    %v3036 = vsel %vm1819, %v3031, %v3035
    %v3038 = vshrl.u32 %v2669, 16
    %v3040 = vshll.u32 %v2669, 16
    %v3042 = vrot.slane %v3040, 1
    %v3043 = vor.u32 %v3038, %v3042
    %v3045 = vshll.u32 %v2829, 16
    %v3047 = vrot.slane %v3045, 1
    %v3048 = vsel %vm1819, %v3043, %v3047
    %v3050 = vshrl.u32 %v2670, 16
    %v3052 = vshll.u32 %v2670, 16
    %v3054 = vrot.slane %v3052, 1
    %v3055 = vor.u32 %v3050, %v3054
    %v3057 = vshll.u32 %v2830, 16
    %v3059 = vrot.slane %v3057, 1
    %v3060 = vsel %vm1819, %v3055, %v3059
    %v3062 = vshrl.u32 %v2671, 16
    %v3064 = vshll.u32 %v2671, 16
    %v3066 = vrot.slane %v3064, 1
    %v3067 = vor.u32 %v3062, %v3066
    %v3069 = vshll.u32 %v2831, 16
    %v3071 = vrot.slane %v3069, 1
    %v3072 = vsel %vm1819, %v3067, %v3071
    %v3074 = vshrl.u32 %v2672, 16
    %v3076 = vshll.u32 %v2672, 16
    %v3078 = vrot.slane %v3076, 1
    %v3079 = vor.u32 %v3074, %v3078
    %v3081 = vshll.u32 %v2832, 16
    %v3083 = vrot.slane %v3081, 1
    %v3084 = vsel %vm1819, %v3079, %v3083
    %v3086 = vshrl.u32 %v2673, 16
    %v3088 = vshll.u32 %v2673, 16
    %v3090 = vrot.slane %v3088, 1
    %v3091 = vor.u32 %v3086, %v3090
    %v3093 = vshll.u32 %v2833, 16
    %v3095 = vrot.slane %v3093, 1
    %v3096 = vsel %vm1819, %v3091, %v3095
    %v3098 = vshrl.u32 %v2674, 16
    %v3100 = vshll.u32 %v2674, 16
    %v3102 = vrot.slane %v3100, 1
    %v3103 = vor.u32 %v3098, %v3102
    %v3105 = vshll.u32 %v2834, 16
    %v3107 = vrot.slane %v3105, 1
    %v3108 = vsel %vm1819, %v3103, %v3107
    %v3110 = vshrl.u32 %v2675, 16
    %v3112 = vshll.u32 %v2675, 16
    %v3114 = vrot.slane %v3112, 1
    %v3115 = vor.u32 %v3110, %v3114
    %v3117 = vshll.u32 %v2835, 16
    %v3119 = vrot.slane %v3117, 1
    %v3120 = vsel %vm1819, %v3115, %v3119
    %v3122 = vshrl.u32 %v2676, 16
    %v3124 = vshll.u32 %v2676, 16
    %v3126 = vrot.slane %v3124, 1
    %v3127 = vor.u32 %v3122, %v3126
    %v3129 = vshll.u32 %v2836, 16
    %v3131 = vrot.slane %v3129, 1
    %v3132 = vsel %vm1819, %v3127, %v3131
    %v3134 = vshrl.u32 %v2677, 16
    %v3136 = vshll.u32 %v2677, 16
    %v3138 = vrot.slane %v3136, 1
    %v3139 = vor.u32 %v3134, %v3138
    %v3141 = vshll.u32 %v2837, 16
    %v3143 = vrot.slane %v3141, 1
    %v3144 = vsel %vm1819, %v3139, %v3143
    %v3146 = vshrl.u32 %v2678, 16
    %v3148 = vshll.u32 %v2678, 16
    %v3150 = vrot.slane %v3148, 1
    %v3151 = vor.u32 %v3146, %v3150
    %v3153 = vshll.u32 %v2838, 16
    %v3155 = vrot.slane %v3153, 1
    %v3156 = vsel %vm1819, %v3151, %v3155
    %v3158 = vshrl.u32 %v2679, 16
    %v3160 = vshll.u32 %v2679, 16
    %v3162 = vrot.slane %v3160, 1
    %v3163 = vor.u32 %v3158, %v3162
    %v3165 = vshll.u32 %v2839, 16
    %v3167 = vrot.slane %v3165, 1
    %v3168 = vsel %vm1819, %v3163, %v3167
    %v3170 = vshrl.u32 %v2680, 16
    %v3172 = vshll.u32 %v2680, 16
    %v3174 = vrot.slane %v3172, 1
    %v3175 = vor.u32 %v3170, %v3174
    %v3177 = vshll.u32 %v2840, 16
    %v3179 = vrot.slane %v3177, 1
    %v3180 = vsel %vm1819, %v3175, %v3179
    %v3182 = vshrl.u32 %v2681, 16
    %v3184 = vshll.u32 %v2681, 16
    %v3186 = vrot.slane %v3184, 1
    %v3187 = vor.u32 %v3182, %v3186
    %v3189 = vshll.u32 %v2841, 16
    %v3191 = vrot.slane %v3189, 1
    %v3192 = vsel %vm1819, %v3187, %v3191
    %v3194 = vshrl.u32 %v2682, 16
    %v3196 = vshll.u32 %v2682, 16
    %v3198 = vrot.slane %v3196, 1
    %v3199 = vor.u32 %v3194, %v3198
    %v3201 = vshll.u32 %v2842, 16
    %v3203 = vrot.slane %v3201, 1
    %v3204 = vsel %vm1819, %v3199, %v3203
    %v3206 = vshrl.u32 %v2683, 16
    %v3208 = vshll.u32 %v2683, 16
    %v3210 = vrot.slane %v3208, 1
    %v3211 = vor.u32 %v3206, %v3210
    %v3213 = vshll.u32 %v2843, 16
    %v3215 = vrot.slane %v3213, 1
    %v3216 = vsel %vm1819, %v3211, %v3215
    %v3218 = vshrl.u32 %v2684, 16
    %v3220 = vshll.u32 %v2684, 16
    %v3222 = vrot.slane %v3220, 1
    %v3223 = vor.u32 %v3218, %v3222
    %v3225 = vshll.u32 %v2844, 16
    %v3227 = vrot.slane %v3225, 1
    %v3228 = vsel %vm1819, %v3223, %v3227
    %3229 = vrot.lane.b32.xlu0 %v2856, 64
    %v3230 = vpop.permute.xlu0 %3229
    %3231 = vrot.lane.b32.xlu0 %v2868, 64
    %v3232 = vpop.permute.xlu0 %3231
    %3233 = vrot.lane.b32.xlu0 %v2880, 64
    %v3234 = vpop.permute.xlu0 %3233
    %3235 = vrot.lane.b32.xlu0 %v2892, 64
    %v3236 = vpop.permute.xlu0 %3235
    %3237 = vrot.lane.b32.xlu0 %v2904, 64
    %v3238 = vpop.permute.xlu0 %3237
    %3239 = vrot.lane.b32.xlu0 %v2916, 64
    %v3240 = vpop.permute.xlu0 %3239
    %3241 = vrot.lane.b32.xlu0 %v2928, 64
    %v3242 = vpop.permute.xlu0 %3241
    %3243 = vrot.lane.b32.xlu0 %v2940, 64
    %v3244 = vpop.permute.xlu0 %3243
    %3245 = vrot.lane.b32.xlu0 %v2952, 64
    %v3246 = vpop.permute.xlu0 %3245
    %3247 = vrot.lane.b32.xlu0 %v2964, 64
    %v3248 = vpop.permute.xlu0 %3247
    %3249 = vrot.lane.b32.xlu0 %v2976, 64
    %v3250 = vpop.permute.xlu0 %3249
    %3251 = vrot.lane.b32.xlu0 %v2988, 64
    %v3252 = vpop.permute.xlu0 %3251
    %3253 = vrot.lane.b32.xlu0 %v3000, 64
    %v3254 = vpop.permute.xlu0 %3253
    %3255 = vrot.lane.b32.xlu0 %v3012, 64
    %v3256 = vpop.permute.xlu0 %3255
    %3257 = vrot.lane.b32.xlu0 %v3024, 64
    %v3258 = vpop.permute.xlu0 %3257
    %3259 = vrot.lane.b32.xlu0 %v3036, 64
    %v3260 = vpop.permute.xlu0 %3259
    %3261 = vrot.lane.b32.xlu0 %v3048, 64
    %v3262 = vpop.permute.xlu0 %3261
    %3263 = vrot.lane.b32.xlu0 %v3060, 64
    %v3264 = vpop.permute.xlu0 %3263
    %3265 = vrot.lane.b32.xlu0 %v3072, 64
    %v3266 = vpop.permute.xlu0 %3265
    %3267 = vrot.lane.b32.xlu0 %v3084, 64
    %v3268 = vpop.permute.xlu0 %3267
    %3269 = vrot.lane.b32.xlu0 %v3096, 64
    %v3270 = vpop.permute.xlu0 %3269
    %3271 = vrot.lane.b32.xlu0 %v3108, 64
    %v3272 = vpop.permute.xlu0 %3271
    %3273 = vrot.lane.b32.xlu0 %v3120, 64
    %v3274 = vpop.permute.xlu0 %3273
    %3275 = vrot.lane.b32.xlu0 %v3132, 64
    %v3276 = vpop.permute.xlu0 %3275
    %3277 = vrot.lane.b32.xlu0 %v3144, 64
    %v3278 = vpop.permute.xlu0 %3277
    %3279 = vrot.lane.b32.xlu0 %v3156, 64
    %v3280 = vpop.permute.xlu0 %3279
    %3281 = vrot.lane.b32.xlu0 %v3168, 64
    %v3282 = vpop.permute.xlu0 %3281
    %3283 = vrot.lane.b32.xlu0 %v3180, 64
    %v3284 = vpop.permute.xlu0 %3283
    %3285 = vrot.lane.b32.xlu0 %v3192, 64
    %v3286 = vpop.permute.xlu0 %3285
    %3287 = vrot.lane.b32.xlu0 %v3204, 64
    %v3288 = vpop.permute.xlu0 %3287
    %3289 = vrot.lane.b32.xlu0 %v3216, 64
    %v3290 = vpop.permute.xlu0 %3289
    %3291 = vrot.lane.b32.xlu0 %v3228, 64
    %v3292 = vpop.permute.xlu0 %3291
    %v3325 = vunpack.c.l.b16 %v1402
    %v3326 = vunpack.c.l.b16 %v1403
    %v3327 = vunpack.c.l.b16 %v1404
    %v3328 = vunpack.c.l.b16 %v1405
    %v3329 = vunpack.c.l.b16 %v1406
    %v3330 = vunpack.c.l.b16 %v1407
    %v3331 = vunpack.c.l.b16 %v1408
    %v3332 = vunpack.c.l.b16 %v1409
    %v3333 = vunpack.c.l.b16 %v1410
    %v3334 = vunpack.c.l.b16 %v1411
    %v3335 = vunpack.c.l.b16 %v1412
    %v3336 = vunpack.c.l.b16 %v1413
    %v3337 = vunpack.c.l.b16 %v1414
    %v3338 = vunpack.c.l.b16 %v1415
    %v3339 = vunpack.c.l.b16 %v1416
    %v3340 = vunpack.c.l.b16 %v1417
    %v3341 = vunpack.c.l.b16 %v1418
    %v3342 = vunpack.c.l.b16 %v1419
    %v3343 = vunpack.c.l.b16 %v1420
    %v3344 = vunpack.c.l.b16 %v1421
    %v3345 = vunpack.c.l.b16 %v1422
    %v3346 = vunpack.c.l.b16 %v1423
    %v3347 = vunpack.c.l.b16 %v1424
    %v3348 = vunpack.c.l.b16 %v1425
    %v3349 = vunpack.c.l.b16 %v1426
    %v3350 = vunpack.c.l.b16 %v1427
    %v3351 = vunpack.c.l.b16 %v1428
    %v3352 = vunpack.c.l.b16 %v1429
    %v3353 = vunpack.c.l.b16 %v1430
    %v3354 = vunpack.c.l.b16 %v1431
    %v3355 = vunpack.c.l.b16 %v1432
    %v3356 = vunpack.c.l.b16 %v1433
    %v3357 = vpack.c.b16 %v2590, %v3325
    %v3358 = vpack.c.b16 %v2592, %v3326
    %v3359 = vpack.c.b16 %v2594, %v3327
    %v3360 = vpack.c.b16 %v2596, %v3328
    %v3361 = vpack.c.b16 %v2598, %v3329
    %v3362 = vpack.c.b16 %v2600, %v3330
    %v3363 = vpack.c.b16 %v2602, %v3331
    %v3364 = vpack.c.b16 %v2604, %v3332
    %v3365 = vpack.c.b16 %v2606, %v3333
    %v3366 = vpack.c.b16 %v2608, %v3334
    %v3367 = vpack.c.b16 %v2610, %v3335
    %v3368 = vpack.c.b16 %v2612, %v3336
    %v3369 = vpack.c.b16 %v2614, %v3337
    %v3370 = vpack.c.b16 %v2616, %v3338
    %v3371 = vpack.c.b16 %v2618, %v3339
    %v3372 = vpack.c.b16 %v2620, %v3340
    %v3373 = vpack.c.b16 %v2622, %v3341
    %v3374 = vpack.c.b16 %v2624, %v3342
    %v3375 = vpack.c.b16 %v2626, %v3343
    %v3376 = vpack.c.b16 %v2628, %v3344
    %v3377 = vpack.c.b16 %v2630, %v3345
    %v3378 = vpack.c.b16 %v2632, %v3346
    %v3379 = vpack.c.b16 %v2634, %v3347
    %v3380 = vpack.c.b16 %v2636, %v3348
    %v3381 = vpack.c.b16 %v2638, %v3349
    %v3382 = vpack.c.b16 %v2640, %v3350
    %v3383 = vpack.c.b16 %v2642, %v3351
    %v3384 = vpack.c.b16 %v2644, %v3352
    %v3385 = vpack.c.b16 %v2646, %v3353
    %v3386 = vpack.c.b16 %v2648, %v3354
    %v3387 = vpack.c.b16 %v2650, %v3355
    %v3388 = vpack.c.b16 %v2652, %v3356
    %v3389 = vrot.slane %v3357, 1
    %v3390 = vrot.slane %v2813, 1
    %v3391 = vsel %vm2364, %v3389, %v3390
    %v3392 = vrot.slane %v3358, 1
    %v3393 = vrot.slane %v2814, 1
    %v3394 = vsel %vm2364, %v3392, %v3393
    %v3395 = vrot.slane %v3359, 1
    %v3396 = vrot.slane %v2815, 1
    %v3397 = vsel %vm2364, %v3395, %v3396
    %v3398 = vrot.slane %v3360, 1
    %v3399 = vrot.slane %v2816, 1
    %v3400 = vsel %vm2364, %v3398, %v3399
    %v3401 = vrot.slane %v3361, 1
    %v3402 = vrot.slane %v2817, 1
    %v3403 = vsel %vm2364, %v3401, %v3402
    %v3404 = vrot.slane %v3362, 1
    %v3405 = vrot.slane %v2818, 1
    %v3406 = vsel %vm2364, %v3404, %v3405
    %v3407 = vrot.slane %v3363, 1
    %v3408 = vrot.slane %v2819, 1
    %v3409 = vsel %vm2364, %v3407, %v3408
    %v3410 = vrot.slane %v3364, 1
    %v3411 = vrot.slane %v2820, 1
    %v3412 = vsel %vm2364, %v3410, %v3411
    %v3413 = vrot.slane %v3365, 1
    %v3414 = vrot.slane %v2821, 1
    %v3415 = vsel %vm2364, %v3413, %v3414
    %v3416 = vrot.slane %v3366, 1
    %v3417 = vrot.slane %v2822, 1
    %v3418 = vsel %vm2364, %v3416, %v3417
    %v3419 = vrot.slane %v3367, 1
    %v3420 = vrot.slane %v2823, 1
    %v3421 = vsel %vm2364, %v3419, %v3420
    %v3422 = vrot.slane %v3368, 1
    %v3423 = vrot.slane %v2824, 1
    %v3424 = vsel %vm2364, %v3422, %v3423
    %v3425 = vrot.slane %v3369, 1
    %v3426 = vrot.slane %v2825, 1
    %v3427 = vsel %vm2364, %v3425, %v3426
    %v3428 = vrot.slane %v3370, 1
    %v3429 = vrot.slane %v2826, 1
    %v3430 = vsel %vm2364, %v3428, %v3429
    %v3431 = vrot.slane %v3371, 1
    %v3432 = vrot.slane %v2827, 1
    %v3433 = vsel %vm2364, %v3431, %v3432
    %v3434 = vrot.slane %v3372, 1
    %v3435 = vrot.slane %v2828, 1
    %v3436 = vsel %vm2364, %v3434, %v3435
    %v3437 = vrot.slane %v3373, 1
    %v3438 = vrot.slane %v2829, 1
    %v3439 = vsel %vm2364, %v3437, %v3438
    %v3440 = vrot.slane %v3374, 1
    %v3441 = vrot.slane %v2830, 1
    %v3442 = vsel %vm2364, %v3440, %v3441
    %v3443 = vrot.slane %v3375, 1
    %v3444 = vrot.slane %v2831, 1
    %v3445 = vsel %vm2364, %v3443, %v3444
    %v3446 = vrot.slane %v3376, 1
    %v3447 = vrot.slane %v2832, 1
    %v3448 = vsel %vm2364, %v3446, %v3447
    %v3449 = vrot.slane %v3377, 1
    %v3450 = vrot.slane %v2833, 1
    %v3451 = vsel %vm2364, %v3449, %v3450
    %v3452 = vrot.slane %v3378, 1
    %v3453 = vrot.slane %v2834, 1
    %v3454 = vsel %vm2364, %v3452, %v3453
    %v3455 = vrot.slane %v3379, 1
    %v3456 = vrot.slane %v2835, 1
    %v3457 = vsel %vm2364, %v3455, %v3456
    %v3458 = vrot.slane %v3380, 1
    %v3459 = vrot.slane %v2836, 1
    %v3460 = vsel %vm2364, %v3458, %v3459
    %v3461 = vrot.slane %v3381, 1
    %v3462 = vrot.slane %v2837, 1
    %v3463 = vsel %vm2364, %v3461, %v3462
    %v3464 = vrot.slane %v3382, 1
    %v3465 = vrot.slane %v2838, 1
    %v3466 = vsel %vm2364, %v3464, %v3465
    %v3467 = vrot.slane %v3383, 1
    %v3468 = vrot.slane %v2839, 1
    %v3469 = vsel %vm2364, %v3467, %v3468
    %v3470 = vrot.slane %v3384, 1
    %v3471 = vrot.slane %v2840, 1
    %v3472 = vsel %vm2364, %v3470, %v3471
    %v3473 = vrot.slane %v3385, 1
    %v3474 = vrot.slane %v2841, 1
    %v3475 = vsel %vm2364, %v3473, %v3474
    %v3476 = vrot.slane %v3386, 1
    %v3477 = vrot.slane %v2842, 1
    %v3478 = vsel %vm2364, %v3476, %v3477
    %v3479 = vrot.slane %v3387, 1
    %v3480 = vrot.slane %v2843, 1
    %v3481 = vsel %vm2364, %v3479, %v3480
    %v3482 = vrot.slane %v3388, 1
    %v3483 = vrot.slane %v2844, 1
    %v3484 = vsel %vm2364, %v3482, %v3483
    %3485 = vrot.lane.b32.xlu0 %v3391, 80
    %v3486 = vpop.permute.xlu0 %3485
    %3487 = vrot.lane.b32.xlu0 %v3394, 80
    %v3488 = vpop.permute.xlu0 %3487
    %3489 = vrot.lane.b32.xlu0 %v3397, 80
    %v3490 = vpop.permute.xlu0 %3489
    %3491 = vrot.lane.b32.xlu0 %v3400, 80
    %v3492 = vpop.permute.xlu0 %3491
    %3493 = vrot.lane.b32.xlu0 %v3403, 80
    %v3494 = vpop.permute.xlu0 %3493
    %3495 = vrot.lane.b32.xlu0 %v3406, 80
    %v3496 = vpop.permute.xlu0 %3495
    %3497 = vrot.lane.b32.xlu0 %v3409, 80
    %v3498 = vpop.permute.xlu0 %3497
    %3499 = vrot.lane.b32.xlu0 %v3412, 80
    %v3500 = vpop.permute.xlu0 %3499
    %3501 = vrot.lane.b32.xlu0 %v3415, 80
    %v3502 = vpop.permute.xlu0 %3501
    %3503 = vrot.lane.b32.xlu0 %v3418, 80
    %v3504 = vpop.permute.xlu0 %3503
    %3505 = vrot.lane.b32.xlu0 %v3421, 80
    %v3506 = vpop.permute.xlu0 %3505
    %3507 = vrot.lane.b32.xlu0 %v3424, 80
    %v3508 = vpop.permute.xlu0 %3507
    %3509 = vrot.lane.b32.xlu0 %v3427, 80
    %v3510 = vpop.permute.xlu0 %3509
    %3511 = vrot.lane.b32.xlu0 %v3430, 80
    %v3512 = vpop.permute.xlu0 %3511
    %3513 = vrot.lane.b32.xlu0 %v3433, 80
    %v3514 = vpop.permute.xlu0 %3513
    %3515 = vrot.lane.b32.xlu0 %v3436, 80
    %v3516 = vpop.permute.xlu0 %3515
    %3517 = vrot.lane.b32.xlu0 %v3439, 80
    %v3518 = vpop.permute.xlu0 %3517
    %3519 = vrot.lane.b32.xlu0 %v3442, 80
    %v3520 = vpop.permute.xlu0 %3519
    %3521 = vrot.lane.b32.xlu0 %v3445, 80
    %v3522 = vpop.permute.xlu0 %3521
    %3523 = vrot.lane.b32.xlu0 %v3448, 80
    %v3524 = vpop.permute.xlu0 %3523
    %3525 = vrot.lane.b32.xlu0 %v3451, 80
    %v3526 = vpop.permute.xlu0 %3525
    %3527 = vrot.lane.b32.xlu0 %v3454, 80
    %v3528 = vpop.permute.xlu0 %3527
    %3529 = vrot.lane.b32.xlu0 %v3457, 80
    %v3530 = vpop.permute.xlu0 %3529
    %3531 = vrot.lane.b32.xlu0 %v3460, 80
    %v3532 = vpop.permute.xlu0 %3531
    %3533 = vrot.lane.b32.xlu0 %v3463, 80
    %v3534 = vpop.permute.xlu0 %3533
    %3535 = vrot.lane.b32.xlu0 %v3466, 80
    %v3536 = vpop.permute.xlu0 %3535
    %3537 = vrot.lane.b32.xlu0 %v3469, 80
    %v3538 = vpop.permute.xlu0 %3537
    %3539 = vrot.lane.b32.xlu0 %v3472, 80
    %v3540 = vpop.permute.xlu0 %3539
    %3541 = vrot.lane.b32.xlu0 %v3475, 80
    %v3542 = vpop.permute.xlu0 %3541
    %3543 = vrot.lane.b32.xlu0 %v3478, 80
    %v3544 = vpop.permute.xlu0 %3543
    %3545 = vrot.lane.b32.xlu0 %v3481, 80
    %v3546 = vpop.permute.xlu0 %3545
    %3547 = vrot.lane.b32.xlu0 %v3484, 80
    %v3548 = vpop.permute.xlu0 %3547
    %v3613 = vunpack.c.l.b16 %v1435
    %v3614 = vunpack.c.l.b16 %v1436
    %v3615 = vunpack.c.l.b16 %v1437
    %v3616 = vunpack.c.l.b16 %v1438
    %v3617 = vunpack.c.l.b16 %v1439
    %v3618 = vunpack.c.l.b16 %v1440
    %v3619 = vunpack.c.l.b16 %v1441
    %v3620 = vunpack.c.l.b16 %v1442
    %v3621 = vunpack.c.l.b16 %v1443
    %v3622 = vunpack.c.l.b16 %v1444
    %v3623 = vunpack.c.l.b16 %v1445
    %v3624 = vunpack.c.l.b16 %v1446
    %v3625 = vunpack.c.l.b16 %v1447
    %v3626 = vunpack.c.l.b16 %v1448
    %v3627 = vunpack.c.l.b16 %v1449
    %v3628 = vunpack.c.l.b16 %v1450
    %v3629 = vunpack.c.l.b16 %v1451
    %v3630 = vunpack.c.l.b16 %v1452
    %v3631 = vunpack.c.l.b16 %v1453
    %v3632 = vunpack.c.l.b16 %v1454
    %v3633 = vunpack.c.l.b16 %v1455
    %v3634 = vunpack.c.l.b16 %v1456
    %v3635 = vunpack.c.l.b16 %v1457
    %v3636 = vunpack.c.l.b16 %v1458
    %v3637 = vunpack.c.l.b16 %v1459
    %v3638 = vunpack.c.l.b16 %v1460
    %v3639 = vunpack.c.l.b16 %v1461
    %v3640 = vunpack.c.l.b16 %v1462
    %v3641 = vunpack.c.l.b16 %v1463
    %v3642 = vunpack.c.l.b16 %v1464
    %v3643 = vunpack.c.l.b16 %v1465
    %v3644 = vunpack.c.l.b16 %v1466
    %v3645 = vunpack.c.l.b16 %v1467
    %v3646 = vunpack.c.l.b16 %v1468
    %v3647 = vunpack.c.l.b16 %v1469
    %v3648 = vunpack.c.l.b16 %v1470
    %v3649 = vunpack.c.l.b16 %v1471
    %v3650 = vunpack.c.l.b16 %v1472
    %v3651 = vunpack.c.l.b16 %v1473
    %v3652 = vunpack.c.l.b16 %v1474
    %v3653 = vunpack.c.l.b16 %v1475
    %v3654 = vunpack.c.l.b16 %v1476
    %v3655 = vunpack.c.l.b16 %v1477
    %v3656 = vunpack.c.l.b16 %v1478
    %v3657 = vunpack.c.l.b16 %v1479
    %v3658 = vunpack.c.l.b16 %v1480
    %v3659 = vunpack.c.l.b16 %v1481
    %v3660 = vunpack.c.l.b16 %v1482
    %v3661 = vunpack.c.l.b16 %v1483
    %v3662 = vunpack.c.l.b16 %v1484
    %v3663 = vunpack.c.l.b16 %v1485
    %v3664 = vunpack.c.l.b16 %v1486
    %v3665 = vunpack.c.l.b16 %v1487
    %v3666 = vunpack.c.l.b16 %v1488
    %v3667 = vunpack.c.l.b16 %v1489
    %v3668 = vunpack.c.l.b16 %v1490
    %v3669 = vunpack.c.l.b16 %v1491
    %v3670 = vunpack.c.l.b16 %v1492
    %v3671 = vunpack.c.l.b16 %v1493
    %v3672 = vunpack.c.l.b16 %v1494
    %v3673 = vunpack.c.l.b16 %v1495
    %v3674 = vunpack.c.l.b16 %v1496
    %v3675 = vunpack.c.l.b16 %v1497
    %v3676 = vunpack.c.l.b16 %v1498
    %v3677 = vpack.c.b16 %v3614, %v3613
    %v3678 = vpack.c.b16 %v3616, %v3615
    %v3679 = vpack.c.b16 %v3618, %v3617
    %v3680 = vpack.c.b16 %v3620, %v3619
    %v3681 = vpack.c.b16 %v3622, %v3621
    %v3682 = vpack.c.b16 %v3624, %v3623
    %v3683 = vpack.c.b16 %v3626, %v3625
    %v3684 = vpack.c.b16 %v3628, %v3627
    %v3685 = vpack.c.b16 %v3630, %v3629
    %v3686 = vpack.c.b16 %v3632, %v3631
    %v3687 = vpack.c.b16 %v3634, %v3633
    %v3688 = vpack.c.b16 %v3636, %v3635
    %v3689 = vpack.c.b16 %v3638, %v3637
    %v3690 = vpack.c.b16 %v3640, %v3639
    %v3691 = vpack.c.b16 %v3642, %v3641
    %v3692 = vpack.c.b16 %v3644, %v3643
    %v3693 = vpack.c.b16 %v3646, %v3645
    %v3694 = vpack.c.b16 %v3648, %v3647
    %v3695 = vpack.c.b16 %v3650, %v3649
    %v3696 = vpack.c.b16 %v3652, %v3651
    %v3697 = vpack.c.b16 %v3654, %v3653
    %v3698 = vpack.c.b16 %v3656, %v3655
    %v3699 = vpack.c.b16 %v3658, %v3657
    %v3700 = vpack.c.b16 %v3660, %v3659
    %v3701 = vpack.c.b16 %v3662, %v3661
    %v3702 = vpack.c.b16 %v3664, %v3663
    %v3703 = vpack.c.b16 %v3666, %v3665
    %v3704 = vpack.c.b16 %v3668, %v3667
    %v3705 = vpack.c.b16 %v3670, %v3669
    %v3706 = vpack.c.b16 %v3672, %v3671
    %v3707 = vpack.c.b16 %v3674, %v3673
    %v3708 = vpack.c.b16 %v3676, %v3675
    %3709 = vrot.lane.b32.xlu0 %v3677, 96
    %v3710 = vpop.permute.xlu0 %3709
    %3711 = vrot.lane.b32.xlu0 %v3678, 96
    %v3712 = vpop.permute.xlu0 %3711
    %3713 = vrot.lane.b32.xlu0 %v3679, 96
    %v3714 = vpop.permute.xlu0 %3713
    %3715 = vrot.lane.b32.xlu0 %v3680, 96
    %v3716 = vpop.permute.xlu0 %3715
    %3717 = vrot.lane.b32.xlu0 %v3681, 96
    %v3718 = vpop.permute.xlu0 %3717
    %3719 = vrot.lane.b32.xlu0 %v3682, 96
    %v3720 = vpop.permute.xlu0 %3719
    %3721 = vrot.lane.b32.xlu0 %v3683, 96
    %v3722 = vpop.permute.xlu0 %3721
    %3723 = vrot.lane.b32.xlu0 %v3684, 96
    %v3724 = vpop.permute.xlu0 %3723
    %3725 = vrot.lane.b32.xlu0 %v3685, 96
    %v3726 = vpop.permute.xlu0 %3725
    %3727 = vrot.lane.b32.xlu0 %v3686, 96
    %v3728 = vpop.permute.xlu0 %3727
    %3729 = vrot.lane.b32.xlu0 %v3687, 96
    %v3730 = vpop.permute.xlu0 %3729
    %3731 = vrot.lane.b32.xlu0 %v3688, 96
    %v3732 = vpop.permute.xlu0 %3731
    %3733 = vrot.lane.b32.xlu0 %v3689, 96
    %v3734 = vpop.permute.xlu0 %3733
    %3735 = vrot.lane.b32.xlu0 %v3690, 96
    %v3736 = vpop.permute.xlu0 %3735
    %3737 = vrot.lane.b32.xlu0 %v3691, 96
    %v3738 = vpop.permute.xlu0 %3737
    %3739 = vrot.lane.b32.xlu0 %v3692, 96
    %v3740 = vpop.permute.xlu0 %3739
    %3741 = vrot.lane.b32.xlu0 %v3693, 96
    %v3742 = vpop.permute.xlu0 %3741
    %3743 = vrot.lane.b32.xlu0 %v3694, 96
    %v3744 = vpop.permute.xlu0 %3743
    %3745 = vrot.lane.b32.xlu0 %v3695, 96
    %v3746 = vpop.permute.xlu0 %3745
    %3747 = vrot.lane.b32.xlu0 %v3696, 96
    %v3748 = vpop.permute.xlu0 %3747
    %3749 = vrot.lane.b32.xlu0 %v3697, 96
    %v3750 = vpop.permute.xlu0 %3749
    %3751 = vrot.lane.b32.xlu0 %v3698, 96
    %v3752 = vpop.permute.xlu0 %3751
    %3753 = vrot.lane.b32.xlu0 %v3699, 96
    %v3754 = vpop.permute.xlu0 %3753
    %3755 = vrot.lane.b32.xlu0 %v3700, 96
    %v3756 = vpop.permute.xlu0 %3755
    %3757 = vrot.lane.b32.xlu0 %v3701, 96
    %v3758 = vpop.permute.xlu0 %3757
    %3759 = vrot.lane.b32.xlu0 %v3702, 96
    %v3760 = vpop.permute.xlu0 %3759
    %3761 = vrot.lane.b32.xlu0 %v3703, 96
    %v3762 = vpop.permute.xlu0 %3761
    %3763 = vrot.lane.b32.xlu0 %v3704, 96
    %v3764 = vpop.permute.xlu0 %3763
    %3765 = vrot.lane.b32.xlu0 %v3705, 96
    %v3766 = vpop.permute.xlu0 %3765
    %3767 = vrot.lane.b32.xlu0 %v3706, 96
    %v3768 = vpop.permute.xlu0 %3767
    %3769 = vrot.lane.b32.xlu0 %v3707, 96
    %v3770 = vpop.permute.xlu0 %3769
    %3771 = vrot.lane.b32.xlu0 %v3708, 96
    %v3772 = vpop.permute.xlu0 %3771
    %v3805 = vunpack.c.l.b16 %v1499
    %v3806 = vunpack.c.l.b16 %v1500
    %v3807 = vunpack.c.l.b16 %v1501
    %v3808 = vunpack.c.l.b16 %v1502
    %v3809 = vunpack.c.l.b16 %v1503
    %v3810 = vunpack.c.l.b16 %v1504
    %v3811 = vunpack.c.l.b16 %v1505
    %v3812 = vunpack.c.l.b16 %v1506
    %v3813 = vunpack.c.l.b16 %v1507
    %v3814 = vunpack.c.l.b16 %v1508
    %v3815 = vunpack.c.l.b16 %v1509
    %v3816 = vunpack.c.l.b16 %v1510
    %v3817 = vunpack.c.l.b16 %v1511
    %v3818 = vunpack.c.l.b16 %v1512
    %v3819 = vunpack.c.l.b16 %v1513
    %v3820 = vunpack.c.l.b16 %v1514
    %v3821 = vunpack.c.l.b16 %v1515
    %v3822 = vunpack.c.l.b16 %v1516
    %v3823 = vunpack.c.l.b16 %v1517
    %v3824 = vunpack.c.l.b16 %v1518
    %v3825 = vunpack.c.l.b16 %v1519
    %v3826 = vunpack.c.l.b16 %v1520
    %v3827 = vunpack.c.l.b16 %v1521
    %v3828 = vunpack.c.l.b16 %v1522
    %v3829 = vunpack.c.l.b16 %v1523
    %v3830 = vunpack.c.l.b16 %v1524
    %v3831 = vunpack.c.l.b16 %v1525
    %v3832 = vunpack.c.l.b16 %v1526
    %v3833 = vunpack.c.l.b16 %v1527
    %v3834 = vunpack.c.l.b16 %v1528
    %v3835 = vunpack.c.l.b16 %v1529
    %v3836 = vunpack.c.l.b16 %v1530
    %v3837 = vpack.c.b16 %v3805, %v3805
    %v3838 = vpack.c.b16 %v3806, %v3806
    %v3839 = vpack.c.b16 %v3807, %v3807
    %v3840 = vpack.c.b16 %v3808, %v3808
    %v3841 = vpack.c.b16 %v3809, %v3809
    %v3842 = vpack.c.b16 %v3810, %v3810
    %v3843 = vpack.c.b16 %v3811, %v3811
    %v3844 = vpack.c.b16 %v3812, %v3812
    %v3845 = vpack.c.b16 %v3813, %v3813
    %v3846 = vpack.c.b16 %v3814, %v3814
    %v3847 = vpack.c.b16 %v3815, %v3815
    %v3848 = vpack.c.b16 %v3816, %v3816
    %v3849 = vpack.c.b16 %v3817, %v3817
    %v3850 = vpack.c.b16 %v3818, %v3818
    %v3851 = vpack.c.b16 %v3819, %v3819
    %v3852 = vpack.c.b16 %v3820, %v3820
    %v3853 = vpack.c.b16 %v3821, %v3821
    %v3854 = vpack.c.b16 %v3822, %v3822
    %v3855 = vpack.c.b16 %v3823, %v3823
    %v3856 = vpack.c.b16 %v3824, %v3824
    %v3857 = vpack.c.b16 %v3825, %v3825
    %v3858 = vpack.c.b16 %v3826, %v3826
    %v3859 = vpack.c.b16 %v3827, %v3827
    %v3860 = vpack.c.b16 %v3828, %v3828
    %v3861 = vpack.c.b16 %v3829, %v3829
    %v3862 = vpack.c.b16 %v3830, %v3830
    %v3863 = vpack.c.b16 %v3831, %v3831
    %v3864 = vpack.c.b16 %v3832, %v3832
    %v3865 = vpack.c.b16 %v3833, %v3833
    %v3866 = vpack.c.b16 %v3834, %v3834
    %v3867 = vpack.c.b16 %v3835, %v3835
    %v3868 = vpack.c.b16 %v3836, %v3836
    %v3870 = vshrl.u32 %v3677, 16
    %v3872 = vshll.u32 %v3677, 16
    %v3874 = vrot.slane %v3872, 1
    %v3875 = vor.u32 %v3870, %v3874
    %v3877 = vshll.u32 %v3837, 16
    %v3879 = vrot.slane %v3877, 1
    %v3880 = vsel %vm1819, %v3875, %v3879
    %v3882 = vshrl.u32 %v3678, 16
    %v3884 = vshll.u32 %v3678, 16
    %v3886 = vrot.slane %v3884, 1
    %v3887 = vor.u32 %v3882, %v3886
    %v3889 = vshll.u32 %v3838, 16
    %v3891 = vrot.slane %v3889, 1
    %v3892 = vsel %vm1819, %v3887, %v3891
    %v3894 = vshrl.u32 %v3679, 16
    %v3896 = vshll.u32 %v3679, 16
    %v3898 = vrot.slane %v3896, 1
    %v3899 = vor.u32 %v3894, %v3898
    %v3901 = vshll.u32 %v3839, 16
    %v3903 = vrot.slane %v3901, 1
    %v3904 = vsel %vm1819, %v3899, %v3903
    %v3906 = vshrl.u32 %v3680, 16
    %v3908 = vshll.u32 %v3680, 16
    %v3910 = vrot.slane %v3908, 1
    %v3911 = vor.u32 %v3906, %v3910
    %v3913 = vshll.u32 %v3840, 16
    %v3915 = vrot.slane %v3913, 1
    %v3916 = vsel %vm1819, %v3911, %v3915
    %v3918 = vshrl.u32 %v3681, 16
    %v3920 = vshll.u32 %v3681, 16
    %v3922 = vrot.slane %v3920, 1
    %v3923 = vor.u32 %v3918, %v3922
    %v3925 = vshll.u32 %v3841, 16
    %v3927 = vrot.slane %v3925, 1
    %v3928 = vsel %vm1819, %v3923, %v3927
    %v3930 = vshrl.u32 %v3682, 16
    %v3932 = vshll.u32 %v3682, 16
    %v3934 = vrot.slane %v3932, 1
    %v3935 = vor.u32 %v3930, %v3934
    %v3937 = vshll.u32 %v3842, 16
    %v3939 = vrot.slane %v3937, 1
    %v3940 = vsel %vm1819, %v3935, %v3939
    %v3942 = vshrl.u32 %v3683, 16
    %v3944 = vshll.u32 %v3683, 16
    %v3946 = vrot.slane %v3944, 1
    %v3947 = vor.u32 %v3942, %v3946
    %v3949 = vshll.u32 %v3843, 16
    %v3951 = vrot.slane %v3949, 1
    %v3952 = vsel %vm1819, %v3947, %v3951
    %v3954 = vshrl.u32 %v3684, 16
    %v3956 = vshll.u32 %v3684, 16
    %v3958 = vrot.slane %v3956, 1
    %v3959 = vor.u32 %v3954, %v3958
    %v3961 = vshll.u32 %v3844, 16
    %v3963 = vrot.slane %v3961, 1
    %v3964 = vsel %vm1819, %v3959, %v3963
    %v3966 = vshrl.u32 %v3685, 16
    %v3968 = vshll.u32 %v3685, 16
    %v3970 = vrot.slane %v3968, 1
    %v3971 = vor.u32 %v3966, %v3970
    %v3973 = vshll.u32 %v3845, 16
    %v3975 = vrot.slane %v3973, 1
    %v3976 = vsel %vm1819, %v3971, %v3975
    %v3978 = vshrl.u32 %v3686, 16
    %v3980 = vshll.u32 %v3686, 16
    %v3982 = vrot.slane %v3980, 1
    %v3983 = vor.u32 %v3978, %v3982
    %v3985 = vshll.u32 %v3846, 16
    %v3987 = vrot.slane %v3985, 1
    %v3988 = vsel %vm1819, %v3983, %v3987
    %v3990 = vshrl.u32 %v3687, 16
    %v3992 = vshll.u32 %v3687, 16
    %v3994 = vrot.slane %v3992, 1
    %v3995 = vor.u32 %v3990, %v3994
    %v3997 = vshll.u32 %v3847, 16
    %v3999 = vrot.slane %v3997, 1
    %v4000 = vsel %vm1819, %v3995, %v3999
    %v4002 = vshrl.u32 %v3688, 16
    %v4004 = vshll.u32 %v3688, 16
    %v4006 = vrot.slane %v4004, 1
    %v4007 = vor.u32 %v4002, %v4006
    %v4009 = vshll.u32 %v3848, 16
    %v4011 = vrot.slane %v4009, 1
    %v4012 = vsel %vm1819, %v4007, %v4011
    %v4014 = vshrl.u32 %v3689, 16
    %v4016 = vshll.u32 %v3689, 16
    %v4018 = vrot.slane %v4016, 1
    %v4019 = vor.u32 %v4014, %v4018
    %v4021 = vshll.u32 %v3849, 16
    %v4023 = vrot.slane %v4021, 1
    %v4024 = vsel %vm1819, %v4019, %v4023
    %v4026 = vshrl.u32 %v3690, 16
    %v4028 = vshll.u32 %v3690, 16
    %v4030 = vrot.slane %v4028, 1
    %v4031 = vor.u32 %v4026, %v4030
    %v4033 = vshll.u32 %v3850, 16
    %v4035 = vrot.slane %v4033, 1
    %v4036 = vsel %vm1819, %v4031, %v4035
    %v4038 = vshrl.u32 %v3691, 16
    %v4040 = vshll.u32 %v3691, 16
    %v4042 = vrot.slane %v4040, 1
    %v4043 = vor.u32 %v4038, %v4042
    %v4045 = vshll.u32 %v3851, 16
    %v4047 = vrot.slane %v4045, 1
    %v4048 = vsel %vm1819, %v4043, %v4047
    %v4050 = vshrl.u32 %v3692, 16
    %v4052 = vshll.u32 %v3692, 16
    %v4054 = vrot.slane %v4052, 1
    %v4055 = vor.u32 %v4050, %v4054
    %v4057 = vshll.u32 %v3852, 16
    %v4059 = vrot.slane %v4057, 1
    %v4060 = vsel %vm1819, %v4055, %v4059
    %v4062 = vshrl.u32 %v3693, 16
    %v4064 = vshll.u32 %v3693, 16
    %v4066 = vrot.slane %v4064, 1
    %v4067 = vor.u32 %v4062, %v4066
    %v4069 = vshll.u32 %v3853, 16
    %v4071 = vrot.slane %v4069, 1
    %v4072 = vsel %vm1819, %v4067, %v4071
    %v4074 = vshrl.u32 %v3694, 16
    %v4076 = vshll.u32 %v3694, 16
    %v4078 = vrot.slane %v4076, 1
    %v4079 = vor.u32 %v4074, %v4078
    %v4081 = vshll.u32 %v3854, 16
    %v4083 = vrot.slane %v4081, 1
    %v4084 = vsel %vm1819, %v4079, %v4083
    %v4086 = vshrl.u32 %v3695, 16
    %v4088 = vshll.u32 %v3695, 16
    %v4090 = vrot.slane %v4088, 1
    %v4091 = vor.u32 %v4086, %v4090
    %v4093 = vshll.u32 %v3855, 16
    %v4095 = vrot.slane %v4093, 1
    %v4096 = vsel %vm1819, %v4091, %v4095
    %v4098 = vshrl.u32 %v3696, 16
    %v4100 = vshll.u32 %v3696, 16
    %v4102 = vrot.slane %v4100, 1
    %v4103 = vor.u32 %v4098, %v4102
    %v4105 = vshll.u32 %v3856, 16
    %v4107 = vrot.slane %v4105, 1
    %v4108 = vsel %vm1819, %v4103, %v4107
    %v4110 = vshrl.u32 %v3697, 16
    %v4112 = vshll.u32 %v3697, 16
    %v4114 = vrot.slane %v4112, 1
    %v4115 = vor.u32 %v4110, %v4114
    %v4117 = vshll.u32 %v3857, 16
    %v4119 = vrot.slane %v4117, 1
    %v4120 = vsel %vm1819, %v4115, %v4119
    %v4122 = vshrl.u32 %v3698, 16
    %v4124 = vshll.u32 %v3698, 16
    %v4126 = vrot.slane %v4124, 1
    %v4127 = vor.u32 %v4122, %v4126
    %v4129 = vshll.u32 %v3858, 16
    %v4131 = vrot.slane %v4129, 1
    %v4132 = vsel %vm1819, %v4127, %v4131
    %v4134 = vshrl.u32 %v3699, 16
    %v4136 = vshll.u32 %v3699, 16
    %v4138 = vrot.slane %v4136, 1
    %v4139 = vor.u32 %v4134, %v4138
    %v4141 = vshll.u32 %v3859, 16
    %v4143 = vrot.slane %v4141, 1
    %v4144 = vsel %vm1819, %v4139, %v4143
    %v4146 = vshrl.u32 %v3700, 16
    %v4148 = vshll.u32 %v3700, 16
    %v4150 = vrot.slane %v4148, 1
    %v4151 = vor.u32 %v4146, %v4150
    %v4153 = vshll.u32 %v3860, 16
    %v4155 = vrot.slane %v4153, 1
    %v4156 = vsel %vm1819, %v4151, %v4155
    %v4158 = vshrl.u32 %v3701, 16
    %v4160 = vshll.u32 %v3701, 16
    %v4162 = vrot.slane %v4160, 1
    %v4163 = vor.u32 %v4158, %v4162
    %v4165 = vshll.u32 %v3861, 16
    %v4167 = vrot.slane %v4165, 1
    %v4168 = vsel %vm1819, %v4163, %v4167
    %v4170 = vshrl.u32 %v3702, 16
    %v4172 = vshll.u32 %v3702, 16
    %v4174 = vrot.slane %v4172, 1
    %v4175 = vor.u32 %v4170, %v4174
    %v4177 = vshll.u32 %v3862, 16
    %v4179 = vrot.slane %v4177, 1
    %v4180 = vsel %vm1819, %v4175, %v4179
    %v4182 = vshrl.u32 %v3703, 16
    %v4184 = vshll.u32 %v3703, 16
    %v4186 = vrot.slane %v4184, 1
    %v4187 = vor.u32 %v4182, %v4186
    %v4189 = vshll.u32 %v3863, 16
    %v4191 = vrot.slane %v4189, 1
    %v4192 = vsel %vm1819, %v4187, %v4191
    %v4194 = vshrl.u32 %v3704, 16
    %v4196 = vshll.u32 %v3704, 16
    %v4198 = vrot.slane %v4196, 1
    %v4199 = vor.u32 %v4194, %v4198
    %v4201 = vshll.u32 %v3864, 16
    %v4203 = vrot.slane %v4201, 1
    %v4204 = vsel %vm1819, %v4199, %v4203
    %v4206 = vshrl.u32 %v3705, 16
    %v4208 = vshll.u32 %v3705, 16
    %v4210 = vrot.slane %v4208, 1
    %v4211 = vor.u32 %v4206, %v4210
    %v4213 = vshll.u32 %v3865, 16
    %v4215 = vrot.slane %v4213, 1
    %v4216 = vsel %vm1819, %v4211, %v4215
    %v4218 = vshrl.u32 %v3706, 16
    %v4220 = vshll.u32 %v3706, 16
    %v4222 = vrot.slane %v4220, 1
    %v4223 = vor.u32 %v4218, %v4222
    %v4225 = vshll.u32 %v3866, 16
    %v4227 = vrot.slane %v4225, 1
    %v4228 = vsel %vm1819, %v4223, %v4227
    %v4230 = vshrl.u32 %v3707, 16
    %v4232 = vshll.u32 %v3707, 16
    %v4234 = vrot.slane %v4232, 1
    %v4235 = vor.u32 %v4230, %v4234
    %v4237 = vshll.u32 %v3867, 16
    %v4239 = vrot.slane %v4237, 1
    %v4240 = vsel %vm1819, %v4235, %v4239
    %v4242 = vshrl.u32 %v3708, 16
    %v4244 = vshll.u32 %v3708, 16
    %v4246 = vrot.slane %v4244, 1
    %v4247 = vor.u32 %v4242, %v4246
    %v4249 = vshll.u32 %v3868, 16
    %v4251 = vrot.slane %v4249, 1
    %v4252 = vsel %vm1819, %v4247, %v4251
    %4253 = vrot.lane.b32.xlu0 %v3880, 112
    %v4254 = vpop.permute.xlu0 %4253
    %4255 = vrot.lane.b32.xlu0 %v3892, 112
    %v4256 = vpop.permute.xlu0 %4255
    %4257 = vrot.lane.b32.xlu0 %v3904, 112
    %v4258 = vpop.permute.xlu0 %4257
    %4259 = vrot.lane.b32.xlu0 %v3916, 112
    %v4260 = vpop.permute.xlu0 %4259
    %4261 = vrot.lane.b32.xlu0 %v3928, 112
    %v4262 = vpop.permute.xlu0 %4261
    %4263 = vrot.lane.b32.xlu0 %v3940, 112
    %v4264 = vpop.permute.xlu0 %4263
    %4265 = vrot.lane.b32.xlu0 %v3952, 112
    %v4266 = vpop.permute.xlu0 %4265
    %4267 = vrot.lane.b32.xlu0 %v3964, 112
    %v4268 = vpop.permute.xlu0 %4267
    %4269 = vrot.lane.b32.xlu0 %v3976, 112
    %v4270 = vpop.permute.xlu0 %4269
    %4271 = vrot.lane.b32.xlu0 %v3988, 112
    %v4272 = vpop.permute.xlu0 %4271
    %4273 = vrot.lane.b32.xlu0 %v4000, 112
    %v4274 = vpop.permute.xlu0 %4273
    %4275 = vrot.lane.b32.xlu0 %v4012, 112
    %v4276 = vpop.permute.xlu0 %4275
    %4277 = vrot.lane.b32.xlu0 %v4024, 112
    %v4278 = vpop.permute.xlu0 %4277
    %4279 = vrot.lane.b32.xlu0 %v4036, 112
    %v4280 = vpop.permute.xlu0 %4279
    %4281 = vrot.lane.b32.xlu0 %v4048, 112
    %v4282 = vpop.permute.xlu0 %4281
    %4283 = vrot.lane.b32.xlu0 %v4060, 112
    %v4284 = vpop.permute.xlu0 %4283
    %4285 = vrot.lane.b32.xlu0 %v4072, 112
    %v4286 = vpop.permute.xlu0 %4285
    %4287 = vrot.lane.b32.xlu0 %v4084, 112
    %v4288 = vpop.permute.xlu0 %4287
    %4289 = vrot.lane.b32.xlu0 %v4096, 112
    %v4290 = vpop.permute.xlu0 %4289
    %4291 = vrot.lane.b32.xlu0 %v4108, 112
    %v4292 = vpop.permute.xlu0 %4291
    %4293 = vrot.lane.b32.xlu0 %v4120, 112
    %v4294 = vpop.permute.xlu0 %4293
    %4295 = vrot.lane.b32.xlu0 %v4132, 112
    %v4296 = vpop.permute.xlu0 %4295
    %4297 = vrot.lane.b32.xlu0 %v4144, 112
    %v4298 = vpop.permute.xlu0 %4297
    %4299 = vrot.lane.b32.xlu0 %v4156, 112
    %v4300 = vpop.permute.xlu0 %4299
    %4301 = vrot.lane.b32.xlu0 %v4168, 112
    %v4302 = vpop.permute.xlu0 %4301
    %4303 = vrot.lane.b32.xlu0 %v4180, 112
    %v4304 = vpop.permute.xlu0 %4303
    %4305 = vrot.lane.b32.xlu0 %v4192, 112
    %v4306 = vpop.permute.xlu0 %4305
    %4307 = vrot.lane.b32.xlu0 %v4204, 112
    %v4308 = vpop.permute.xlu0 %4307
    %4309 = vrot.lane.b32.xlu0 %v4216, 112
    %v4310 = vpop.permute.xlu0 %4309
    %4311 = vrot.lane.b32.xlu0 %v4228, 112
    %v4312 = vpop.permute.xlu0 %4311
    %4313 = vrot.lane.b32.xlu0 %v4240, 112
    %v4314 = vpop.permute.xlu0 %4313
    %4315 = vrot.lane.b32.xlu0 %v4252, 112
    %v4316 = vpop.permute.xlu0 %4315
    %v4349 = vunpack.c.l.b16 %v1531
    %v4350 = vunpack.c.l.b16 %v1532
    %v4351 = vunpack.c.l.b16 %v1533
    %v4352 = vunpack.c.l.b16 %v1534
    %v4353 = vunpack.c.l.b16 %v1535
    %v4354 = vunpack.c.l.b16 %v1536
    %v4355 = vunpack.c.l.b16 %v1537
    %v4356 = vunpack.c.l.b16 %v1538
    %v4357 = vunpack.c.l.b16 %v1539
    %v4358 = vunpack.c.l.b16 %v1540
    %v4359 = vunpack.c.l.b16 %v1541
    %v4360 = vunpack.c.l.b16 %v1542
    %v4361 = vunpack.c.l.b16 %v1543
    %v4362 = vunpack.c.l.b16 %v1544
    %v4363 = vunpack.c.l.b16 %v1545
    %v4364 = vunpack.c.l.b16 %v1546
    %v4365 = vunpack.c.l.b16 %v1547
    %v4366 = vunpack.c.l.b16 %v1548
    %v4367 = vunpack.c.l.b16 %v1549
    %v4368 = vunpack.c.l.b16 %v1550
    %v4369 = vunpack.c.l.b16 %v1551
    %v4370 = vunpack.c.l.b16 %v1552
    %v4371 = vunpack.c.l.b16 %v1553
    %v4372 = vunpack.c.l.b16 %v1554
    %v4373 = vunpack.c.l.b16 %v1555
    %v4374 = vunpack.c.l.b16 %v1556
    %v4375 = vunpack.c.l.b16 %v1557
    %v4376 = vunpack.c.l.b16 %v1558
    %v4377 = vunpack.c.l.b16 %v1559
    %v4378 = vunpack.c.l.b16 %v1560
    %v4379 = vunpack.c.l.b16 %v1561
    %v4380 = vunpack.c.l.b16 %v1562
    %v4381 = vpack.c.b16 %v3614, %v4349
    %v4382 = vpack.c.b16 %v3616, %v4350
    %v4383 = vpack.c.b16 %v3618, %v4351
    %v4384 = vpack.c.b16 %v3620, %v4352
    %v4385 = vpack.c.b16 %v3622, %v4353
    %v4386 = vpack.c.b16 %v3624, %v4354
    %v4387 = vpack.c.b16 %v3626, %v4355
    %v4388 = vpack.c.b16 %v3628, %v4356
    %v4389 = vpack.c.b16 %v3630, %v4357
    %v4390 = vpack.c.b16 %v3632, %v4358
    %v4391 = vpack.c.b16 %v3634, %v4359
    %v4392 = vpack.c.b16 %v3636, %v4360
    %v4393 = vpack.c.b16 %v3638, %v4361
    %v4394 = vpack.c.b16 %v3640, %v4362
    %v4395 = vpack.c.b16 %v3642, %v4363
    %v4396 = vpack.c.b16 %v3644, %v4364
    %v4397 = vpack.c.b16 %v3646, %v4365
    %v4398 = vpack.c.b16 %v3648, %v4366
    %v4399 = vpack.c.b16 %v3650, %v4367
    %v4400 = vpack.c.b16 %v3652, %v4368
    %v4401 = vpack.c.b16 %v3654, %v4369
    %v4402 = vpack.c.b16 %v3656, %v4370
    %v4403 = vpack.c.b16 %v3658, %v4371
    %v4404 = vpack.c.b16 %v3660, %v4372
    %v4405 = vpack.c.b16 %v3662, %v4373
    %v4406 = vpack.c.b16 %v3664, %v4374
    %v4407 = vpack.c.b16 %v3666, %v4375
    %v4408 = vpack.c.b16 %v3668, %v4376
    %v4409 = vpack.c.b16 %v3670, %v4377
    %v4410 = vpack.c.b16 %v3672, %v4378
    %v4411 = vpack.c.b16 %v3674, %v4379
    %v4412 = vpack.c.b16 %v3676, %v4380
    %v4413 = vrot.slane %v4381, 1
    %v4414 = vrot.slane %v3837, 1
    %v4415 = vsel %vm2364, %v4413, %v4414
    %v4416 = vrot.slane %v4382, 1
    %v4417 = vrot.slane %v3838, 1
    %v4418 = vsel %vm2364, %v4416, %v4417
    %v4419 = vrot.slane %v4383, 1
    %v4420 = vrot.slane %v3839, 1
    %v4421 = vsel %vm2364, %v4419, %v4420
    %v4422 = vrot.slane %v4384, 1
    %v4423 = vrot.slane %v3840, 1
    %v4424 = vsel %vm2364, %v4422, %v4423
    %v4425 = vrot.slane %v4385, 1
    %v4426 = vrot.slane %v3841, 1
    %v4427 = vsel %vm2364, %v4425, %v4426
    %v4428 = vrot.slane %v4386, 1
    %v4429 = vrot.slane %v3842, 1
    %v4430 = vsel %vm2364, %v4428, %v4429
    %v4431 = vrot.slane %v4387, 1
    %v4432 = vrot.slane %v3843, 1
    %v4433 = vsel %vm2364, %v4431, %v4432
    %v4434 = vrot.slane %v4388, 1
    %v4435 = vrot.slane %v3844, 1
    %v4436 = vsel %vm2364, %v4434, %v4435
    %v4437 = vrot.slane %v4389, 1
    %v4438 = vrot.slane %v3845, 1
    %v4439 = vsel %vm2364, %v4437, %v4438
    %v4440 = vrot.slane %v4390, 1
    %v4441 = vrot.slane %v3846, 1
    %v4442 = vsel %vm2364, %v4440, %v4441
    %v4443 = vrot.slane %v4391, 1
    %v4444 = vrot.slane %v3847, 1
    %v4445 = vsel %vm2364, %v4443, %v4444
    %v4446 = vrot.slane %v4392, 1
    %v4447 = vrot.slane %v3848, 1
    %v4448 = vsel %vm2364, %v4446, %v4447
    %v4449 = vrot.slane %v4393, 1
    %v4450 = vrot.slane %v3849, 1
    %v4451 = vsel %vm2364, %v4449, %v4450
    %v4452 = vrot.slane %v4394, 1
    %v4453 = vrot.slane %v3850, 1
    %v4454 = vsel %vm2364, %v4452, %v4453
    %v4455 = vrot.slane %v4395, 1
    %v4456 = vrot.slane %v3851, 1
    %v4457 = vsel %vm2364, %v4455, %v4456
    %v4458 = vrot.slane %v4396, 1
    %v4459 = vrot.slane %v3852, 1
    %v4460 = vsel %vm2364, %v4458, %v4459
    %v4461 = vrot.slane %v4397, 1
    %v4462 = vrot.slane %v3853, 1
    %v4463 = vsel %vm2364, %v4461, %v4462
    %v4464 = vrot.slane %v4398, 1
    %v4465 = vrot.slane %v3854, 1
    %v4466 = vsel %vm2364, %v4464, %v4465
    %v4467 = vrot.slane %v4399, 1
    %v4468 = vrot.slane %v3855, 1
    %v4469 = vsel %vm2364, %v4467, %v4468
    %v4470 = vrot.slane %v4400, 1
    %v4471 = vrot.slane %v3856, 1
    %v4472 = vsel %vm2364, %v4470, %v4471
    %v4473 = vrot.slane %v4401, 1
    %v4474 = vrot.slane %v3857, 1
    %v4475 = vsel %vm2364, %v4473, %v4474
    %v4476 = vrot.slane %v4402, 1
    %v4477 = vrot.slane %v3858, 1
    %v4478 = vsel %vm2364, %v4476, %v4477
    %v4479 = vrot.slane %v4403, 1
    %v4480 = vrot.slane %v3859, 1
    %v4481 = vsel %vm2364, %v4479, %v4480
    %v4482 = vrot.slane %v4404, 1
    %v4483 = vrot.slane %v3860, 1
    %v4484 = vsel %vm2364, %v4482, %v4483
    %v4485 = vrot.slane %v4405, 1
    %v4486 = vrot.slane %v3861, 1
    %v4487 = vsel %vm2364, %v4485, %v4486
    %v4488 = vrot.slane %v4406, 1
    %v4489 = vrot.slane %v3862, 1
    %v4490 = vsel %vm2364, %v4488, %v4489
    %v4491 = vrot.slane %v4407, 1
    %v4492 = vrot.slane %v3863, 1
    %v4493 = vsel %vm2364, %v4491, %v4492
    %v4494 = vrot.slane %v4408, 1
    %v4495 = vrot.slane %v3864, 1
    %v4496 = vsel %vm2364, %v4494, %v4495
    %v4497 = vrot.slane %v4409, 1
    %v4498 = vrot.slane %v3865, 1
    %v4499 = vsel %vm2364, %v4497, %v4498
    %v4500 = vrot.slane %v4410, 1
    %v4501 = vrot.slane %v3866, 1
    %v4502 = vsel %vm2364, %v4500, %v4501
    %v4503 = vrot.slane %v4411, 1
    %v4504 = vrot.slane %v3867, 1
    %v4505 = vsel %vm2364, %v4503, %v4504
    %v4506 = vrot.slane %v4412, 1
    %v4507 = vrot.slane %v3868, 1
    %v4508 = vsel %vm2364, %v4506, %v4507
    %vm4509 = vcmask 130048
    %v4511 = vsel %vm4509, %v1691, %v2205
    %v4513 = vsel %vm4509, %v1692, %v2207
    %v4515 = vsel %vm4509, %v1693, %v2209
    %v4517 = vsel %vm4509, %v1694, %v2211
    %v4519 = vsel %vm4509, %v1695, %v2213
    %v4521 = vsel %vm4509, %v1696, %v2215
    %v4523 = vsel %vm4509, %v1697, %v2217
    %v4525 = vsel %vm4509, %v1698, %v2219
    %v4527 = vsel %vm4509, %v1699, %v2221
    %v4529 = vsel %vm4509, %v1700, %v2223
    %v4531 = vsel %vm4509, %v1701, %v2225
    %v4533 = vsel %vm4509, %v1702, %v2227
    %v4535 = vsel %vm4509, %v1703, %v2229
    %v4537 = vsel %vm4509, %v1704, %v2231
    %v4539 = vsel %vm4509, %v1705, %v2233
    %v4541 = vsel %vm4509, %v1706, %v2235
    %v4543 = vsel %vm4509, %v1707, %v2237
    %v4545 = vsel %vm4509, %v1708, %v2239
    %v4547 = vsel %vm4509, %v1709, %v2241
    %v4549 = vsel %vm4509, %v1710, %v2243
    %v4551 = vsel %vm4509, %v1711, %v2245
    %v4553 = vsel %vm4509, %v1712, %v2247
    %v4555 = vsel %vm4509, %v1713, %v2249
    %v4557 = vsel %vm4509, %v1714, %v2251
    %v4559 = vsel %vm4509, %v1715, %v2253
    %v4561 = vsel %vm4509, %v1716, %v2255
    %v4563 = vsel %vm4509, %v1717, %v2257
    %v4565 = vsel %vm4509, %v1718, %v2259
    %v4567 = vsel %vm4509, %v1719, %v2261
    %v4569 = vsel %vm4509, %v1720, %v2263
    %v4571 = vsel %vm4509, %v1721, %v2265
    %v4573 = vsel %vm4509, %v1722, %v2267
    %vm4574 = vcmask 261120
    %v4576 = vsel %vm4574, %v4511, %v2462
    %v4578 = vsel %vm4574, %v4513, %v2464
    %v4580 = vsel %vm4574, %v4515, %v2466
    %v4582 = vsel %vm4574, %v4517, %v2468
    %v4584 = vsel %vm4574, %v4519, %v2470
    %v4586 = vsel %vm4574, %v4521, %v2472
    %v4588 = vsel %vm4574, %v4523, %v2474
    %v4590 = vsel %vm4574, %v4525, %v2476
    %v4592 = vsel %vm4574, %v4527, %v2478
    %v4594 = vsel %vm4574, %v4529, %v2480
    %v4596 = vsel %vm4574, %v4531, %v2482
    %v4598 = vsel %vm4574, %v4533, %v2484
    %v4600 = vsel %vm4574, %v4535, %v2486
    %v4602 = vsel %vm4574, %v4537, %v2488
    %v4604 = vsel %vm4574, %v4539, %v2490
    %v4606 = vsel %vm4574, %v4541, %v2492
    %v4608 = vsel %vm4574, %v4543, %v2494
    %v4610 = vsel %vm4574, %v4545, %v2496
    %v4612 = vsel %vm4574, %v4547, %v2498
    %v4614 = vsel %vm4574, %v4549, %v2500
    %v4616 = vsel %vm4574, %v4551, %v2502
    %v4618 = vsel %vm4574, %v4553, %v2504
    %v4620 = vsel %vm4574, %v4555, %v2506
    %v4622 = vsel %vm4574, %v4557, %v2508
    %v4624 = vsel %vm4574, %v4559, %v2510
    %v4626 = vsel %vm4574, %v4561, %v2512
    %v4628 = vsel %vm4574, %v4563, %v2514
    %v4630 = vsel %vm4574, %v4565, %v2516
    %v4632 = vsel %vm4574, %v4567, %v2518
    %v4634 = vsel %vm4574, %v4569, %v2520
    %v4636 = vsel %vm4574, %v4571, %v2522
    %v4638 = vsel %vm4574, %v4573, %v2524
    %vm4639 = vcmask 392192
    %v4641 = vsel %vm4639, %v4576, %v2686
    %v4643 = vsel %vm4639, %v4578, %v2688
    %v4645 = vsel %vm4639, %v4580, %v2690
    %v4647 = vsel %vm4639, %v4582, %v2692
    %v4649 = vsel %vm4639, %v4584, %v2694
    %v4651 = vsel %vm4639, %v4586, %v2696
    %v4653 = vsel %vm4639, %v4588, %v2698
    %v4655 = vsel %vm4639, %v4590, %v2700
    %v4657 = vsel %vm4639, %v4592, %v2702
    %v4659 = vsel %vm4639, %v4594, %v2704
    %v4661 = vsel %vm4639, %v4596, %v2706
    %v4663 = vsel %vm4639, %v4598, %v2708
    %v4665 = vsel %vm4639, %v4600, %v2710
    %v4667 = vsel %vm4639, %v4602, %v2712
    %v4669 = vsel %vm4639, %v4604, %v2714
    %v4671 = vsel %vm4639, %v4606, %v2716
    %v4673 = vsel %vm4639, %v4608, %v2718
    %v4675 = vsel %vm4639, %v4610, %v2720
    %v4677 = vsel %vm4639, %v4612, %v2722
    %v4679 = vsel %vm4639, %v4614, %v2724
    %v4681 = vsel %vm4639, %v4616, %v2726
    %v4683 = vsel %vm4639, %v4618, %v2728
    %v4685 = vsel %vm4639, %v4620, %v2730
    %v4687 = vsel %vm4639, %v4622, %v2732
    %v4689 = vsel %vm4639, %v4624, %v2734
    %v4691 = vsel %vm4639, %v4626, %v2736
    %v4693 = vsel %vm4639, %v4628, %v2738
    %v4695 = vsel %vm4639, %v4630, %v2740
    %v4697 = vsel %vm4639, %v4632, %v2742
    %v4699 = vsel %vm4639, %v4634, %v2744
    %v4701 = vsel %vm4639, %v4636, %v2746
    %v4703 = vsel %vm4639, %v4638, %v2748
    %vm4704 = vcmask 523264
    %v4706 = vsel %vm4704, %v4641, %v3230
    %v4708 = vsel %vm4704, %v4643, %v3232
    %v4710 = vsel %vm4704, %v4645, %v3234
    %v4712 = vsel %vm4704, %v4647, %v3236
    %v4714 = vsel %vm4704, %v4649, %v3238
    %v4716 = vsel %vm4704, %v4651, %v3240
    %v4718 = vsel %vm4704, %v4653, %v3242
    %v4720 = vsel %vm4704, %v4655, %v3244
    %v4722 = vsel %vm4704, %v4657, %v3246
    %v4724 = vsel %vm4704, %v4659, %v3248
    %v4726 = vsel %vm4704, %v4661, %v3250
    %v4728 = vsel %vm4704, %v4663, %v3252
    %v4730 = vsel %vm4704, %v4665, %v3254
    %v4732 = vsel %vm4704, %v4667, %v3256
    %v4734 = vsel %vm4704, %v4669, %v3258
    %v4736 = vsel %vm4704, %v4671, %v3260
    %v4738 = vsel %vm4704, %v4673, %v3262
    %v4740 = vsel %vm4704, %v4675, %v3264
    %v4742 = vsel %vm4704, %v4677, %v3266
    %v4744 = vsel %vm4704, %v4679, %v3268
    %v4746 = vsel %vm4704, %v4681, %v3270
    %v4748 = vsel %vm4704, %v4683, %v3272
    %v4750 = vsel %vm4704, %v4685, %v3274
    %v4752 = vsel %vm4704, %v4687, %v3276
    %v4754 = vsel %vm4704, %v4689, %v3278
    %v4756 = vsel %vm4704, %v4691, %v3280
    %v4758 = vsel %vm4704, %v4693, %v3282
    %v4760 = vsel %vm4704, %v4695, %v3284
    %v4762 = vsel %vm4704, %v4697, %v3286
    %v4764 = vsel %vm4704, %v4699, %v3288
    %v4766 = vsel %vm4704, %v4701, %v3290
    %v4768 = vsel %vm4704, %v4703, %v3292
    %vm4769 = vcmask 654336
    %v4771 = vsel %vm4769, %v4706, %v3486
    %v4773 = vsel %vm4769, %v4708, %v3488
    %v4775 = vsel %vm4769, %v4710, %v3490
    %v4777 = vsel %vm4769, %v4712, %v3492
    %v4779 = vsel %vm4769, %v4714, %v3494
    %v4781 = vsel %vm4769, %v4716, %v3496
    %v4783 = vsel %vm4769, %v4718, %v3498
    %v4785 = vsel %vm4769, %v4720, %v3500
    %v4787 = vsel %vm4769, %v4722, %v3502
    %v4789 = vsel %vm4769, %v4724, %v3504
    %v4791 = vsel %vm4769, %v4726, %v3506
    %v4793 = vsel %vm4769, %v4728, %v3508
    %v4795 = vsel %vm4769, %v4730, %v3510
    %v4797 = vsel %vm4769, %v4732, %v3512
    %v4799 = vsel %vm4769, %v4734, %v3514
    %v4801 = vsel %vm4769, %v4736, %v3516
    %v4803 = vsel %vm4769, %v4738, %v3518
    %v4805 = vsel %vm4769, %v4740, %v3520
    %v4807 = vsel %vm4769, %v4742, %v3522
    %v4809 = vsel %vm4769, %v4744, %v3524
    %v4811 = vsel %vm4769, %v4746, %v3526
    %v4813 = vsel %vm4769, %v4748, %v3528
    %v4815 = vsel %vm4769, %v4750, %v3530
    %v4817 = vsel %vm4769, %v4752, %v3532
    %v4819 = vsel %vm4769, %v4754, %v3534
    %v4821 = vsel %vm4769, %v4756, %v3536
    %v4823 = vsel %vm4769, %v4758, %v3538
    %v4825 = vsel %vm4769, %v4760, %v3540
    %v4827 = vsel %vm4769, %v4762, %v3542
    %v4829 = vsel %vm4769, %v4764, %v3544
    %v4831 = vsel %vm4769, %v4766, %v3546
    %v4833 = vsel %vm4769, %v4768, %v3548
    %vm4834 = vcmask 785408
    %v4836 = vsel %vm4834, %v4771, %v3710
    %v4838 = vsel %vm4834, %v4773, %v3712
    %v4840 = vsel %vm4834, %v4775, %v3714
    %v4842 = vsel %vm4834, %v4777, %v3716
    %v4844 = vsel %vm4834, %v4779, %v3718
    %v4846 = vsel %vm4834, %v4781, %v3720
    %v4848 = vsel %vm4834, %v4783, %v3722
    %v4850 = vsel %vm4834, %v4785, %v3724
    %v4852 = vsel %vm4834, %v4787, %v3726
    %v4854 = vsel %vm4834, %v4789, %v3728
    %v4856 = vsel %vm4834, %v4791, %v3730
    %v4858 = vsel %vm4834, %v4793, %v3732
    %v4860 = vsel %vm4834, %v4795, %v3734
    %v4862 = vsel %vm4834, %v4797, %v3736
    %v4864 = vsel %vm4834, %v4799, %v3738
    %v4866 = vsel %vm4834, %v4801, %v3740
    %v4868 = vsel %vm4834, %v4803, %v3742
    %v4870 = vsel %vm4834, %v4805, %v3744
    %v4872 = vsel %vm4834, %v4807, %v3746
    %v4874 = vsel %vm4834, %v4809, %v3748
    %v4876 = vsel %vm4834, %v4811, %v3750
    %v4878 = vsel %vm4834, %v4813, %v3752
    %v4880 = vsel %vm4834, %v4815, %v3754
    %v4882 = vsel %vm4834, %v4817, %v3756
    %v4884 = vsel %vm4834, %v4819, %v3758
    %v4886 = vsel %vm4834, %v4821, %v3760
    %v4888 = vsel %vm4834, %v4823, %v3762
    %v4890 = vsel %vm4834, %v4825, %v3764
    %v4892 = vsel %vm4834, %v4827, %v3766
    %v4894 = vsel %vm4834, %v4829, %v3768
    %v4896 = vsel %vm4834, %v4831, %v3770
    %v4898 = vsel %vm4834, %v4833, %v3772
    %vm4899 = vcmask 916480
    %v4901 = vsel %vm4899, %v4836, %v4254
    %v4904 = vsel %vm4899, %v4838, %v4256
    %v4907 = vsel %vm4899, %v4840, %v4258
    %v4910 = vsel %vm4899, %v4842, %v4260
    %v4913 = vsel %vm4899, %v4844, %v4262
    %v4916 = vsel %vm4899, %v4846, %v4264
    %v4919 = vsel %vm4899, %v4848, %v4266
    %v4922 = vsel %vm4899, %v4850, %v4268
    %v4925 = vsel %vm4899, %v4852, %v4270
    %v4928 = vsel %vm4899, %v4854, %v4272
    %v4931 = vsel %vm4899, %v4856, %v4274
    %v4934 = vsel %vm4899, %v4858, %v4276
    %v4937 = vsel %vm4899, %v4860, %v4278
    %v4940 = vsel %vm4899, %v4862, %v4280
    %v4943 = vsel %vm4899, %v4864, %v4282
    %v4946 = vsel %vm4899, %v4866, %v4284
    %v4949 = vsel %vm4899, %v4868, %v4286
    %v4952 = vsel %vm4899, %v4870, %v4288
    %v4955 = vsel %vm4899, %v4872, %v4290
    %v4958 = vsel %vm4899, %v4874, %v4292
    %v4961 = vsel %vm4899, %v4876, %v4294
    %v4964 = vsel %vm4899, %v4878, %v4296
    %v4967 = vsel %vm4899, %v4880, %v4298
    %v4970 = vsel %vm4899, %v4882, %v4300
    %v4973 = vsel %vm4899, %v4884, %v4302
    %v4976 = vsel %vm4899, %v4886, %v4304
    %v4979 = vsel %vm4899, %v4888, %v4306
    %v4982 = vsel %vm4899, %v4890, %v4308
    %v4985 = vsel %vm4899, %v4892, %v4310
    %v4988 = vsel %vm4899, %v4894, %v4312
    %v4991 = vsel %vm4899, %v4896, %v4314
    %v4994 = vsel %vm4899, %v4898, %v4316
    %v4996 = vld [vmem:[%s1] sm:$0xf]
    %v4997 = vld [vmem:[%s1 + $0x4] sm:$0xf]
    %v4998 = vld [vmem:[%s1 + $0x8] sm:$0xf]
    %v4999 = vld [vmem:[%s1 + $0xc] sm:$0xf]
    %v5000 = vld [vmem:[%s1 + $0x10] sm:$0xf]
    %v5001 = vld [vmem:[%s1 + $0x14] sm:$0xf]
    %v5002 = vld [vmem:[%s1 + $0x18] sm:$0xf]
    %v5003 = vld [vmem:[%s1 + $0x1c] sm:$0xf]
    %v5004 = vld [vmem:[%s1 + $0x20] sm:$0xf]
    %v5005 = vld [vmem:[%s1 + $0x24] sm:$0xf]
    %v5006 = vld [vmem:[%s1 + $0x28] sm:$0xf]
    %v5007 = vld [vmem:[%s1 + $0x2c] sm:$0xf]
    %v5008 = vld [vmem:[%s1 + $0x30] sm:$0xf]
    %v5009 = vld [vmem:[%s1 + $0x34] sm:$0xf]
    %v5010 = vld [vmem:[%s1 + $0x38] sm:$0xf]
    %v5011 = vld [vmem:[%s1 + $0x3c] sm:$0xf]
    %v5012 = vld [vmem:[%s1 + $0x40] sm:$0xf]
    %v5013 = vld [vmem:[%s1 + $0x44] sm:$0xf]
    %v5032 = vunpack.c.l.b16 %v4996
    %v5033 = vunpack.c.l.b16 %v4997
    %v5034 = vunpack.c.l.b16 %v4998
    %v5035 = vunpack.c.l.b16 %v4999
    %v5036 = vunpack.c.l.b16 %v5000
    %v5037 = vunpack.c.l.b16 %v5001
    %v5038 = vunpack.c.l.b16 %v5002
    %v5039 = vunpack.c.l.b16 %v5003
    %v5040 = vunpack.c.l.b16 %v5004
    %v5041 = vunpack.c.l.b16 %v5005
    %v5042 = vunpack.c.l.b16 %v5006
    %v5043 = vunpack.c.l.b16 %v5007
    %v5044 = vunpack.c.l.b16 %v5008
    %v5045 = vunpack.c.l.b16 %v5009
    %v5046 = vunpack.c.l.b16 %v5010
    %v5047 = vunpack.c.l.b16 %v5011
    %v5048 = vunpack.c.l.b16 %v5012
    %v5049 = vunpack.c.l.b16 %v5013
    %v5050 = vpack.c.b16 %v5033, %v5032
    %v5051 = vpack.c.b16 %v5035, %v5034
    %v5052 = vpack.c.b16 %v5037, %v5036
    %v5053 = vpack.c.b16 %v5039, %v5038
    %v5054 = vpack.c.b16 %v5041, %v5040
    %v5055 = vpack.c.b16 %v5043, %v5042
    %v5056 = vpack.c.b16 %v5045, %v5044
    %v5057 = vpack.c.b16 %v5047, %v5046
    %v5058 = vpack.c.b16 %v5049, %v5048
    %v5069 = vsel %vm4509, %v4415, 0
    %v5072 = vsel %vm4509, %v4418, 0
    %v5075 = vsel %vm4509, %v4421, 0
    %v5078 = vsel %vm4509, %v4424, 0
    %v5081 = vsel %vm4509, %v4427, 0
    %v5084 = vsel %vm4509, %v4430, 0
    %v5087 = vsel %vm4509, %v4433, 0
    %v5090 = vsel %vm4509, %v4436, 0
    %v5093 = vsel %vm4509, %v4439, 0
    %v5096 = vsel %vm4509, %v4442, 0
    %v5099 = vsel %vm4509, %v4445, 0
    %v5102 = vsel %vm4509, %v4448, 0
    %v5105 = vsel %vm4509, %v4451, 0
    %v5108 = vsel %vm4509, %v4454, 0
    %v5111 = vsel %vm4509, %v4457, 0
    %v5114 = vsel %vm4509, %v4460, 0
    %v5117 = vsel %vm4509, %v4463, 0
    %v5120 = vsel %vm4509, %v4466, 0
    %v5123 = vsel %vm4509, %v4469, 0
    %v5126 = vsel %vm4509, %v4472, 0
    %v5129 = vsel %vm4509, %v4475, 0
    %v5132 = vsel %vm4509, %v4478, 0
    %v5135 = vsel %vm4509, %v4481, 0
    %v5138 = vsel %vm4509, %v4484, 0
    %v5141 = vsel %vm4509, %v4487, 0
    %v5144 = vsel %vm4509, %v4490, 0
    %v5147 = vsel %vm4509, %v4493, 0
    %v5150 = vsel %vm4509, %v4496, 0
    %v5153 = vsel %vm4509, %v4499, 0
    %v5156 = vsel %vm4509, %v4502, 0
    %v5159 = vsel %vm4509, %v4505, 0
    %v5162 = vsel %vm4509, %v4508, 0
    %5164 = vmatprep.subr.bf16.mxu0 0
    %5165 = vmatpush1.bf16.msra.mxu0 %v5050
    %5166 = vmatprep.subr.bf16.mxu0 0
    %5167 = vmatpush1.bf16.msra.mxu0 %v5051
    %5168 = vmatprep.subr.bf16.mxu0 0
    %5169 = vmatpush1.bf16.msra.mxu0 %v5052
    %5170 = vmatprep.subr.bf16.mxu0 0
    %5171 = vmatpush1.bf16.msra.mxu0 %v5053
    %5172 = vmatprep.subr.bf16.mxu0 0
    %5173 = vmatpush1.bf16.msra.mxu0 %v5054
    %5174 = vmatprep.subr.bf16.mxu0 0
    %5175 = vmatpush1.bf16.msra.mxu0 %v5055
    %5176 = vmatprep.subr.bf16.mxu0 0
    %5177 = vmatpush1.bf16.msra.mxu0 %v5056
    %5178 = vmatprep.subr.bf16.mxu0 0
    %5179 = vmatpush1.bf16.msra.mxu0 %v5057
    %5180 = vmatprep.subr.bf16.mxu0 0
    %5181 = vmatpush1.bf16.msra.mxu0 %v5058
    %5182 = vmatprep.subr.bf16.mxu0 0
    %5183 = vmatpush1.bf16.msra.mxu0 0
    %5184 = vmatprep.subr.bf16.mxu0 0
    %5185 = vmatpush1.bf16.msra.mxu0 0
    %5186 = vmatprep.subr.bf16.mxu0 0
    %5187 = vmatpush1.bf16.msra.mxu0 0
    %5188 = vmatprep.subr.bf16.mxu0 0
    %5189 = vmatpush1.bf16.msra.mxu0 0
    %5190 = vmatprep.subr.bf16.mxu0 0
    %5191 = vmatpush1.bf16.msra.mxu0 0
    %5192 = vmatprep.subr.bf16.mxu0 0
    %5193 = vmatpush1.bf16.msra.mxu0 0
    %5194 = vmatprep.subr.bf16.mxu0 0
    %5195 = vmatpush1.bf16.msra.mxu0 0
    %5196 = vmatprep.mubr.bf16.mxu0 %v5069
    %5197 = vmatmul.mubr.bf16.gmra.mrb[0].mxu0 %v4901
    %v5198 = vpop.f32.mrb[0].mxu0
    %v5199 = vadd.f32 0.0, %v5198
    %v5200 = vpop.f32.mrb[0].mxu0
    %v5201 = vpop.f32.mrb[0].mxu0
    %v5202 = vadd.f32 0.0, %v5201
    %v5203 = vpop.f32.mrb[0].mxu0
    %5204 = vmatprep.mubr.bf16.mxu0 %v5072
    %5205 = vmatmul.mubr.bf16.gmra.mrb[0].mxu0 %v4904
    %v5206 = vpop.f32.mrb[0].mxu0
    %v5207 = vadd.f32 0.0, %v5206
    %v5208 = vpop.f32.mrb[0].mxu0
    %v5209 = vpop.f32.mrb[0].mxu0
    %v5210 = vadd.f32 0.0, %v5209
    %v5211 = vpop.f32.mrb[0].mxu0
    %5212 = vmatprep.mubr.bf16.mxu0 %v5075
    %5213 = vmatmul.mubr.bf16.gmra.mrb[0].mxu0 %v4907
    %v5214 = vpop.f32.mrb[0].mxu0
    %v5215 = vadd.f32 0.0, %v5214
    %v5216 = vpop.f32.mrb[0].mxu0
    %v5217 = vpop.f32.mrb[0].mxu0
    %v5218 = vadd.f32 0.0, %v5217
    %v5219 = vpop.f32.mrb[0].mxu0
    %5220 = vmatprep.mubr.bf16.mxu0 %v5078
    %5221 = vmatmul.mubr.bf16.gmra.mrb[0].mxu0 %v4910
    %v5222 = vpop.f32.mrb[0].mxu0
    %v5223 = vadd.f32 0.0, %v5222
    %v5224 = vpop.f32.mrb[0].mxu0
    %v5225 = vpop.f32.mrb[0].mxu0
    %v5226 = vadd.f32 0.0, %v5225
    %v5227 = vpop.f32.mrb[0].mxu0
    %5228 = vmatprep.mubr.bf16.mxu0 %v5081
    %5229 = vmatmul.mubr.bf16.gmra.mrb[0].mxu0 %v4913
    %v5230 = vpop.f32.mrb[0].mxu0
    %v5231 = vadd.f32 0.0, %v5230
    %v5232 = vpop.f32.mrb[0].mxu0
    %v5233 = vpop.f32.mrb[0].mxu0
    %v5234 = vadd.f32 0.0, %v5233
    %v5235 = vpop.f32.mrb[0].mxu0
    %5236 = vmatprep.mubr.bf16.mxu0 %v5084
    %5237 = vmatmul.mubr.bf16.gmra.mrb[0].mxu0 %v4916
    %v5238 = vpop.f32.mrb[0].mxu0
    %v5239 = vadd.f32 0.0, %v5238
    %v5240 = vpop.f32.mrb[0].mxu0
    %v5241 = vpop.f32.mrb[0].mxu0
    %v5242 = vadd.f32 0.0, %v5241
    %v5243 = vpop.f32.mrb[0].mxu0
    %5244 = vmatprep.mubr.bf16.mxu0 %v5087
    %5245 = vmatmul.mubr.bf16.gmra.mrb[0].mxu0 %v4919
    %v5246 = vpop.f32.mrb[0].mxu0
    %v5247 = vadd.f32 0.0, %v5246
    %v5248 = vpop.f32.mrb[0].mxu0
    %v5249 = vpop.f32.mrb[0].mxu0
    %v5250 = vadd.f32 0.0, %v5249
    %v5251 = vpop.f32.mrb[0].mxu0
    %5252 = vmatprep.mubr.bf16.mxu0 %v5090
    %5253 = vmatmul.mubr.bf16.gmra.mrb[0].mxu0 %v4922
    %v5254 = vpop.f32.mrb[0].mxu0
    %v5255 = vadd.f32 0.0, %v5254
    %v5256 = vpop.f32.mrb[0].mxu0
    %v5257 = vpop.f32.mrb[0].mxu0
    %v5258 = vadd.f32 0.0, %v5257
    %v5259 = vpop.f32.mrb[0].mxu0
    %5260 = vmatprep.mubr.bf16.mxu0 %v5093
    %5261 = vmatmul.mubr.bf16.gmra.mrb[0].mxu0 %v4925
    %v5262 = vpop.f32.mrb[0].mxu0
    %v5263 = vadd.f32 0.0, %v5262
    %v5264 = vpop.f32.mrb[0].mxu0
    %v5265 = vpop.f32.mrb[0].mxu0
    %v5266 = vadd.f32 0.0, %v5265
    %v5267 = vpop.f32.mrb[0].mxu0
    %5268 = vmatprep.mubr.bf16.mxu0 %v5096
    %5269 = vmatmul.mubr.bf16.gmra.mrb[0].mxu0 %v4928
    %v5270 = vpop.f32.mrb[0].mxu0
    %v5271 = vadd.f32 0.0, %v5270
    %v5272 = vpop.f32.mrb[0].mxu0
    %v5273 = vpop.f32.mrb[0].mxu0
    %v5274 = vadd.f32 0.0, %v5273
    %v5275 = vpop.f32.mrb[0].mxu0
    %5276 = vmatprep.mubr.bf16.mxu0 %v5099
    %5277 = vmatmul.mubr.bf16.gmra.mrb[0].mxu0 %v4931
    %v5278 = vpop.f32.mrb[0].mxu0
    %v5279 = vadd.f32 0.0, %v5278
    %v5280 = vpop.f32.mrb[0].mxu0
    %v5281 = vpop.f32.mrb[0].mxu0
    %v5282 = vadd.f32 0.0, %v5281
    %v5283 = vpop.f32.mrb[0].mxu0
    %5284 = vmatprep.mubr.bf16.mxu0 %v5102
    %5285 = vmatmul.mubr.bf16.gmra.mrb[0].mxu0 %v4934
    %v5286 = vpop.f32.mrb[0].mxu0
    %v5287 = vadd.f32 0.0, %v5286
    %v5288 = vpop.f32.mrb[0].mxu0
    %v5289 = vpop.f32.mrb[0].mxu0
    %v5290 = vadd.f32 0.0, %v5289
    %v5291 = vpop.f32.mrb[0].mxu0
    %5292 = vmatprep.mubr.bf16.mxu0 %v5105
    %5293 = vmatmul.mubr.bf16.gmra.mrb[0].mxu0 %v4937
    %v5294 = vpop.f32.mrb[0].mxu0
    %v5295 = vadd.f32 0.0, %v5294
    %v5296 = vpop.f32.mrb[0].mxu0
    %v5297 = vpop.f32.mrb[0].mxu0
    %v5298 = vadd.f32 0.0, %v5297
    %v5299 = vpop.f32.mrb[0].mxu0
    %5300 = vmatprep.mubr.bf16.mxu0 %v5108
    %5301 = vmatmul.mubr.bf16.gmra.mrb[0].mxu0 %v4940
    %v5302 = vpop.f32.mrb[0].mxu0
    %v5303 = vadd.f32 0.0, %v5302
    %v5304 = vpop.f32.mrb[0].mxu0
    %v5305 = vpop.f32.mrb[0].mxu0
    %v5306 = vadd.f32 0.0, %v5305
    %v5307 = vpop.f32.mrb[0].mxu0
    %5308 = vmatprep.mubr.bf16.mxu0 %v5111
    %5309 = vmatmul.mubr.bf16.gmra.mrb[0].mxu0 %v4943
    %v5310 = vpop.f32.mrb[0].mxu0
    %v5311 = vadd.f32 0.0, %v5310
    %v5312 = vpop.f32.mrb[0].mxu0
    %v5313 = vpop.f32.mrb[0].mxu0
    %v5314 = vadd.f32 0.0, %v5313
    %v5315 = vpop.f32.mrb[0].mxu0
    %5316 = vmatprep.mubr.bf16.mxu0 %v5114
    %5317 = vmatmul.mubr.bf16.gmra.mrb[0].mxu0 %v4946
    %v5318 = vpop.f32.mrb[0].mxu0
    %v5319 = vadd.f32 0.0, %v5318
    %v5320 = vpop.f32.mrb[0].mxu0
    %v5321 = vpop.f32.mrb[0].mxu0
    %v5322 = vadd.f32 0.0, %v5321
    %v5323 = vpop.f32.mrb[0].mxu0
    %5324 = vmatprep.mubr.bf16.mxu0 %v5117
    %5325 = vmatmul.mubr.bf16.gmra.mrb[0].mxu0 %v4949
    %v5326 = vpop.f32.mrb[0].mxu0
    %v5327 = vadd.f32 0.0, %v5326
    %v5328 = vpop.f32.mrb[0].mxu0
    %v5329 = vpop.f32.mrb[0].mxu0
    %v5330 = vadd.f32 0.0, %v5329
    %v5331 = vpop.f32.mrb[0].mxu0
    %5332 = vmatprep.mubr.bf16.mxu0 %v5120
    %5333 = vmatmul.mubr.bf16.gmra.mrb[0].mxu0 %v4952
    %v5334 = vpop.f32.mrb[0].mxu0
    %v5335 = vadd.f32 0.0, %v5334
    %v5336 = vpop.f32.mrb[0].mxu0
    %v5337 = vpop.f32.mrb[0].mxu0
    %v5338 = vadd.f32 0.0, %v5337
    %v5339 = vpop.f32.mrb[0].mxu0
    %5340 = vmatprep.mubr.bf16.mxu0 %v5123
    %5341 = vmatmul.mubr.bf16.gmra.mrb[0].mxu0 %v4955
    %v5342 = vpop.f32.mrb[0].mxu0
    %v5343 = vadd.f32 0.0, %v5342
    %v5344 = vpop.f32.mrb[0].mxu0
    %v5345 = vpop.f32.mrb[0].mxu0
    %v5346 = vadd.f32 0.0, %v5345
    %v5347 = vpop.f32.mrb[0].mxu0
    %5348 = vmatprep.mubr.bf16.mxu0 %v5126
    %5349 = vmatmul.mubr.bf16.gmra.mrb[0].mxu0 %v4958
    %v5350 = vpop.f32.mrb[0].mxu0
    %v5351 = vadd.f32 0.0, %v5350
    %v5352 = vpop.f32.mrb[0].mxu0
    %v5353 = vpop.f32.mrb[0].mxu0
    %v5354 = vadd.f32 0.0, %v5353
    %v5355 = vpop.f32.mrb[0].mxu0
    %5356 = vmatprep.mubr.bf16.mxu0 %v5129
    %5357 = vmatmul.mubr.bf16.gmra.mrb[0].mxu0 %v4961
    %v5358 = vpop.f32.mrb[0].mxu0
    %v5359 = vadd.f32 0.0, %v5358
    %v5360 = vpop.f32.mrb[0].mxu0
    %v5361 = vpop.f32.mrb[0].mxu0
    %v5362 = vadd.f32 0.0, %v5361
    %v5363 = vpop.f32.mrb[0].mxu0
    %5364 = vmatprep.mubr.bf16.mxu0 %v5132
    %5365 = vmatmul.mubr.bf16.gmra.mrb[0].mxu0 %v4964
    %v5366 = vpop.f32.mrb[0].mxu0
    %v5367 = vadd.f32 0.0, %v5366
    %v5368 = vpop.f32.mrb[0].mxu0
    %v5369 = vpop.f32.mrb[0].mxu0
    %v5370 = vadd.f32 0.0, %v5369
    %v5371 = vpop.f32.mrb[0].mxu0
    %5372 = vmatprep.mubr.bf16.mxu0 %v5135
    %5373 = vmatmul.mubr.bf16.gmra.mrb[0].mxu0 %v4967
    %v5374 = vpop.f32.mrb[0].mxu0
    %v5375 = vadd.f32 0.0, %v5374
    %v5376 = vpop.f32.mrb[0].mxu0
    %v5377 = vpop.f32.mrb[0].mxu0
    %v5378 = vadd.f32 0.0, %v5377
    %v5379 = vpop.f32.mrb[0].mxu0
    %5380 = vmatprep.mubr.bf16.mxu0 %v5138
    %5381 = vmatmul.mubr.bf16.gmra.mrb[0].mxu0 %v4970
    %v5382 = vpop.f32.mrb[0].mxu0
    %v5383 = vadd.f32 0.0, %v5382
    %v5384 = vpop.f32.mrb[0].mxu0
    %v5385 = vpop.f32.mrb[0].mxu0
    %v5386 = vadd.f32 0.0, %v5385
    %v5387 = vpop.f32.mrb[0].mxu0
    %5388 = vmatprep.mubr.bf16.mxu0 %v5141
    %5389 = vmatmul.mubr.bf16.gmra.mrb[0].mxu0 %v4973
    %v5390 = vpop.f32.mrb[0].mxu0
    %v5391 = vadd.f32 0.0, %v5390
    %v5392 = vpop.f32.mrb[0].mxu0
    %v5393 = vpop.f32.mrb[0].mxu0
    %v5394 = vadd.f32 0.0, %v5393
    %v5395 = vpop.f32.mrb[0].mxu0
    %5396 = vmatprep.mubr.bf16.mxu0 %v5144
    %5397 = vmatmul.mubr.bf16.gmra.mrb[0].mxu0 %v4976
    %v5398 = vpop.f32.mrb[0].mxu0
    %v5399 = vadd.f32 0.0, %v5398
    %v5400 = vpop.f32.mrb[0].mxu0
    %v5401 = vpop.f32.mrb[0].mxu0
    %v5402 = vadd.f32 0.0, %v5401
    %v5403 = vpop.f32.mrb[0].mxu0
    %5404 = vmatprep.mubr.bf16.mxu0 %v5147
    %5405 = vmatmul.mubr.bf16.gmra.mrb[0].mxu0 %v4979
    %v5406 = vpop.f32.mrb[0].mxu0
    %v5407 = vadd.f32 0.0, %v5406
    %v5408 = vpop.f32.mrb[0].mxu0
    %v5409 = vpop.f32.mrb[0].mxu0
    %v5410 = vadd.f32 0.0, %v5409
    %v5411 = vpop.f32.mrb[0].mxu0
    %5412 = vmatprep.mubr.bf16.mxu0 %v5150
    %5413 = vmatmul.mubr.bf16.gmra.mrb[0].mxu0 %v4982
    %v5414 = vpop.f32.mrb[0].mxu0
    %v5415 = vadd.f32 0.0, %v5414
    %v5416 = vpop.f32.mrb[0].mxu0
    %v5417 = vpop.f32.mrb[0].mxu0
    %v5418 = vadd.f32 0.0, %v5417
    %v5419 = vpop.f32.mrb[0].mxu0
    %5420 = vmatprep.mubr.bf16.mxu0 %v5153
    %5421 = vmatmul.mubr.bf16.gmra.mrb[0].mxu0 %v4985
    %v5422 = vpop.f32.mrb[0].mxu0
    %v5423 = vadd.f32 0.0, %v5422
    %v5424 = vpop.f32.mrb[0].mxu0
    %v5425 = vpop.f32.mrb[0].mxu0
    %v5426 = vadd.f32 0.0, %v5425
    %v5427 = vpop.f32.mrb[0].mxu0
    %5428 = vmatprep.mubr.bf16.mxu0 %v5156
    %5429 = vmatmul.mubr.bf16.gmra.mrb[0].mxu0 %v4988
    %v5430 = vpop.f32.mrb[0].mxu0
    %v5431 = vadd.f32 0.0, %v5430
    %v5432 = vpop.f32.mrb[0].mxu0
    %v5433 = vpop.f32.mrb[0].mxu0
    %v5434 = vadd.f32 0.0, %v5433
    %v5435 = vpop.f32.mrb[0].mxu0
    %5436 = vmatprep.mubr.bf16.mxu0 %v5159
    %5437 = vmatmul.mubr.bf16.gmra.mrb[0].mxu0 %v4991
    %v5438 = vpop.f32.mrb[0].mxu0
    %v5439 = vadd.f32 0.0, %v5438
    %v5440 = vpop.f32.mrb[0].mxu0
    %v5441 = vpop.f32.mrb[0].mxu0
    %v5442 = vadd.f32 0.0, %v5441
    %v5443 = vpop.f32.mrb[0].mxu0
    %5444 = vmatprep.mubr.bf16.mxu0 %v5162
    %5445 = vmatmul.mubr.bf16.gmra.mrb[0].mxu0 %v4994
    %v5446 = vpop.f32.mrb[0].mxu0
    %v5447 = vadd.f32 0.0, %v5446
    %v5448 = vpop.f32.mrb[0].mxu0
    %v5449 = vpop.f32.mrb[0].mxu0
    %v5450 = vadd.f32 0.0, %v5449
    %v5451 = vpop.f32.mrb[0].mxu0
    %5452 = vdwg.mxu0
    %v5453 = vld [vmem:[%s2] sm:$0x1]
    %v5455 = vlaneseq
    %v5456 = vshrl.u32 %v5455, 7
    %v5457 = vsub.s32 0, %v5456
    %v5458 = vrot.slane %v5453, %v5457
    %v5460 = vmul.f32 %v5199, %v5458
    %v5461 = vmul.f32 %v5202, %v5458
    %v5462 = vmul.f32 %v5207, %v5458
    %v5463 = vmul.f32 %v5210, %v5458
    %v5464 = vmul.f32 %v5215, %v5458
    %v5465 = vmul.f32 %v5218, %v5458
    %v5466 = vmul.f32 %v5223, %v5458
    %v5467 = vmul.f32 %v5226, %v5458
    %v5468 = vmul.f32 %v5231, %v5458
    %v5469 = vmul.f32 %v5234, %v5458
    %v5470 = vmul.f32 %v5239, %v5458
    %v5471 = vmul.f32 %v5242, %v5458
    %v5472 = vmul.f32 %v5247, %v5458
    %v5473 = vmul.f32 %v5250, %v5458
    %v5474 = vmul.f32 %v5255, %v5458
    %v5475 = vmul.f32 %v5258, %v5458
    %v5476 = vmul.f32 %v5263, %v5458
    %v5477 = vmul.f32 %v5266, %v5458
    %v5478 = vmul.f32 %v5271, %v5458
    %v5479 = vmul.f32 %v5274, %v5458
    %v5480 = vmul.f32 %v5279, %v5458
    %v5481 = vmul.f32 %v5282, %v5458
    %v5482 = vmul.f32 %v5287, %v5458
    %v5483 = vmul.f32 %v5290, %v5458
    %v5484 = vmul.f32 %v5295, %v5458
    %v5485 = vmul.f32 %v5298, %v5458
    %v5486 = vmul.f32 %v5303, %v5458
    %v5487 = vmul.f32 %v5306, %v5458
    %v5488 = vmul.f32 %v5311, %v5458
    %v5489 = vmul.f32 %v5314, %v5458
    %v5490 = vmul.f32 %v5319, %v5458
    %v5491 = vmul.f32 %v5322, %v5458
    %v5492 = vmul.f32 %v5327, %v5458
    %v5493 = vmul.f32 %v5330, %v5458
    %v5494 = vmul.f32 %v5335, %v5458
    %v5495 = vmul.f32 %v5338, %v5458
    %v5496 = vmul.f32 %v5343, %v5458
    %v5497 = vmul.f32 %v5346, %v5458
    %v5498 = vmul.f32 %v5351, %v5458
    %v5499 = vmul.f32 %v5354, %v5458
    %v5500 = vmul.f32 %v5359, %v5458
    %v5501 = vmul.f32 %v5362, %v5458
    %v5502 = vmul.f32 %v5367, %v5458
    %v5503 = vmul.f32 %v5370, %v5458
    %v5504 = vmul.f32 %v5375, %v5458
    %v5505 = vmul.f32 %v5378, %v5458
    %v5506 = vmul.f32 %v5383, %v5458
    %v5507 = vmul.f32 %v5386, %v5458
    %v5508 = vmul.f32 %v5391, %v5458
    %v5509 = vmul.f32 %v5394, %v5458
    %v5510 = vmul.f32 %v5399, %v5458
    %v5511 = vmul.f32 %v5402, %v5458
    %v5512 = vmul.f32 %v5407, %v5458
    %v5513 = vmul.f32 %v5410, %v5458
    %v5514 = vmul.f32 %v5415, %v5458
    %v5515 = vmul.f32 %v5418, %v5458
    %v5516 = vmul.f32 %v5423, %v5458
    %v5517 = vmul.f32 %v5426, %v5458
    %v5518 = vmul.f32 %v5431, %v5458
    %v5519 = vmul.f32 %v5434, %v5458
    %v5520 = vmul.f32 %v5439, %v5458
    %v5521 = vmul.f32 %v5442, %v5458
    %v5522 = vmul.f32 %v5447, %v5458
    %v5523 = vmul.f32 %v5450, %v5458
    %v5524 = vld [vmem:[%s3] sm:$0x1]
    %v5526 = vlaneseq
    %v5527 = vshrl.u32 %v5526, 7
    %v5528 = vsub.s32 0, %v5527
    %v5529 = vrot.slane %v5524, %v5528
    %v5531 = vadd.f32 %v5460, %v5529
    %v5532 = vadd.f32 %v5461, %v5529
    %v5533 = vadd.f32 %v5462, %v5529
    %v5534 = vadd.f32 %v5463, %v5529
    %v5535 = vadd.f32 %v5464, %v5529
    %v5536 = vadd.f32 %v5465, %v5529
    %v5537 = vadd.f32 %v5466, %v5529
    %v5538 = vadd.f32 %v5467, %v5529
    %v5539 = vadd.f32 %v5468, %v5529
    %v5540 = vadd.f32 %v5469, %v5529
    %v5541 = vadd.f32 %v5470, %v5529
    %v5542 = vadd.f32 %v5471, %v5529
    %v5543 = vadd.f32 %v5472, %v5529
    %v5544 = vadd.f32 %v5473, %v5529
    %v5545 = vadd.f32 %v5474, %v5529
    %v5546 = vadd.f32 %v5475, %v5529
    %v5547 = vadd.f32 %v5476, %v5529
    %v5548 = vadd.f32 %v5477, %v5529
    %v5549 = vadd.f32 %v5478, %v5529
    %v5550 = vadd.f32 %v5479, %v5529
    %v5551 = vadd.f32 %v5480, %v5529
    %v5552 = vadd.f32 %v5481, %v5529
    %v5553 = vadd.f32 %v5482, %v5529
    %v5554 = vadd.f32 %v5483, %v5529
    %v5555 = vadd.f32 %v5484, %v5529
    %v5556 = vadd.f32 %v5485, %v5529
    %v5557 = vadd.f32 %v5486, %v5529
    %v5558 = vadd.f32 %v5487, %v5529
    %v5559 = vadd.f32 %v5488, %v5529
    %v5560 = vadd.f32 %v5489, %v5529
    %v5561 = vadd.f32 %v5490, %v5529
    %v5562 = vadd.f32 %v5491, %v5529
    %v5563 = vadd.f32 %v5492, %v5529
    %v5564 = vadd.f32 %v5493, %v5529
    %v5565 = vadd.f32 %v5494, %v5529
    %v5566 = vadd.f32 %v5495, %v5529
    %v5567 = vadd.f32 %v5496, %v5529
    %v5568 = vadd.f32 %v5497, %v5529
    %v5569 = vadd.f32 %v5498, %v5529
    %v5570 = vadd.f32 %v5499, %v5529
    %v5571 = vadd.f32 %v5500, %v5529
    %v5572 = vadd.f32 %v5501, %v5529
    %v5573 = vadd.f32 %v5502, %v5529
    %v5574 = vadd.f32 %v5503, %v5529
    %v5575 = vadd.f32 %v5504, %v5529
    %v5576 = vadd.f32 %v5505, %v5529
    %v5577 = vadd.f32 %v5506, %v5529
    %v5578 = vadd.f32 %v5507, %v5529
    %v5579 = vadd.f32 %v5508, %v5529
    %v5580 = vadd.f32 %v5509, %v5529
    %v5581 = vadd.f32 %v5510, %v5529
    %v5582 = vadd.f32 %v5511, %v5529
    %v5583 = vadd.f32 %v5512, %v5529
    %v5584 = vadd.f32 %v5513, %v5529
    %v5585 = vadd.f32 %v5514, %v5529
    %v5586 = vadd.f32 %v5515, %v5529
    %v5587 = vadd.f32 %v5516, %v5529
    %v5588 = vadd.f32 %v5517, %v5529
    %v5589 = vadd.f32 %v5518, %v5529
    %v5590 = vadd.f32 %v5519, %v5529
    %v5591 = vadd.f32 %v5520, %v5529
    %v5592 = vadd.f32 %v5521, %v5529
    %v5593 = vadd.f32 %v5522, %v5529
    %v5594 = vadd.f32 %v5523, %v5529
    %vm5595 = vcmp.ge.f32.partialorder %v5531, 0.0
    %vm5596 = vcmp.ge.f32.partialorder %v5532, 0.0
    %vm5597 = vcmp.ge.f32.partialorder %v5533, 0.0
    %vm5598 = vcmp.ge.f32.partialorder %v5534, 0.0
    %vm5599 = vcmp.ge.f32.partialorder %v5535, 0.0
    %vm5600 = vcmp.ge.f32.partialorder %v5536, 0.0
    %vm5601 = vcmp.ge.f32.partialorder %v5537, 0.0
    %vm5602 = vcmp.ge.f32.partialorder %v5538, 0.0
    %vm5603 = vcmp.ge.f32.partialorder %v5539, 0.0
    %vm5604 = vcmp.ge.f32.partialorder %v5540, 0.0
    %vm5605 = vcmp.ge.f32.partialorder %v5541, 0.0
    %vm5606 = vcmp.ge.f32.partialorder %v5542, 0.0
    %vm5607 = vcmp.ge.f32.partialorder %v5543, 0.0
    %vm5608 = vcmp.ge.f32.partialorder %v5544, 0.0
    %vm5609 = vcmp.ge.f32.partialorder %v5545, 0.0
    %vm5610 = vcmp.ge.f32.partialorder %v5546, 0.0
    %vm5611 = vcmp.ge.f32.partialorder %v5547, 0.0
    %vm5612 = vcmp.ge.f32.partialorder %v5548, 0.0
    %vm5613 = vcmp.ge.f32.partialorder %v5549, 0.0
    %vm5614 = vcmp.ge.f32.partialorder %v5550, 0.0
    %vm5615 = vcmp.ge.f32.partialorder %v5551, 0.0
    %vm5616 = vcmp.ge.f32.partialorder %v5552, 0.0
    %vm5617 = vcmp.ge.f32.partialorder %v5553, 0.0
    %vm5618 = vcmp.ge.f32.partialorder %v5554, 0.0
    %vm5619 = vcmp.ge.f32.partialorder %v5555, 0.0
    %vm5620 = vcmp.ge.f32.partialorder %v5556, 0.0
    %vm5621 = vcmp.ge.f32.partialorder %v5557, 0.0
    %vm5622 = vcmp.ge.f32.partialorder %v5558, 0.0
    %vm5623 = vcmp.ge.f32.partialorder %v5559, 0.0
    %vm5624 = vcmp.ge.f32.partialorder %v5560, 0.0
    %vm5625 = vcmp.ge.f32.partialorder %v5561, 0.0
    %vm5626 = vcmp.ge.f32.partialorder %v5562, 0.0
    %vm5627 = vcmp.ge.f32.partialorder %v5563, 0.0
    %vm5628 = vcmp.ge.f32.partialorder %v5564, 0.0
    %vm5629 = vcmp.ge.f32.partialorder %v5565, 0.0
    %vm5630 = vcmp.ge.f32.partialorder %v5566, 0.0
    %vm5631 = vcmp.ge.f32.partialorder %v5567, 0.0
    %vm5632 = vcmp.ge.f32.partialorder %v5568, 0.0
    %vm5633 = vcmp.ge.f32.partialorder %v5569, 0.0
    %vm5634 = vcmp.ge.f32.partialorder %v5570, 0.0
    %vm5635 = vcmp.ge.f32.partialorder %v5571, 0.0
    %vm5636 = vcmp.ge.f32.partialorder %v5572, 0.0
    %vm5637 = vcmp.ge.f32.partialorder %v5573, 0.0
    %vm5638 = vcmp.ge.f32.partialorder %v5574, 0.0
    %vm5639 = vcmp.ge.f32.partialorder %v5575, 0.0
    %vm5640 = vcmp.ge.f32.partialorder %v5576, 0.0
    %vm5641 = vcmp.ge.f32.partialorder %v5577, 0.0
    %vm5642 = vcmp.ge.f32.partialorder %v5578, 0.0
    %vm5643 = vcmp.ge.f32.partialorder %v5579, 0.0
    %vm5644 = vcmp.ge.f32.partialorder %v5580, 0.0
    %vm5645 = vcmp.ge.f32.partialorder %v5581, 0.0
    %vm5646 = vcmp.ge.f32.partialorder %v5582, 0.0
    %vm5647 = vcmp.ge.f32.partialorder %v5583, 0.0
    %vm5648 = vcmp.ge.f32.partialorder %v5584, 0.0
    %vm5649 = vcmp.ge.f32.partialorder %v5585, 0.0
    %vm5650 = vcmp.ge.f32.partialorder %v5586, 0.0
    %vm5651 = vcmp.ge.f32.partialorder %v5587, 0.0
    %vm5652 = vcmp.ge.f32.partialorder %v5588, 0.0
    %vm5653 = vcmp.ge.f32.partialorder %v5589, 0.0
    %vm5654 = vcmp.ge.f32.partialorder %v5590, 0.0
    %vm5655 = vcmp.ge.f32.partialorder %v5591, 0.0
    %vm5656 = vcmp.ge.f32.partialorder %v5592, 0.0
    %vm5657 = vcmp.ge.f32.partialorder %v5593, 0.0
    %vm5658 = vcmp.ge.f32.partialorder %v5594, 0.0
    %v5659 = vmul.f32 %v5531, 0.1
    %v5660 = vmul.f32 %v5532, 0.1
    %v5661 = vmul.f32 %v5533, 0.1
    %v5662 = vmul.f32 %v5534, 0.1
    %v5663 = vmul.f32 %v5535, 0.1
    %v5664 = vmul.f32 %v5536, 0.1
    %v5665 = vmul.f32 %v5537, 0.1
    %v5666 = vmul.f32 %v5538, 0.1
    %v5667 = vmul.f32 %v5539, 0.1
    %v5668 = vmul.f32 %v5540, 0.1
    %v5669 = vmul.f32 %v5541, 0.1
    %v5670 = vmul.f32 %v5542, 0.1
    %v5671 = vmul.f32 %v5543, 0.1
    %v5672 = vmul.f32 %v5544, 0.1
    %v5673 = vmul.f32 %v5545, 0.1
    %v5674 = vmul.f32 %v5546, 0.1
    %v5675 = vmul.f32 %v5547, 0.1
    %v5676 = vmul.f32 %v5548, 0.1
    %v5677 = vmul.f32 %v5549, 0.1
    %v5678 = vmul.f32 %v5550, 0.1
    %v5679 = vmul.f32 %v5551, 0.1
    %v5680 = vmul.f32 %v5552, 0.1
    %v5681 = vmul.f32 %v5553, 0.1
    %v5682 = vmul.f32 %v5554, 0.1
    %v5683 = vmul.f32 %v5555, 0.1
    %v5684 = vmul.f32 %v5556, 0.1
    %v5685 = vmul.f32 %v5557, 0.1
    %v5686 = vmul.f32 %v5558, 0.1
    %v5687 = vmul.f32 %v5559, 0.1
    %v5688 = vmul.f32 %v5560, 0.1
    %v5689 = vmul.f32 %v5561, 0.1
    %v5690 = vmul.f32 %v5562, 0.1
    %v5691 = vmul.f32 %v5563, 0.1
    %v5692 = vmul.f32 %v5564, 0.1
    %v5693 = vmul.f32 %v5565, 0.1
    %v5694 = vmul.f32 %v5566, 0.1
    %v5695 = vmul.f32 %v5567, 0.1
    %v5696 = vmul.f32 %v5568, 0.1
    %v5697 = vmul.f32 %v5569, 0.1
    %v5698 = vmul.f32 %v5570, 0.1
    %v5699 = vmul.f32 %v5571, 0.1
    %v5700 = vmul.f32 %v5572, 0.1
    %v5701 = vmul.f32 %v5573, 0.1
    %v5702 = vmul.f32 %v5574, 0.1
    %v5703 = vmul.f32 %v5575, 0.1
    %v5704 = vmul.f32 %v5576, 0.1
    %v5705 = vmul.f32 %v5577, 0.1
    %v5706 = vmul.f32 %v5578, 0.1
    %v5707 = vmul.f32 %v5579, 0.1
    %v5708 = vmul.f32 %v5580, 0.1
    %v5709 = vmul.f32 %v5581, 0.1
    %v5710 = vmul.f32 %v5582, 0.1
    %v5711 = vmul.f32 %v5583, 0.1
    %v5712 = vmul.f32 %v5584, 0.1
    %v5713 = vmul.f32 %v5585, 0.1
    %v5714 = vmul.f32 %v5586, 0.1
    %v5715 = vmul.f32 %v5587, 0.1
    %v5716 = vmul.f32 %v5588, 0.1
    %v5717 = vmul.f32 %v5589, 0.1
    %v5718 = vmul.f32 %v5590, 0.1
    %v5719 = vmul.f32 %v5591, 0.1
    %v5720 = vmul.f32 %v5592, 0.1
    %v5721 = vmul.f32 %v5593, 0.1
    %v5722 = vmul.f32 %v5594, 0.1
    %v5723 = vsel %vm5595, %v5531, %v5659
    %v5724 = vsel %vm5596, %v5532, %v5660
    %v5725 = vsel %vm5597, %v5533, %v5661
    %v5726 = vsel %vm5598, %v5534, %v5662
    %v5727 = vsel %vm5599, %v5535, %v5663
    %v5728 = vsel %vm5600, %v5536, %v5664
    %v5729 = vsel %vm5601, %v5537, %v5665
    %v5730 = vsel %vm5602, %v5538, %v5666
    %v5731 = vsel %vm5603, %v5539, %v5667
    %v5732 = vsel %vm5604, %v5540, %v5668
    %v5733 = vsel %vm5605, %v5541, %v5669
    %v5734 = vsel %vm5606, %v5542, %v5670
    %v5735 = vsel %vm5607, %v5543, %v5671
    %v5736 = vsel %vm5608, %v5544, %v5672
    %v5737 = vsel %vm5609, %v5545, %v5673
    %v5738 = vsel %vm5610, %v5546, %v5674
    %v5739 = vsel %vm5611, %v5547, %v5675
    %v5740 = vsel %vm5612, %v5548, %v5676
    %v5741 = vsel %vm5613, %v5549, %v5677
    %v5742 = vsel %vm5614, %v5550, %v5678
    %v5743 = vsel %vm5615, %v5551, %v5679
    %v5744 = vsel %vm5616, %v5552, %v5680
    %v5745 = vsel %vm5617, %v5553, %v5681
    %v5746 = vsel %vm5618, %v5554, %v5682
    %v5747 = vsel %vm5619, %v5555, %v5683
    %v5748 = vsel %vm5620, %v5556, %v5684
    %v5749 = vsel %vm5621, %v5557, %v5685
    %v5750 = vsel %vm5622, %v5558, %v5686
    %v5751 = vsel %vm5623, %v5559, %v5687
    %v5752 = vsel %vm5624, %v5560, %v5688
    %v5753 = vsel %vm5625, %v5561, %v5689
    %v5754 = vsel %vm5626, %v5562, %v5690
    %v5755 = vsel %vm5627, %v5563, %v5691
    %v5756 = vsel %vm5628, %v5564, %v5692
    %v5757 = vsel %vm5629, %v5565, %v5693
    %v5758 = vsel %vm5630, %v5566, %v5694
    %v5759 = vsel %vm5631, %v5567, %v5695
    %v5760 = vsel %vm5632, %v5568, %v5696
    %v5761 = vsel %vm5633, %v5569, %v5697
    %v5762 = vsel %vm5634, %v5570, %v5698
    %v5763 = vsel %vm5635, %v5571, %v5699
    %v5764 = vsel %vm5636, %v5572, %v5700
    %v5765 = vsel %vm5637, %v5573, %v5701
    %v5766 = vsel %vm5638, %v5574, %v5702
    %v5767 = vsel %vm5639, %v5575, %v5703
    %v5768 = vsel %vm5640, %v5576, %v5704
    %v5769 = vsel %vm5641, %v5577, %v5705
    %v5770 = vsel %vm5642, %v5578, %v5706
    %v5771 = vsel %vm5643, %v5579, %v5707
    %v5772 = vsel %vm5644, %v5580, %v5708
    %v5773 = vsel %vm5645, %v5581, %v5709
    %v5774 = vsel %vm5646, %v5582, %v5710
    %v5775 = vsel %vm5647, %v5583, %v5711
    %v5776 = vsel %vm5648, %v5584, %v5712
    %v5777 = vsel %vm5649, %v5585, %v5713
    %v5778 = vsel %vm5650, %v5586, %v5714
    %v5779 = vsel %vm5651, %v5587, %v5715
    %v5780 = vsel %vm5652, %v5588, %v5716
    %v5781 = vsel %vm5653, %v5589, %v5717
    %v5782 = vsel %vm5654, %v5590, %v5718
    %v5783 = vsel %vm5655, %v5591, %v5719
    %v5784 = vsel %vm5656, %v5592, %v5720
    %v5785 = vsel %vm5657, %v5593, %v5721
    %v5786 = vsel %vm5658, %v5594, %v5722
    %v5787 = vunpack.c.l.bf16 %v33
    %v5788 = vunpack.c.l.bf16 %v34
    %v5789 = vunpack.c.l.bf16 %v35
    %v5790 = vunpack.c.l.bf16 %v36
    %v5791 = vunpack.c.l.bf16 %v37
    %v5792 = vunpack.c.l.bf16 %v38
    %v5793 = vunpack.c.l.bf16 %v39
    %v5794 = vunpack.c.l.bf16 %v40
    %v5795 = vunpack.c.l.bf16 %v41
    %v5796 = vunpack.c.l.bf16 %v42
    %v5797 = vunpack.c.l.bf16 %v43
    %v5798 = vunpack.c.l.bf16 %v44
    %v5799 = vunpack.c.l.bf16 %v45
    %v5800 = vunpack.c.l.bf16 %v46
    %v5801 = vunpack.c.l.bf16 %v47
    %v5802 = vunpack.c.l.bf16 %v48
    %v5803 = vunpack.c.l.bf16 %v49
    %v5804 = vunpack.c.l.bf16 %v50
    %v5805 = vunpack.c.l.bf16 %v51
    %v5806 = vunpack.c.l.bf16 %v52
    %v5807 = vunpack.c.l.bf16 %v53
    %v5808 = vunpack.c.l.bf16 %v54
    %v5809 = vunpack.c.l.bf16 %v55
    %v5810 = vunpack.c.l.bf16 %v56
    %v5811 = vunpack.c.l.bf16 %v57
    %v5812 = vunpack.c.l.bf16 %v58
    %v5813 = vunpack.c.l.bf16 %v59
    %v5814 = vunpack.c.l.bf16 %v60
    %v5815 = vunpack.c.l.bf16 %v61
    %v5816 = vunpack.c.l.bf16 %v62
    %v5817 = vunpack.c.l.bf16 %v63
    %v5818 = vunpack.c.l.bf16 %v64
    %v5819 = vunpack.c.l.bf16 %v65
    %v5820 = vunpack.c.l.bf16 %v66
    %v5821 = vunpack.c.l.bf16 %v67
    %v5822 = vunpack.c.l.bf16 %v68
    %v5823 = vunpack.c.l.bf16 %v69
    %v5824 = vunpack.c.l.bf16 %v70
    %v5825 = vunpack.c.l.bf16 %v71
    %v5826 = vunpack.c.l.bf16 %v72
    %v5827 = vunpack.c.l.bf16 %v73
    %v5828 = vunpack.c.l.bf16 %v74
    %v5829 = vunpack.c.l.bf16 %v75
    %v5830 = vunpack.c.l.bf16 %v76
    %v5831 = vunpack.c.l.bf16 %v77
    %v5832 = vunpack.c.l.bf16 %v78
    %v5833 = vunpack.c.l.bf16 %v79
    %v5834 = vunpack.c.l.bf16 %v80
    %v5835 = vunpack.c.l.bf16 %v81
    %v5836 = vunpack.c.l.bf16 %v82
    %v5837 = vunpack.c.l.bf16 %v83
    %v5838 = vunpack.c.l.bf16 %v84
    %v5839 = vunpack.c.l.bf16 %v85
    %v5840 = vunpack.c.l.bf16 %v86
    %v5841 = vunpack.c.l.bf16 %v87
    %v5842 = vunpack.c.l.bf16 %v88
    %v5843 = vunpack.c.l.bf16 %v89
    %v5844 = vunpack.c.l.bf16 %v90
    %v5845 = vunpack.c.l.bf16 %v91
    %v5846 = vunpack.c.l.bf16 %v92
    %v5847 = vunpack.c.l.bf16 %v93
    %v5848 = vunpack.c.l.bf16 %v94
    %v5849 = vunpack.c.l.bf16 %v95
    %v5850 = vunpack.c.l.bf16 %v96
    %v5851 = vadd.f32 %v5787, %v5723
    %v5852 = vadd.f32 %v5788, %v5724
    %v5853 = vadd.f32 %v5789, %v5725
    %v5854 = vadd.f32 %v5790, %v5726
    %v5855 = vadd.f32 %v5791, %v5727
    %v5856 = vadd.f32 %v5792, %v5728
    %v5857 = vadd.f32 %v5793, %v5729
    %v5858 = vadd.f32 %v5794, %v5730
    %v5859 = vadd.f32 %v5795, %v5731
    %v5860 = vadd.f32 %v5796, %v5732
    %v5861 = vadd.f32 %v5797, %v5733
    %v5862 = vadd.f32 %v5798, %v5734
    %v5863 = vadd.f32 %v5799, %v5735
    %v5864 = vadd.f32 %v5800, %v5736
    %v5865 = vadd.f32 %v5801, %v5737
    %v5866 = vadd.f32 %v5802, %v5738
    %v5867 = vadd.f32 %v5803, %v5739
    %v5868 = vadd.f32 %v5804, %v5740
    %v5869 = vadd.f32 %v5805, %v5741
    %v5870 = vadd.f32 %v5806, %v5742
    %v5871 = vadd.f32 %v5807, %v5743
    %v5872 = vadd.f32 %v5808, %v5744
    %v5873 = vadd.f32 %v5809, %v5745
    %v5874 = vadd.f32 %v5810, %v5746
    %v5875 = vadd.f32 %v5811, %v5747
    %v5876 = vadd.f32 %v5812, %v5748
    %v5877 = vadd.f32 %v5813, %v5749
    %v5878 = vadd.f32 %v5814, %v5750
    %v5879 = vadd.f32 %v5815, %v5751
    %v5880 = vadd.f32 %v5816, %v5752
    %v5881 = vadd.f32 %v5817, %v5753
    %v5882 = vadd.f32 %v5818, %v5754
    %v5883 = vadd.f32 %v5819, %v5755
    %v5884 = vadd.f32 %v5820, %v5756
    %v5885 = vadd.f32 %v5821, %v5757
    %v5886 = vadd.f32 %v5822, %v5758
    %v5887 = vadd.f32 %v5823, %v5759
    %v5888 = vadd.f32 %v5824, %v5760
    %v5889 = vadd.f32 %v5825, %v5761
    %v5890 = vadd.f32 %v5826, %v5762
    %v5891 = vadd.f32 %v5827, %v5763
    %v5892 = vadd.f32 %v5828, %v5764
    %v5893 = vadd.f32 %v5829, %v5765
    %v5894 = vadd.f32 %v5830, %v5766
    %v5895 = vadd.f32 %v5831, %v5767
    %v5896 = vadd.f32 %v5832, %v5768
    %v5897 = vadd.f32 %v5833, %v5769
    %v5898 = vadd.f32 %v5834, %v5770
    %v5899 = vadd.f32 %v5835, %v5771
    %v5900 = vadd.f32 %v5836, %v5772
    %v5901 = vadd.f32 %v5837, %v5773
    %v5902 = vadd.f32 %v5838, %v5774
    %v5903 = vadd.f32 %v5839, %v5775
    %v5904 = vadd.f32 %v5840, %v5776
    %v5905 = vadd.f32 %v5841, %v5777
    %v5906 = vadd.f32 %v5842, %v5778
    %v5907 = vadd.f32 %v5843, %v5779
    %v5908 = vadd.f32 %v5844, %v5780
    %v5909 = vadd.f32 %v5845, %v5781
    %v5910 = vadd.f32 %v5846, %v5782
    %v5911 = vadd.f32 %v5847, %v5783
    %v5912 = vadd.f32 %v5848, %v5784
    %v5913 = vadd.f32 %v5849, %v5785
    %v5914 = vadd.f32 %v5850, %v5786
    %5915 = vxpose.xlu0.b32.start [1/16] %v5851, 128
    %5916 = vxpose.xlu0.b32.cont [2/16] %v5852, 128
    %5917 = vxpose.xlu0.b32.cont [3/16] %v5853, 128
    %5918 = vxpose.xlu0.b32.cont [4/16] %v5854, 128
    %5919 = vxpose.xlu0.b32.cont [5/16] %v5855, 128
    %5920 = vxpose.xlu0.b32.cont [6/16] %v5856, 128
    %5921 = vxpose.xlu0.b32.cont [7/16] %v5857, 128
    %5922 = vxpose.xlu0.b32.cont [8/16] %v5858, 128
    %5923 = vxpose.xlu0.b32.cont [9/16] %v5859, 128
    %5924 = vxpose.xlu0.b32.cont [10/16] %v5860, 128
    %5925 = vxpose.xlu0.b32.cont [11/16] %v5861, 128
    %5926 = vxpose.xlu0.b32.cont [12/16] %v5862, 128
    %5927 = vxpose.xlu0.b32.cont [13/16] %v5863, 128
    %5928 = vxpose.xlu0.b32.cont [14/16] %v5864, 128
    %5929 = vxpose.xlu0.b32.cont [15/16] %v5865, 128
    %5930 = vxpose.xlu0.b32.end [16/16] %v5866, 128
    %v5931 = vpop.trf.xlu0
    %v5932 = vpop.trf.xlu0
    %v5933 = vpop.trf.xlu0
    %v5934 = vpop.trf.xlu0
    %v5935 = vpop.trf.xlu0
    %v5936 = vpop.trf.xlu0
    %v5937 = vpop.trf.xlu0
    %v5938 = vpop.trf.xlu0
    %v5939 = vpop.trf.xlu0
    %v5940 = vpop.trf.xlu0
    %v5941 = vpop.trf.xlu0
    %v5942 = vpop.trf.xlu0
    %v5943 = vpop.trf.xlu0
    %v5944 = vpop.trf.xlu0
    %v5945 = vpop.trf.xlu0
    %v5946 = vpop.trf.xlu0
    %5947 = vxpose.xlu0.b32.start [1/16] %v5867, 128
    %5948 = vxpose.xlu0.b32.cont [2/16] %v5868, 128
    %5949 = vxpose.xlu0.b32.cont [3/16] %v5869, 128
    %5950 = vxpose.xlu0.b32.cont [4/16] %v5870, 128
    %5951 = vxpose.xlu0.b32.cont [5/16] %v5871, 128
    %5952 = vxpose.xlu0.b32.cont [6/16] %v5872, 128
    %5953 = vxpose.xlu0.b32.cont [7/16] %v5873, 128
    %5954 = vxpose.xlu0.b32.cont [8/16] %v5874, 128
    %5955 = vxpose.xlu0.b32.cont [9/16] %v5875, 128
    %5956 = vxpose.xlu0.b32.cont [10/16] %v5876, 128
    %5957 = vxpose.xlu0.b32.cont [11/16] %v5877, 128
    %5958 = vxpose.xlu0.b32.cont [12/16] %v5878, 128
    %5959 = vxpose.xlu0.b32.cont [13/16] %v5879, 128
    %5960 = vxpose.xlu0.b32.cont [14/16] %v5880, 128
    %5961 = vxpose.xlu0.b32.cont [15/16] %v5881, 128
    %5962 = vxpose.xlu0.b32.end [16/16] %v5882, 128
    %v5963 = vpop.trf.xlu0
    %v5964 = vpop.trf.xlu0
    %v5965 = vpop.trf.xlu0
    %v5966 = vpop.trf.xlu0
    %v5967 = vpop.trf.xlu0
    %v5968 = vpop.trf.xlu0
    %v5969 = vpop.trf.xlu0
    %v5970 = vpop.trf.xlu0
    %v5971 = vpop.trf.xlu0
    %v5972 = vpop.trf.xlu0
    %v5973 = vpop.trf.xlu0
    %v5974 = vpop.trf.xlu0
    %v5975 = vpop.trf.xlu0
    %v5976 = vpop.trf.xlu0
    %v5977 = vpop.trf.xlu0
    %v5978 = vpop.trf.xlu0
    %5979 = vst [vmem:[#allocation6] sm:$0xff] %v5931
    %5980 = vst [vmem:[#allocation6 + $0x8] sm:$0xff] %v5963
    %5981 = vst [vmem:[#allocation6 + $0x10] sm:$0xff] %v5932
    %5982 = vst [vmem:[#allocation6 + $0x18] sm:$0xff] %v5964
    %5983 = vxpose.xlu0.b32.start [1/16] %v5883, 128
    %5984 = vxpose.xlu0.b32.cont [2/16] %v5884, 128
    %5985 = vxpose.xlu0.b32.cont [3/16] %v5885, 128
    %5986 = vxpose.xlu0.b32.cont [4/16] %v5886, 128
    %5987 = vxpose.xlu0.b32.cont [5/16] %v5887, 128
    %5988 = vxpose.xlu0.b32.cont [6/16] %v5888, 128
    %5989 = vxpose.xlu0.b32.cont [7/16] %v5889, 128
    %5990 = vxpose.xlu0.b32.cont [8/16] %v5890, 128
    %5991 = vxpose.xlu0.b32.cont [9/16] %v5891, 128
    %5992 = vxpose.xlu0.b32.cont [10/16] %v5892, 128
    %5993 = vxpose.xlu0.b32.cont [11/16] %v5893, 128
    %5994 = vxpose.xlu0.b32.cont [12/16] %v5894, 128
    %5995 = vxpose.xlu0.b32.cont [13/16] %v5895, 128
    %5996 = vxpose.xlu0.b32.cont [14/16] %v5896, 128
    %5997 = vxpose.xlu0.b32.cont [15/16] %v5897, 128
    %5998 = vxpose.xlu0.b32.end [16/16] %v5898, 128
    %v5999 = vpop.trf.xlu0
    %v6000 = vpop.trf.xlu0
    %v6001 = vpop.trf.xlu0
    %v6002 = vpop.trf.xlu0
    %v6003 = vpop.trf.xlu0
    %v6004 = vpop.trf.xlu0
    %v6005 = vpop.trf.xlu0
    %v6006 = vpop.trf.xlu0
    %v6007 = vpop.trf.xlu0
    %v6008 = vpop.trf.xlu0
    %v6009 = vpop.trf.xlu0
    %v6010 = vpop.trf.xlu0
    %v6011 = vpop.trf.xlu0
    %v6012 = vpop.trf.xlu0
    %v6013 = vpop.trf.xlu0
    %v6014 = vpop.trf.xlu0
    %6015 = vxpose.xlu0.b32.start [1/16] %v5899, 128
    %6016 = vxpose.xlu0.b32.cont [2/16] %v5900, 128
    %6017 = vxpose.xlu0.b32.cont [3/16] %v5901, 128
    %6018 = vxpose.xlu0.b32.cont [4/16] %v5902, 128
    %6019 = vxpose.xlu0.b32.cont [5/16] %v5903, 128
    %6020 = vxpose.xlu0.b32.cont [6/16] %v5904, 128
    %6021 = vxpose.xlu0.b32.cont [7/16] %v5905, 128
    %6022 = vxpose.xlu0.b32.cont [8/16] %v5906, 128
    %6023 = vxpose.xlu0.b32.cont [9/16] %v5907, 128
    %6024 = vxpose.xlu0.b32.cont [10/16] %v5908, 128
    %6025 = vxpose.xlu0.b32.cont [11/16] %v5909, 128
    %6026 = vxpose.xlu0.b32.cont [12/16] %v5910, 128
    %6027 = vxpose.xlu0.b32.cont [13/16] %v5911, 128
    %6028 = vxpose.xlu0.b32.cont [14/16] %v5912, 128
    %6029 = vxpose.xlu0.b32.cont [15/16] %v5913, 128
    %6030 = vxpose.xlu0.b32.end [16/16] %v5914, 128
    %v6031 = vpop.trf.xlu0
    %v6032 = vpop.trf.xlu0
    %v6033 = vpop.trf.xlu0
    %v6034 = vpop.trf.xlu0
    %v6035 = vpop.trf.xlu0
    %v6036 = vpop.trf.xlu0
    %v6037 = vpop.trf.xlu0
    %v6038 = vpop.trf.xlu0
    %v6039 = vpop.trf.xlu0
    %v6040 = vpop.trf.xlu0
    %v6041 = vpop.trf.xlu0
    %v6042 = vpop.trf.xlu0
    %v6043 = vpop.trf.xlu0
    %v6044 = vpop.trf.xlu0
    %v6045 = vpop.trf.xlu0
    %v6046 = vpop.trf.xlu0
    %s6047 = scalar_lea.vmem [#allocation6], 32
    %6048 = vst [vmem:[%s6047] sm:$0xff] %v5999
    %6049 = vst [vmem:[%s6047 + $0x8] sm:$0xff] %v6031
    %6050 = vst [vmem:[%s6047 + $0x10] sm:$0xff] %v6000
    %6051 = vst [vmem:[%s6047 + $0x18] sm:$0xff] %v6032
    // Predicated region
    $region22: #{tpu_custom_call.1} parent=1 // pred_check
      _
    $region23: #{tpu_custom_call.1} parent=1 // pred_check_branch
      %6053 = sbr.rel (0) target = $region25
    $region24: #{tpu_custom_call.1} parent=1 // pred_region
      %s6055 = ssub.s32 1024, 1024
      %6056 = vsyncadd [#allocation5], %s6055
      %s6057 = sshll.u32 [#allocation6], 4
      %s6058 = int_to_ptr.vmem [resolvable:$true] %s6057
      %6063 = dma.vmem_to_hbm [thread:$0]  %s6058, 1024, %s4, [#allocation5], 256, 256, 16
    $region25: #{tpu_custom_call.1} parent=1 // pred_fallthru
      _
    // Predicated region
    $region26: #{tpu_custom_call.1} parent=1 // pred_check
      _
    $region27: #{tpu_custom_call.1} parent=1 // pred_check_branch
      %6065 = sbr.rel (0) target = $region29
    $region28: #{tpu_custom_call.1} parent=1 // pred_region
      %6066 = dma.done [#allocation5], 1024
    $region29: #{tpu_custom_call.1} parent=1 // pred_fallthru
      _
    %6067 = vsyncpa [#allocation4], 1
    %6068 = vsyncpa [#allocation5], 1

</llo_original>
